<compile_context>
chip_gen: v7x
topology: tpu7x:2x2x1
jax: 0.10.0
libtpu: 0.0.40
codegen_flags: <defaults>
</compile_context>

<pallas_src>
import functools

import jax
import jax.numpy as jnp
from jax import lax
from jax.experimental import pallas as pl
from jax.experimental.pallas import tpu as pltpu


def _round_up(x, m):
    return ((x + m - 1) // m) * m


def _cdiv(a, b):
    return -(-a // b)


# ----------------------------------------------------------------------------
# Fused DoubleConv Pallas kernel (flattened spatial layout, manual input DMA)
# ----------------------------------------------------------------------------
def _double_conv_kernel(x_hbm, mk_hbm, w1_ref, b1_ref, w2_ref, b2_ref, o_ref,
                        x_vmem, mk_vmem, sems, *, W8, TH, M, MM, MX, Ma,
                        NSTRIDE):
    # x_hbm : (N*Hbuf*W8, Cin)  bf16 flat, zero-padded input (HBM)
    # mk_hbm: (Hbuf*W8, 1)      bf16 "inside real image" mask (HBM)
    # w1_ref: (3, 3*Cin, Cm)    bf16 conv1 weights, BN1 scale folded, kx in K
    # b1_ref: (1, Cm)           f32  BN1 shift
    # w2_ref: (3, 3*Cm, Co)     bf16 conv2 weights, BN2 scale folded, kx in K
    # b2_ref: (1, Co)           f32  BN2 shift
    # o_ref : (M, Co)           bf16 output tile (Co = real out_channels)
    n = pl.program_id(0)
    t = pl.program_id(1)

    # Flat start of this tile's input window (row0 = t*TH buffer rows).
    x0 = pl.multiple_of(n * NSTRIDE + t * (TH * W8), 8)
    x0m = pl.multiple_of(t * (TH * W8), 8)

    cp_x = pltpu.make_async_copy(x_hbm.at[pl.ds(x0, MX), :], x_vmem, sems.at[0])
    cp_m = pltpu.make_async_copy(mk_hbm.at[pl.ds(x0m, MX), :], mk_vmem,
                                 sems.at[1])
    cp_x.start()
    cp_m.start()
    cp_x.wait()
    cp_m.wait()

    cm = w1_ref.shape[-1]

    # ---- conv1 + BN1 + ReLU on mid positions [Ma, Ma + MM) -------------------
    # S1[i] = [x[p-1], x[p], x[p+1]] (p = a1 + i): kx taps folded into K.
    a1 = Ma - W8
    L1 = MM + 2 * W8
    s1 = jnp.concatenate(
        [x_vmem[a1 - 1:a1 - 1 + L1, :],
         x_vmem[a1:a1 + L1, :],
         x_vmem[a1 + 1:a1 + 1 + L1, :]], axis=-1)          # (L1, 3*Cin) bf16

    acc1 = jnp.dot(s1[0:MM, :], w1_ref[0],
                   preferred_element_type=jnp.float32)
    for ky in (1, 2):
        acc1 = acc1 + jnp.dot(s1[ky * W8:ky * W8 + MM, :], w1_ref[ky],
                              preferred_element_type=jnp.float32)
    h = jnp.maximum(acc1 + b1_ref[...], 0.0)                # (MM, Cm) f32
    # Zero every mid position outside the real image: this IS conv2's zero
    # padding ring (and kills garbage in the pad rows/columns).
    h = (h * mk_vmem[Ma:Ma + MM, :]).astype(jnp.bfloat16)

    # ---- conv2 + BN2 + ReLU on output positions [3*W8, 3*W8 + M) -------------
    a2 = 2 * W8                                             # = O1 - W8
    L2 = M + 2 * W8
    s2 = jnp.concatenate(
        [h[a2 - 1 - Ma:a2 - 1 - Ma + L2],
         h[a2 - Ma:a2 - Ma + L2],
         h[a2 + 1 - Ma:a2 + 1 - Ma + L2]], axis=-1)         # (L2, 3*Cm) bf16

    acc2 = jnp.dot(s2[0:M, :], w2_ref[0],
                   preferred_element_type=jnp.float32)
    for ky in (1, 2):
        acc2 = acc2 + jnp.dot(s2[ky * W8:ky * W8 + M, :], w2_ref[ky],
                              preferred_element_type=jnp.float32)
    o_ref[...] = jnp.maximum(acc2 + b2_ref[...], 0.0).astype(o_ref.dtype)


def _pick_tile_h(H, W8, cin, cm, cout, budget_bytes):
    """Largest row tile (multiple of 8) whose VMEM working set fits budget."""
    def lane(c):
        return _round_up(max(int(c), 1), 128)

    def step_bytes(th):
        M = th * W8
        MM = (th + 2) * W8 + 16
        MX = (th + 6) * W8
        L1 = MM + 2 * W8
        L2 = M + 2 * W8
        b = MX * lane(cin) * 2            # input tile scratch (bf16)
        b += MX * 128 * 2                 # mask scratch (bf16, 1 lane tile)
        b += L1 * lane(3 * cin) * 2       # kx-folded conv1 operand
        b += MM * lane(cm) * (4 + 2)      # conv1 f32 acc + bf16 mid
        b += L2 * lane(3 * cm) * 2        # kx-folded conv2 operand
        b += M * lane(cout) * 4           # conv2 f32 acc
        b += 2 * M * lane(cout) * 2       # output block (bf16, double-buffered)
        return b

    th_max = _round_up(max(H, 8), 8)
    th = 8
    while th + 8 <= th_max and step_bytes(th + 8) <= budget_bytes:
        th += 8
    return th


def fused_up_double_conv(x2, x1u, w1p, b1p, w2p, b2p, out_channels):
    """Fused pad/concat + DoubleConv.

    x2 : (N, H, W, C2) f32 skip connection (defines the output spatial size)
    x1u: (N, h1, w1, C1) f32 upsampled decoder feature (h1<=H, w1<=W)
    Returns (N, H, W, out_channels) bf16.
    """
    N, H, W, C2 = x2.shape
    _, h1, w1_, C1 = x1u.shape
    Cin = C2 + C1
    K1 = w1p.shape[1]
    Cm = w1p.shape[2]
    K2 = w2p.shape[1]
    assert K1 == 3 * Cin and K2 == 3 * Cm and w2p.shape[2] == out_channels

    W8 = max(_round_up(W + 4, 8), 16)     # padded row stride, multiple of 8

    # Generation-aware VMEM budget (v7x: 64 MiB per TC, v5e/v6e: 128 MiB).
    try:
        vmem_cap = int(getattr(pltpu.get_tpu_info(), "vmem_capacity_bytes",
                               64 * 1024 * 1024))
    except Exception:  # pragma: no cover - interpret mode / CPU tracing
        vmem_cap = 64 * 1024 * 1024
    vmem_limit = int(min(vmem_cap * 3 // 4, 96 * 1024 * 1024))
    weight_bytes = 2 * 2 * (3 * _round_up(K1, 8) * _round_up(Cm, 128)
                            + 3 * _round_up(K2, 8) * _round_up(out_channels,
                                                               128))
    budget = max(4 * 1024 * 1024, vmem_limit // 2 - weight_bytes)

    TH = _pick_tile_h(H, W8, Cin, Cm, out_channels, budget)
    nT = _cdiv(H, TH)
    if N * nT < 2 and H > 8:              # keep both TensorCores busy (v7x)
        TH = max(8, _round_up(_cdiv(H, 2), 8))
        nT = _cdiv(H, TH)
    Hp = nT * TH

    M = TH * W8                           # output flat positions per tile
    MM = (TH + 2) * W8 + 16               # mid positions (8-aligned superset)
    MX = (TH + 6) * W8                    # input flat positions per tile
    Ma = 2 * W8 - 8                       # first mid position (8-aligned)

    # Zero-padded flat bf16 input buffer: 3 pad rows on top, 3+(Hp-H) at the
    # bottom, 2 pad cols on the left, the remaining width padding on the
    # right.  x2 -> channels [0, C2), padded/upsampled x1 -> channels [C2, Cin).
    Hbuf = Hp + 6
    dy0 = (H - h1) // 2
    dx0 = (W - w1_) // 2
    buf = jnp.zeros((N, Hbuf, W8, Cin), jnp.bfloat16)
    buf = buf.at[:, 3:3 + H, 2:2 + W, :C2].set(x2.astype(jnp.bfloat16))
    buf = buf.at[:, 3 + dy0:3 + dy0 + h1, 2 + dx0:2 + dx0 + w1_, C2:].set(
        x1u.astype(jnp.bfloat16))
    x_flat = buf.reshape(N * Hbuf * W8, Cin)
    NSTRIDE = Hbuf * W8                   # flat rows per batch element

    # "Inside the real image" mask -> conv2's zero padding ring.
    mask = jnp.zeros((Hbuf, W8), jnp.bfloat16).at[3:3 + H, 2:2 + W].set(1.0)
    mask_flat = mask.reshape(Hbuf * W8, 1)

    kernel = functools.partial(_double_conv_kernel, W8=W8, TH=TH, M=M, MM=MM,
                               MX=MX, Ma=Ma, NSTRIDE=NSTRIDE)
    out = pl.pallas_call(
        kernel,
        out_shape=jax.ShapeDtypeStruct((N, nT, M, out_channels), jnp.bfloat16),
        grid_spec=pltpu.PrefetchScalarGridSpec(
            num_scalar_prefetch=0,
            grid=(N, nT),
            in_specs=[
                pl.BlockSpec(memory_space=pl.ANY),       # x_flat  stays in HBM
                pl.BlockSpec(memory_space=pl.ANY),       # mask    stays in HBM
                pl.BlockSpec((3, K1, Cm), lambda n, t: (0, 0, 0)),
                pl.BlockSpec((1, Cm), lambda n, t: (0, 0)),
                pl.BlockSpec((3, K2, out_channels), lambda n, t: (0, 0, 0)),
                pl.BlockSpec((1, out_channels), lambda n, t: (0, 0)),
            ],
            out_specs=pl.BlockSpec((None, None, M, out_channels),
                                   lambda n, t: (n, t, 0, 0)),
            scratch_shapes=[
                pltpu.VMEM((MX, Cin), jnp.bfloat16),
                pltpu.VMEM((MX, 1), jnp.bfloat16),
                pltpu.SemaphoreType.DMA((2,)),
            ],
        ),
        compiler_params=pltpu.CompilerParams(
            dimension_semantics=("parallel", "parallel"),
            vmem_limit_bytes=vmem_limit,
        ),
    )(x_flat, mask_flat, w1p, b1p, w2p, b2p)

    # (N, nT, TH*W8, Co) -> (N, Hp, W8, Co) -> strip pad rows / pad cols.
    out = out.reshape(N, Hp, W8, out_channels)[:, :H, 2:2 + W, :]
    return out


# ----------------------------------------------------------------------------
# Parameter preparation: fold eval-mode BN into conv weights, fold kx into K
# ----------------------------------------------------------------------------
def fold_bn(gamma, beta, running_mean, running_var, eps=1e-5):
    scale = gamma / jnp.sqrt(running_var + eps)
    shift = beta - running_mean * scale
    return scale, shift


def _prep_conv_params(w_hwio, gamma, beta, mean, var, cin_pad, cout_pad,
                      eps=1e-5):
    kh, kw, cin, cout = w_hwio.shape
    scale, shift = fold_bn(gamma, beta, mean, var, eps)
    w = w_hwio * scale                                        # fold BN scale
    w = jnp.pad(w, ((0, 0), (0, 0), (0, cin_pad - cin), (0, cout_pad - cout)))
    # K layout must match the in-kernel concat order: [kx=0 ch, kx=1 ch, kx=2 ch]
    w = w.reshape(kh, kw * cin_pad, cout_pad)
    b = jnp.pad(shift, (0, cout_pad - cout)).reshape(1, cout_pad)
    return w.astype(jnp.bfloat16), b.astype(jnp.float32)


# ----------------------------------------------------------------------------
# Bilinear upsample (scale_factor=2, align_corners=True), as torch.nn.Upsample
# ----------------------------------------------------------------------------
def _interp_matrix(n_in, n_out):
    if n_in == 1:
        return jnp.ones((n_out, 1), jnp.float32)
    src = jnp.arange(n_out, dtype=jnp.float32) * (n_in - 1) / (n_out - 1)
    i0 = jnp.clip(jnp.floor(src).astype(jnp.int32), 0, n_in - 2)
    frac = src - i0.astype(jnp.float32)
    rows = jnp.arange(n_out)
    A = jnp.zeros((n_out, n_in), jnp.float32)
    A = A.at[rows, i0].add(1.0 - frac)
    A = A.at[rows, i0 + 1].add(frac)
    return A


def bilinear_upsample_x2(x_nhwc):
    N, H, W, C = x_nhwc.shape
    Ah = _interp_matrix(H, 2 * H)
    Aw = _interp_matrix(W, 2 * W)
    y = jnp.einsum("oh,nhwc->nowc", Ah, x_nhwc)
    y = jnp.einsum("pw,nowc->nopc", Aw, y)
    return y


# ----------------------------------------------------------------------------
# The Up module
# ----------------------------------------------------------------------------
def init_up_params(key, in_channels, out_channels):
    mid = in_channels // 2  # bilinear=True path: DoubleConv(in, out, in//2)
    k = jax.random.split(key, 10)
    p = {
        "w1": jax.random.normal(k[0], (3, 3, in_channels, mid), jnp.float32) * 0.1,
        "bn1_gamma": 1.0 + 0.1 * jax.random.normal(k[1], (mid,), jnp.float32),
        "bn1_beta": 0.1 * jax.random.normal(k[2], (mid,), jnp.float32),
        "bn1_mean": 0.1 * jax.random.normal(k[3], (mid,), jnp.float32),
        "bn1_var": jax.random.uniform(k[4], (mid,), jnp.float32, 0.5, 1.5),
        "w2": jax.random.normal(k[5], (3, 3, mid, out_channels), jnp.float32) * 0.1,
        "bn2_gamma": 1.0 + 0.1 * jax.random.normal(k[6], (out_channels,), jnp.float32),
        "bn2_beta": 0.1 * jax.random.normal(k[7], (out_channels,), jnp.float32),
        "bn2_mean": 0.1 * jax.random.normal(k[8], (out_channels,), jnp.float32),
        "bn2_var": jax.random.uniform(k[9], (out_channels,), jnp.float32, 0.5, 1.5),
    }
    return p


def up_forward(params, x1_nchw, x2_nchw):
    """Equivalent of Up.forward(x1, x2) with bilinear=True. NCHW in, NCHW out."""
    x1 = jnp.transpose(x1_nchw, (0, 2, 3, 1)).astype(jnp.float32)
    x2 = jnp.transpose(x2_nchw, (0, 2, 3, 1)).astype(jnp.float32)

    # 1) upsample x1 (bilinear, scale 2, align_corners=True)
    x1u = bilinear_upsample_x2(x1)

    # 2+3) pad + channel-concat are folded into the kernel's input buffer build;
    #      the whole DoubleConv runs as one fused Pallas kernel.
    mid = params["w1"].shape[-1]
    out_channels = params["w2"].shape[-1]
    Cin = x2.shape[-1] + x1u.shape[-1]
    Cm = _round_up(mid, 128)              # lane-aligned mid channels

    w1p, b1p = _prep_conv_params(params["w1"], params["bn1_gamma"],
                                 params["bn1_beta"], params["bn1_mean"],
                                 params["bn1_var"], cin_pad=Cin, cout_pad=Cm)
    w2p, b2p = _prep_conv_params(params["w2"], params["bn2_gamma"],
                                 params["bn2_beta"], params["bn2_mean"],
                                 params["bn2_var"], cin_pad=Cm,
                                 cout_pad=out_channels)

    y = fused_up_double_conv(x2, x1u, w1p, b1p, w2p, b2p, out_channels)

    # NHWC bf16 -> NCHW f32
    return jnp.transpose(y.astype(jnp.float32), (0, 3, 1, 2))


# ----------------------------------------------------------------------------
# Pure-JAX reference (for sanity check only)
# ----------------------------------------------------------------------------
def _ref_conv_bn_relu(x_nhwc, w_hwio, scale, shift):
    y = lax.conv_general_dilated(
        x_nhwc, w_hwio, window_strides=(1, 1), padding="SAME",
        dimension_numbers=("NHWC", "HWIO", "NHWC"))
    y = y * scale.reshape(1, 1, 1, -1) + shift.reshape(1, 1, 1, -1)
    return jnp.maximum(y, 0.0)


def up_forward_ref(params, x1_nchw, x2_nchw):
    x1 = jnp.transpose(x1_nchw, (0, 2, 3, 1)).astype(jnp.float32)
    x2 = jnp.transpose(x2_nchw, (0, 2, 3, 1)).astype(jnp.float32)
    x1 = bilinear_upsample_x2(x1)
    dy = x2.shape[1] - x1.shape[1]
    dx = x2.shape[2] - x1.shape[2]
    x1 = jnp.pad(x1, ((0, 0), (dy // 2, dy - dy // 2),
                      (dx // 2, dx - dx // 2), (0, 0)))
    x = jnp.concatenate([x2, x1], axis=-1)
    s1, b1 = fold_bn(params["bn1_gamma"], params["bn1_beta"],
                     params["bn1_mean"], params["bn1_var"])
    s2, b2 = fold_bn(params["bn2_gamma"], params["bn2_beta"],
                     params["bn2_mean"], params["bn2_var"])
    x = _ref_conv_bn_relu(x, params["w1"], s1, b1)
    x = _ref_conv_bn_relu(x, params["w2"], s2, b2)
    return jnp.transpose(x, (0, 3, 1, 2))


if __name__ == "__main__":
    key = jax.random.PRNGKey(0)
    k_par, k_x1, k_x2 = jax.random.split(key, 3)

    # Up(in_channels=8, out_channels=4, bilinear=True):
    # x1 and x2 each carry in_channels//2 = 4 channels (UNet skip connection).
    N, in_channels, out_channels = 2, 8, 4
    x1 = jax.random.normal(k_x1, (N, in_channels // 2, 7, 7), jnp.float32)    # NCHW
    x2 = jax.random.normal(k_x2, (N, in_channels // 2, 16, 16), jnp.float32)  # NCHW

    params = init_up_params(k_par, in_channels, out_channels)

    out = jax.block_until_ready(jax.jit(up_forward)(params, x1, x2))
    ref = jax.block_until_ready(up_forward_ref(params, x1, x2))

    assert out.shape == (N, out_channels, 16, 16), out.shape
    # bf16 MXU operands / bf16 output store (intentional accuracy trade-off)
    # -> looser tolerance than a pure f32 path.
    assert jnp.allclose(out, ref, rtol=5e-2, atol=5e-2), \
        float(jnp.max(jnp.abs(out - ref)))

    print("KERNEL_OK")
</pallas_src>

<mosaic_0001>
module attributes {stable_mosaic.version = 11 : i64} {
  func.func @_double_conv_kernel(%arg0: i32, %arg1: i32, %arg2: memref<1056x8xbf16, #tpu.memory_space<any>>, %arg3: memref<528x1xbf16, #tpu.memory_space<any>>, %arg4: memref<3x24x128xbf16, #tpu.memory_space<vmem>>, %arg5: memref<1x128xf32, #tpu.memory_space<vmem>>, %arg6: memref<3x384x4xbf16, #tpu.memory_space<vmem>>, %arg7: memref<1x4xf32, #tpu.memory_space<vmem>>, %arg8: memref<1x1x384x4xbf16, #tpu.memory_space<vmem>>, %arg9: memref<528x8xbf16, #tpu.memory_space<vmem>>, %arg10: memref<528x1xbf16, #tpu.memory_space<vmem>>, %arg11: memref<2x!tpu.dma_semaphore, #tpu.memory_space<semaphore_mem>>) attributes {dimension_semantics = [#tpu.dimension_semantics<parallel>, #tpu.dimension_semantics<parallel>], iteration_bounds = array<i64: 2, 1>, scalar_prefetch = 0 : i64, scratch_operands = 3 : i64, tpu.core_type = #tpu.core_type<tc>, window_params = [{}, {}, {pipeline_mode = #tpu.pipeline_mode<synchronous>, transform_indices = @transform_2, window_bounds = array<i64: 3, 24, 128>}, {pipeline_mode = #tpu.pipeline_mode<synchronous>, transform_indices = @transform_3, window_bounds = array<i64: 1, 128>}, {pipeline_mode = #tpu.pipeline_mode<synchronous>, transform_indices = @transform_4, window_bounds = array<i64: 3, 384, 4>}, {pipeline_mode = #tpu.pipeline_mode<synchronous>, transform_indices = @transform_5, window_bounds = array<i64: 1, 4>}, {transform_indices = @transform_6, window_bounds = array<i64: 1, 1, 384, 4>}]} {
    %c528_i32 = arith.constant 528 : i32
    %0 = arith.muli %arg0, %c528_i32 : i32
    %c384_i32 = arith.constant 384 : i32
    %1 = arith.muli %arg1, %c384_i32 : i32
    %2 = arith.addi %0, %1 : i32
    %3 = tpu.assume_multiple %2, 8 : i32
    %c384_i32_0 = arith.constant 384 : i32
    %4 = arith.muli %arg1, %c384_i32_0 : i32
    %5 = tpu.assume_multiple %4, 8 : i32
    %c0_i32 = arith.constant 0 : i32
    %c0_i32_1 = arith.constant 0 : i32
    %6 = tpu.memref_slice %arg2[%3, %c0_i32_1] : memref<1056x8xbf16, #tpu.memory_space<any>> -> memref<528x8xbf16, #tpu.memory_space<any>>
    %7 = tpu.memref_slice %arg11[%c0_i32] : memref<2x!tpu.dma_semaphore, #tpu.memory_space<semaphore_mem>> -> memref<1x!tpu.dma_semaphore, #tpu.memory_space<semaphore_mem>>
    %8 = tpu.memref_squeeze %7 : memref<1x!tpu.dma_semaphore, #tpu.memory_space<semaphore_mem>> -> memref<!tpu.dma_semaphore, #tpu.memory_space<semaphore_mem>>
    tpu.enqueue_dma source(%6 : memref<528x8xbf16, #tpu.memory_space<any>>) target(%arg9 : memref<528x8xbf16, #tpu.memory_space<vmem>>) target_semaphore(%8 : memref<!tpu.dma_semaphore, #tpu.memory_space<semaphore_mem>>)
    %c1_i32 = arith.constant 1 : i32
    %c0_i32_2 = arith.constant 0 : i32
    %9 = tpu.memref_slice %arg3[%5, %c0_i32_2] : memref<528x1xbf16, #tpu.memory_space<any>> -> memref<528x1xbf16, #tpu.memory_space<any>>
    %10 = tpu.memref_slice %arg11[%c1_i32] : memref<2x!tpu.dma_semaphore, #tpu.memory_space<semaphore_mem>> -> memref<1x!tpu.dma_semaphore, #tpu.memory_space<semaphore_mem>>
    %11 = tpu.memref_squeeze %10 : memref<1x!tpu.dma_semaphore, #tpu.memory_space<semaphore_mem>> -> memref<!tpu.dma_semaphore, #tpu.memory_space<semaphore_mem>>
    tpu.enqueue_dma source(%9 : memref<528x1xbf16, #tpu.memory_space<any>>) target(%arg10 : memref<528x1xbf16, #tpu.memory_space<vmem>>) target_semaphore(%11 : memref<!tpu.dma_semaphore, #tpu.memory_space<semaphore_mem>>)
    %c0_i32_3 = arith.constant 0 : i32
    %c0_i32_4 = arith.constant 0 : i32
    %12 = tpu.memref_slice %arg2[%3, %c0_i32_4] : memref<1056x8xbf16, #tpu.memory_space<any>> -> memref<528x8xbf16, #tpu.memory_space<any>>
    %13 = tpu.memref_slice %arg11[%c0_i32_3] : memref<2x!tpu.dma_semaphore, #tpu.memory_space<semaphore_mem>> -> memref<1x!tpu.dma_semaphore, #tpu.memory_space<semaphore_mem>>
    %14 = tpu.memref_squeeze %13 : memref<1x!tpu.dma_semaphore, #tpu.memory_space<semaphore_mem>> -> memref<!tpu.dma_semaphore, #tpu.memory_space<semaphore_mem>>
    tpu.wait_dma2 semaphore(%14 : memref<!tpu.dma_semaphore, #tpu.memory_space<semaphore_mem>>) src(%12 : memref<528x8xbf16, #tpu.memory_space<any>>) dst(%arg9 : memref<528x8xbf16, #tpu.memory_space<vmem>>)
    %c1_i32_5 = arith.constant 1 : i32
    %c0_i32_6 = arith.constant 0 : i32
    %15 = tpu.memref_slice %arg3[%5, %c0_i32_6] : memref<528x1xbf16, #tpu.memory_space<any>> -> memref<528x1xbf16, #tpu.memory_space<any>>
    %16 = tpu.memref_slice %arg11[%c1_i32_5] : memref<2x!tpu.dma_semaphore, #tpu.memory_space<semaphore_mem>> -> memref<1x!tpu.dma_semaphore, #tpu.memory_space<semaphore_mem>>
    %17 = tpu.memref_squeeze %16 : memref<1x!tpu.dma_semaphore, #tpu.memory_space<semaphore_mem>> -> memref<!tpu.dma_semaphore, #tpu.memory_space<semaphore_mem>>
    tpu.wait_dma2 semaphore(%17 : memref<!tpu.dma_semaphore, #tpu.memory_space<semaphore_mem>>) src(%15 : memref<528x1xbf16, #tpu.memory_space<any>>) dst(%arg10 : memref<528x1xbf16, #tpu.memory_space<vmem>>)
    %c15 = arith.constant 15 : index
    %c0 = arith.constant 0 : index
    %18 = vector.load %arg9[%c15, %c0] : memref<528x8xbf16, #tpu.memory_space<vmem>>, vector<496x8xbf16>
    %c16 = arith.constant 16 : index
    %c0_7 = arith.constant 0 : index
    %19 = vector.load %arg9[%c16, %c0_7] : memref<528x8xbf16, #tpu.memory_space<vmem>>, vector<496x8xbf16>
    %c17 = arith.constant 17 : index
    %c0_8 = arith.constant 0 : index
    %20 = vector.load %arg9[%c17, %c0_8] : memref<528x8xbf16, #tpu.memory_space<vmem>>, vector<496x8xbf16>
    %21 = tpu.concatenate %18, %19, %20 in 1 : vector<496x8xbf16>, vector<496x8xbf16>, vector<496x8xbf16> -> vector<496x24xbf16>
    %22 = vector.extract_strided_slice %21 {offsets = [0, 0], sizes = [448, 24], strides = [1, 1]} : vector<496x24xbf16> to vector<448x24xbf16>
    %c0_9 = arith.constant 0 : index
    %c0_10 = arith.constant 0 : index
    %c0_11 = arith.constant 0 : index
    %23 = vector.load %arg4[%c0_9, %c0_10, %c0_11] : memref<3x24x128xbf16, #tpu.memory_space<vmem>>, vector<1x24x128xbf16>
    %24 = vector.shape_cast %23 : vector<1x24x128xbf16> to vector<24x128xbf16>
    %cst = arith.constant dense<0.000000e+00> : vector<448x128xf32>
    %25 = tpu.matmul %22, %24, %cst {dimension_numbers = #tpu.dot_dimension_numbers<[1], [0], [0], [1], [0, 0, 1, 1], [], []>} : vector<448x24xbf16>, vector<24x128xbf16>, vector<448x128xf32> -> vector<448x128xf32>
    %26 = vector.extract_strided_slice %21 {offsets = [24, 0], sizes = [448, 24], strides = [1, 1]} : vector<496x24xbf16> to vector<448x24xbf16>
    %c1 = arith.constant 1 : index
    %c0_12 = arith.constant 0 : index
    %c0_13 = arith.constant 0 : index
    %27 = vector.load %arg4[%c1, %c0_12, %c0_13] : memref<3x24x128xbf16, #tpu.memory_space<vmem>>, vector<1x24x128xbf16>
    %28 = vector.shape_cast %27 : vector<1x24x128xbf16> to vector<24x128xbf16>
    %cst_14 = arith.constant dense<0.000000e+00> : vector<448x128xf32>
    %29 = tpu.matmul %26, %28, %cst_14 {dimension_numbers = #tpu.dot_dimension_numbers<[1], [0], [0], [1], [0, 0, 1, 1], [], []>} : vector<448x24xbf16>, vector<24x128xbf16>, vector<448x128xf32> -> vector<448x128xf32>
    %30 = arith.addf %25, %29 : vector<448x128xf32>
    %31 = vector.extract_strided_slice %21 {offsets = [48, 0], sizes = [448, 24], strides = [1, 1]} : vector<496x24xbf16> to vector<448x24xbf16>
    %c2 = arith.constant 2 : index
    %c0_15 = arith.constant 0 : index
    %c0_16 = arith.constant 0 : index
    %32 = vector.load %arg4[%c2, %c0_15, %c0_16] : memref<3x24x128xbf16, #tpu.memory_space<vmem>>, vector<1x24x128xbf16>
    %33 = vector.shape_cast %32 : vector<1x24x128xbf16> to vector<24x128xbf16>
    %cst_17 = arith.constant dense<0.000000e+00> : vector<448x128xf32>
    %34 = tpu.matmul %31, %33, %cst_17 {dimension_numbers = #tpu.dot_dimension_numbers<[1], [0], [0], [1], [0, 0, 1, 1], [], []>} : vector<448x24xbf16>, vector<24x128xbf16>, vector<448x128xf32> -> vector<448x128xf32>
    %35 = arith.addf %30, %34 : vector<448x128xf32>
    %c0_18 = arith.constant 0 : index
    %c0_19 = arith.constant 0 : index
    %36 = vector.load %arg5[%c0_18, %c0_19] : memref<1x128xf32, #tpu.memory_space<vmem>>, vector<1x128xf32>
    %37 = vector.broadcast %36 : vector<1x128xf32> to vector<448x128xf32>
    %38 = arith.addf %35, %37 : vector<448x128xf32>
    %cst_20 = arith.constant 0.000000e+00 : f32
    %39 = vector.broadcast %cst_20 : f32 to vector<448x128xf32>
    %40 = arith.maximumf %38, %39 : vector<448x128xf32>
    %c40 = arith.constant 40 : index
    %c0_21 = arith.constant 0 : index
    %41 = vector.load %arg10[%c40, %c0_21] : memref<528x1xbf16, #tpu.memory_space<vmem>>, vector<448x1xbf16>
    %42 = arith.extf %41 : vector<448x1xbf16> to vector<448x1xf32>
    %43 = vector.broadcast %42 : vector<448x1xf32> to vector<448x128xf32>
    %44 = arith.mulf %40, %43 : vector<448x128xf32>
    %45 = arith.truncf %44 : vector<448x128xf32> to vector<448x128xbf16>
    %46 = vector.extract_strided_slice %45 {offsets = [7, 0], sizes = [432, 128], strides = [1, 1]} : vector<448x128xbf16> to vector<432x128xbf16>
    %47 = vector.extract_strided_slice %45 {offsets = [8, 0], sizes = [432, 128], strides = [1, 1]} : vector<448x128xbf16> to vector<432x128xbf16>
    %48 = vector.extract_strided_slice %45 {offsets = [9, 0], sizes = [432, 128], strides = [1, 1]} : vector<448x128xbf16> to vector<432x128xbf16>
    %49 = tpu.concatenate %46, %47, %48 in 1 : vector<432x128xbf16>, vector<432x128xbf16>, vector<432x128xbf16> -> vector<432x384xbf16>
    %50 = vector.extract_strided_slice %49 {offsets = [0, 0], sizes = [384, 384], strides = [1, 1]} : vector<432x384xbf16> to vector<384x384xbf16>
    %c0_22 = arith.constant 0 : index
    %c0_23 = arith.constant 0 : index
    %c0_24 = arith.constant 0 : index
    %51 = vector.load %arg6[%c0_22, %c0_23, %c0_24] : memref<3x384x4xbf16, #tpu.memory_space<vmem>>, vector<1x384x4xbf16>
    %52 = vector.shape_cast %51 : vector<1x384x4xbf16> to vector<384x4xbf16>
    %cst_25 = arith.constant dense<0.000000e+00> : vector<384x4xf32>
    %53 = tpu.matmul %50, %52, %cst_25 {dimension_numbers = #tpu.dot_dimension_numbers<[1], [0], [0], [1], [0, 0, 1, 1], [], []>} : vector<384x384xbf16>, vector<384x4xbf16>, vector<384x4xf32> -> vector<384x4xf32>
    %54 = vector.extract_strided_slice %49 {offsets = [24, 0], sizes = [384, 384], strides = [1, 1]} : vector<432x384xbf16> to vector<384x384xbf16>
    %c1_26 = arith.constant 1 : index
    %c0_27 = arith.constant 0 : index
    %c0_28 = arith.constant 0 : index
    %55 = vector.load %arg6[%c1_26, %c0_27, %c0_28] : memref<3x384x4xbf16, #tpu.memory_space<vmem>>, vector<1x384x4xbf16>
    %56 = vector.shape_cast %55 : vector<1x384x4xbf16> to vector<384x4xbf16>
    %cst_29 = arith.constant dense<0.000000e+00> : vector<384x4xf32>
    %57 = tpu.matmul %54, %56, %cst_29 {dimension_numbers = #tpu.dot_dimension_numbers<[1], [0], [0], [1], [0, 0, 1, 1], [], []>} : vector<384x384xbf16>, vector<384x4xbf16>, vector<384x4xf32> -> vector<384x4xf32>
    %58 = arith.addf %53, %57 : vector<384x4xf32>
    %59 = vector.extract_strided_slice %49 {offsets = [48, 0], sizes = [384, 384], strides = [1, 1]} : vector<432x384xbf16> to vector<384x384xbf16>
    %c2_30 = arith.constant 2 : index
    %c0_31 = arith.constant 0 : index
    %c0_32 = arith.constant 0 : index
    %60 = vector.load %arg6[%c2_30, %c0_31, %c0_32] : memref<3x384x4xbf16, #tpu.memory_space<vmem>>, vector<1x384x4xbf16>
    %61 = vector.shape_cast %60 : vector<1x384x4xbf16> to vector<384x4xbf16>
    %cst_33 = arith.constant dense<0.000000e+00> : vector<384x4xf32>
    %62 = tpu.matmul %59, %61, %cst_33 {dimension_numbers = #tpu.dot_dimension_numbers<[1], [0], [0], [1], [0, 0, 1, 1], [], []>} : vector<384x384xbf16>, vector<384x4xbf16>, vector<384x4xf32> -> vector<384x4xf32>
    %63 = arith.addf %58, %62 : vector<384x4xf32>
    %c0_34 = arith.constant 0 : index
    %c0_35 = arith.constant 0 : index
    %64 = vector.load %arg7[%c0_34, %c0_35] : memref<1x4xf32, #tpu.memory_space<vmem>>, vector<1x4xf32>
    %65 = vector.broadcast %64 : vector<1x4xf32> to vector<384x4xf32>
    %66 = arith.addf %63, %65 : vector<384x4xf32>
    %cst_36 = arith.constant 0.000000e+00 : f32
    %67 = vector.broadcast %cst_36 : f32 to vector<384x4xf32>
    %68 = arith.maximumf %66, %67 : vector<384x4xf32>
    %69 = arith.truncf %68 : vector<384x4xf32> to vector<384x4xbf16>
    %c0_37 = arith.constant 0 : index
    %c0_38 = arith.constant 0 : index
    %c0_39 = arith.constant 0 : index
    %c0_40 = arith.constant 0 : index
    %70 = vector.load %arg8[%c0_37, %c0_38, %c0_39, %c0_40] : memref<1x1x384x4xbf16, #tpu.memory_space<vmem>>, vector<1x1x384x4xbf16>
    %71 = vector.shape_cast %70 : vector<1x1x384x4xbf16> to vector<384x4xbf16>
    %72 = vector.shape_cast %69 : vector<384x4xbf16> to vector<1x1x384x4xbf16>
    tpu.vector_store %arg8[%c0_37, %c0_38, %c0_39, %c0_40], %72 {strides = array<i32>} : memref<1x1x384x4xbf16, #tpu.memory_space<vmem>>, vector<1x1x384x4xbf16>,
    return
  }
  func.func @transform_2(%arg0: i32, %arg1: i32) -> (i32, i32, i32) {
    %c0_i32 = arith.constant 0 : i32
    %c0_i32_0 = arith.constant 0 : i32
    %c0_i32_1 = arith.constant 0 : i32
    %c0_i32_2 = arith.constant 0 : i32
    return %c0_i32, %c0_i32_0, %c0_i32_1 : i32, i32, i32
  }
  func.func @transform_3(%arg0: i32, %arg1: i32) -> (i32, i32) {
    %c0_i32 = arith.constant 0 : i32
    %c0_i32_0 = arith.constant 0 : i32
    %c0_i32_1 = arith.constant 0 : i32
    return %c0_i32, %c0_i32_0 : i32, i32
  }
  func.func @transform_4(%arg0: i32, %arg1: i32) -> (i32, i32, i32) {
    %c0_i32 = arith.constant 0 : i32
    %c0_i32_0 = arith.constant 0 : i32
    %c0_i32_1 = arith.constant 0 : i32
    %c0_i32_2 = arith.constant 0 : i32
    return %c0_i32, %c0_i32_0, %c0_i32_1 : i32, i32, i32
  }
  func.func @transform_5(%arg0: i32, %arg1: i32) -> (i32, i32) {
    %c0_i32 = arith.constant 0 : i32
    %c0_i32_0 = arith.constant 0 : i32
    %c0_i32_1 = arith.constant 0 : i32
    return %c0_i32, %c0_i32_0 : i32, i32
  }
  func.func @transform_6(%arg0: i32, %arg1: i32) -> (i32, i32, i32, i32) {
    %c0_i32 = arith.constant 0 : i32
    %c0_i32_0 = arith.constant 0 : i32
    %c0_i32_1 = arith.constant 0 : i32
    return %arg0, %arg1, %c0_i32, %c0_i32_0 : i32, i32, i32, i32
  }
}

</mosaic_0001>

<llo_original>
// kernel: up_forward.1
$region0: #{up_forward.1}
  #allocation0 [shape = 'u32[]', space=smem, size = 0x4, offset = 0x4, fixed_abs, tag = 'smem constant byte address 0x4 - core index']
  #allocation1 [shape = 'u32[144,128]{1,0:T(1,128)}', space=vmem, size = 0x12000, scoped, tag = 'internal scratch']
  #allocation2 [shape = 'bf16[528,8]{1,0:T(16,128)(2,1)}', space=vmem, size = 0x21000, scoped, tag = 'scratch operand']
  #allocation3 [shape = 'bf16[528,1]{1,0:T(16,128)(2,1)}', space=vmem, size = 0x21000, scoped, tag = 'scratch operand']
  #allocation4 [shape = 's32[2]{0}', space=sflag, size = 0x8, scoped, tag = 'scratch operand']
  #allocation5 [shape = 's32[]', space=sflag, size = 0x4, offset = 0, fixed_abs, tag = 'sflag constant byte address 0x0 - dummy sync flag']
  #allocation6 [shape = 's32[]', space=sflag, size = 0x4, offset = 0, fixed_abs, tag = 'sflag constant byte address 0x0 - dummy sync flag']
  %s0 = inlined_call_operand.vmem [shape: bf16[1056,8], index: 0, kind: input, shape index: {}]
  %s1 = inlined_call_operand.vmem [shape: bf16[528,1], index: 1, kind: input, shape index: {}]
  %s2 = inlined_call_operand.vmem [shape: bf16[3,24,128], index: 2, kind: input, shape index: {}]
  %s3 = inlined_call_operand.vmem [shape: f32[1,128], index: 3, kind: input, shape index: {}]
  %s4 = inlined_call_operand.vmem [shape: bf16[3,384,4], index: 4, kind: input, shape index: {}]
  %s5 = inlined_call_operand.vmem [shape: f32[1,4], index: 5, kind: input, shape index: {}]
  %s6 = inlined_call_operand.vmem [shape: bf16[2,1,384,4], index: 6, kind: output, shape index: {}]
  %s7 = sld [smem:[#allocation0]]
  $region117: #{up_forward.1} parent=0
    _
  %s9 = ssub.s32 1, %s7
  %s10 = scalar_select 0, %s9, %s7
  loop: start=0, step=1, limit=4
  $region2: #{up_forward.1} parent=0 // loop_pre_header
    _
  $region3: #{up_forward.1} parent=0 // loop_header
    %s12 = sphi 0, %s16
    %p13 = scmp.ge.s32.totalorder %s12, 4
    %s19 = sphi 0, %s31
    %s20 = sphi 0, %s27
    %s21 = sphi 0, %s19
    %s22 = sphi 0, %s20
    %s23 = sphi 0, %s21
    %s24 = sphi 0, %s22
    %s32 = sphi 0, %s32
    %s34 = sphi 0, %s32
    %s35 = sphi 0, %s34
    %s49 = sphi 0, %s35
    %s53 = sphi 0, %s53
    %s55 = sphi 0, %s53
    %s56 = sphi 0, %s55
    %s70 = sphi 0, %s56
    %s74 = sphi 0, %s74
    %s76 = sphi 0, %s74
    %s77 = sphi 0, %s76
    %s91 = sphi 0, %s77
    %s95 = sphi 0, %s95
    %s97 = sphi 0, %s95
    %s98 = sphi 0, %s97
    %s112 = sphi 0, %s98
    %s120 = sphi 0, %s122
    %s123 = sphi 0, %s120
    %s124 = sphi 0, %s123
    %s140 = sphi 0, %s124
  $region4: #{up_forward.1} parent=0 // loop_header_branch
    %15 = sbr.rel (%p13) target = $region8
  $region5: #{up_forward.1} parent=0 // loop_body
    %s17 = ssub.s32 %s12, 1
    %s18 = ssub.s32 %s12, 2
    %s25 = sadd.s32 1, %s20
    %p26 = scmp.ge.s32.totalorder %s25, 1
    %s27 = scalar_select %p26, 0, %s25
    %s28 = sadd.s32 1, %s19
    %s29 = scalar_select %p26, %s28, %s19
    %p30 = scmp.ge.s32.totalorder %s29, 2
    %s31 = scalar_select %p30, 0, %s29
    %s33 = sadd.s32 %s32, 1
    %p36 = scmp.eq.s32.totalorder %s12, 1
    %p37 = scmp.ne.s32.totalorder %s32, %s34
    %p38 = scmp.eq.s32.totalorder %s12, 0
    %p39 = por %p37, %p38
    %p40 = scmp.ne.s32.totalorder %s32, %s34
    %p41 = scmp.eq.s32.totalorder %s17, 1
    %p42 = por %p40, %p41
    %p43 = scmp.ne.s32.totalorder %s34, %s35
    %p44 = scmp.eq.s32.totalorder %s17, 0
    %p45 = por %p43, %p44
    %p46 = scmp.ne.s32.totalorder %s34, %s35
    %p47 = scmp.eq.s32.totalorder %s18, 1
    %p48 = por %p46, %p47
    %p50 = scmp.ne.s32.totalorder %s35, %s49
    %p51 = scmp.eq.s32.totalorder %s18, 0
    %p52 = por %p50, %p51
    %s54 = sadd.s32 %s53, 1
    %p57 = scmp.eq.s32.totalorder %s12, 1
    %p58 = scmp.ne.s32.totalorder %s53, %s55
    %p59 = scmp.eq.s32.totalorder %s12, 0
    %p60 = por %p58, %p59
    %p61 = scmp.ne.s32.totalorder %s53, %s55
    %p62 = scmp.eq.s32.totalorder %s17, 1
    %p63 = por %p61, %p62
    %p64 = scmp.ne.s32.totalorder %s55, %s56
    %p65 = scmp.eq.s32.totalorder %s17, 0
    %p66 = por %p64, %p65
    %p67 = scmp.ne.s32.totalorder %s55, %s56
    %p68 = scmp.eq.s32.totalorder %s18, 1
    %p69 = por %p67, %p68
    %p71 = scmp.ne.s32.totalorder %s56, %s70
    %p72 = scmp.eq.s32.totalorder %s18, 0
    %p73 = por %p71, %p72
    %s75 = sadd.s32 %s74, 1
    %p78 = scmp.eq.s32.totalorder %s12, 1
    %p79 = scmp.ne.s32.totalorder %s74, %s76
    %p80 = scmp.eq.s32.totalorder %s12, 0
    %p81 = por %p79, %p80
    %p82 = scmp.ne.s32.totalorder %s74, %s76
    %p83 = scmp.eq.s32.totalorder %s17, 1
    %p84 = por %p82, %p83
    %p85 = scmp.ne.s32.totalorder %s76, %s77
    %p86 = scmp.eq.s32.totalorder %s17, 0
    %p87 = por %p85, %p86
    %p88 = scmp.ne.s32.totalorder %s76, %s77
    %p89 = scmp.eq.s32.totalorder %s18, 1
    %p90 = por %p88, %p89
    %p92 = scmp.ne.s32.totalorder %s77, %s91
    %p93 = scmp.eq.s32.totalorder %s18, 0
    %p94 = por %p92, %p93
    %s96 = sadd.s32 %s95, 1
    %p99 = scmp.eq.s32.totalorder %s12, 1
    %p100 = scmp.ne.s32.totalorder %s95, %s97
    %p101 = scmp.eq.s32.totalorder %s12, 0
    %p102 = por %p100, %p101
    %p103 = scmp.ne.s32.totalorder %s95, %s97
    %p104 = scmp.eq.s32.totalorder %s17, 1
    %p105 = por %p103, %p104
    %p106 = scmp.ne.s32.totalorder %s97, %s98
    %p107 = scmp.eq.s32.totalorder %s17, 0
    %p108 = por %p106, %p107
    %p109 = scmp.ne.s32.totalorder %s97, %s98
    %p110 = scmp.eq.s32.totalorder %s18, 1
    %p111 = por %p109, %p110
    %p113 = scmp.ne.s32.totalorder %s98, %s112
    %p114 = scmp.eq.s32.totalorder %s18, 0
    %p115 = por %p113, %p114
    %s116 = ssub.s32 %s19, %s31
    %s117 = ssub.s32 %s20, %s27
    %s118 = sor.u32 %s116, %s117
    %p119 = scmp.eq.s32.totalorder %s118, 0
    %s121 = sadd.s32 %s120, 1
    %s122 = scalar_select %p119, %s120, %s121
    %p125 = pneg %p119
    %p126 = scmp.eq.s32.totalorder %s12, 1
    %p127 = por %p125, %p126
    %p128 = scmp.ne.s32.totalorder %s120, %s123
    %p129 = scmp.eq.s32.totalorder %s12, 0
    %p130 = por %p128, %p129
    %p131 = scmp.ne.s32.totalorder %s120, %s123
    %p132 = scmp.eq.s32.totalorder %s17, 1
    %p133 = por %p131, %p132
    %p134 = scmp.ne.s32.totalorder %s123, %s124
    %p135 = scmp.eq.s32.totalorder %s17, 0
    %p136 = por %p134, %p135
    %p137 = scmp.ne.s32.totalorder %s123, %s124
    %p138 = scmp.eq.s32.totalorder %s18, 1
    %p139 = por %p137, %p138
    %p141 = scmp.ne.s32.totalorder %s124, %s140
    %p142 = scmp.eq.s32.totalorder %s18, 0
    %p143 = por %p141, %p142
    %p144 = scmp.le.s32.totalorder 1, %s12
    %p145 = scmp.lt.s32.totalorder %s12, 3
    %p146 = pnand %p144, %p145
    %p147 = pneg %p146
    // Predicated region
    $region9: #{up_forward.1} parent=5 // pred_check
      _
    $region10: #{up_forward.1} parent=5 // pred_check_branch
      %149 = sbr.rel (%p146) target = $region12
    $region11: #{up_forward.1} parent=5 // pred_region
      %s150 = ssub.s32 %s12, 1
      // Predicated region
      $region13: #{up_forward.1} parent=11 // pred_check
        %p151 = pneg %p45
      $region14: #{up_forward.1} parent=11 // pred_check_branch
        %153 = sbr.rel (%p151) target = $region16
      $region15: #{up_forward.1} parent=11 // pred_region
        _
      $region16: #{up_forward.1} parent=11 // pred_fallthru
        _
      // Predicated region
      $region17: #{up_forward.1} parent=11 // pred_check
        %p154 = pneg %p66
      $region18: #{up_forward.1} parent=11 // pred_check_branch
        %156 = sbr.rel (%p154) target = $region20
      $region19: #{up_forward.1} parent=11 // pred_region
        _
      $region20: #{up_forward.1} parent=11 // pred_fallthru
        _
      // Predicated region
      $region21: #{up_forward.1} parent=11 // pred_check
        %p157 = pneg %p87
      $region22: #{up_forward.1} parent=11 // pred_check_branch
        %159 = sbr.rel (%p157) target = $region24
      $region23: #{up_forward.1} parent=11 // pred_region
        _
      $region24: #{up_forward.1} parent=11 // pred_fallthru
        _
      // Predicated region
      $region25: #{up_forward.1} parent=11 // pred_check
        %p160 = pneg %p108
      $region26: #{up_forward.1} parent=11 // pred_check_branch
        %162 = sbr.rel (%p160) target = $region28
      $region27: #{up_forward.1} parent=11 // pred_region
        _
      $region28: #{up_forward.1} parent=11 // pred_fallthru
        _
    $region12: #{up_forward.1} parent=5 // pred_fallthru
      _
    %p163 = scmp.lt.s32.totalorder %s12, 2
    // Predicated region
    $region29: #{up_forward.1} parent=5 // pred_check
      %p164 = pneg %p163
    $region30: #{up_forward.1} parent=5 // pred_check_branch
      %166 = sbr.rel (%p164) target = $region32
    $region31: #{up_forward.1} parent=5 // pred_region
      _
    $region32: #{up_forward.1} parent=5 // pred_fallthru
      _
    %p167 = scmp.le.s32.totalorder 1, %s12
    %p168 = scmp.lt.s32.totalorder %s12, 3
    %p169 = pnand %p167, %p168
    %p170 = pneg %p169
    // Predicated region
    $region33: #{up_forward.1} parent=5 // pred_check
      _
    $region34: #{up_forward.1} parent=5 // pred_check_branch
      %172 = sbr.rel (%p169) target = $region36
    $region35: #{up_forward.1} parent=5 // pred_region
      %s173 = ssub.s32 %s12, 1
      %p174 = pneg %p45
      %p175 = pneg %p42
      %p176 = pneg %p66
      %p177 = pneg %p63
      %p178 = pneg %p87
      %p179 = pneg %p84
      %p180 = pneg %p108
      %p181 = pneg %p105
      %p182 = pneg %p136
      %p183 = pneg %p133
      %p184 = scmp.lt.s32.totalorder %s21, 1
      %s185 = scalar_select %p184, %s21, 1
      %p186 = scmp.lt.s32.totalorder %s22, 0
      %s187 = scalar_select %p186, %s22, 0
      %s188 = smul.addr %s187, 48
      %s189 = smul.addr %s185, 48
      %s190 = sadd.s32 %s188, %s189
      %s191 = smul.addr %s190, 4
      %s192 = scalar_lea.vmem %s6, %s191
      %p193 = scmp.lt.s32.totalorder %s21, 1
      %s194 = scalar_select %p193, %s21, 1
      %p195 = scmp.lt.s32.totalorder %s22, 0
      %s196 = scalar_select %p195, %s22, 0
      %s197 = smul.addr %s196, 48
      %s198 = smul.addr %s194, 48
      %s199 = sadd.s32 %s197, %s198
      %s200 = smul.addr %s199, 4
      %s201 = scalar_lea.vmem %s6, %s200
      %s203 = smul.u32 %s21, 528
      %s204 = smul.u32 %s22, 384
      %s205 = sadd.s32 %s203, %s204
      %s206 = sshra.s32 %s205, 3
      %s207 = sand.u32 %s205, 7
      %s208 = smul.addr %s206, 4
      %s209 = scalar_lea.vmem %s0, %s208
      %p211 = scmp.lt.u32.totalorder 264, 8
      %p212 = pneg %p211
      // Predicated region
      $region37: #{up_forward.1} parent=35 // pred_check
        _
      $region38: #{up_forward.1} parent=35 // pred_check_branch
        %214 = sbr.rel (%p211) target = $region40
      $region39: #{up_forward.1} parent=35 // pred_region
        %s229 = sand.u32 264, 7
        %p230 = scmp.eq.s32.totalorder %s229, 0
        // Predicated region
        $region52: #{up_forward.1} parent=39 // pred_check
          %p231 = pneg %p230
        $region53: #{up_forward.1} parent=39 // pred_check_branch
          %233 = sbr.rel (%p231) target = $region55
        $region54: #{up_forward.1} parent=39 // pred_region
          loop: start=0, step=1, limit=1
          $region56: #{up_forward.1} parent=54 // loop_pre_header
            _
          $region57: #{up_forward.1} parent=54 // loop_header
            %s235 = sphi 0, %s239
            %p236 = scmp.ge.s32.totalorder %s235, 1
            %s240 = sphi %s209, %s209
            %s241 = sphi [#allocation2], [#allocation2]
          $region58: #{up_forward.1} parent=54 // loop_header_branch
            %238 = sbr.rel (%p236) target = $region62
          $region59: #{up_forward.1} parent=54 // loop_body
            %v242 = vld [vmem:[%s240] sm:$0xff]
            %243 = vst [vmem:[%s241] sm:$0xff] %v242
            %v244 = vld [vmem:[%s240 + $0x8] sm:$0xff]
            %245 = vst [vmem:[%s241 + $0x8] sm:$0xff] %v244
            %v246 = vld [vmem:[%s240 + $0x10] sm:$0xff]
            %247 = vst [vmem:[%s241 + $0x10] sm:$0xff] %v246
            %v248 = vld [vmem:[%s240 + $0x18] sm:$0xff]
            %249 = vst [vmem:[%s241 + $0x18] sm:$0xff] %v248
            %v250 = vld [vmem:[%s240 + $0x20] sm:$0xff]
            %251 = vst [vmem:[%s241 + $0x20] sm:$0xff] %v250
            %v252 = vld [vmem:[%s240 + $0x28] sm:$0xff]
            %253 = vst [vmem:[%s241 + $0x28] sm:$0xff] %v252
            %v254 = vld [vmem:[%s240 + $0x30] sm:$0xff]
            %255 = vst [vmem:[%s241 + $0x30] sm:$0xff] %v254
            %v256 = vld [vmem:[%s240 + $0x38] sm:$0xff]
            %257 = vst [vmem:[%s241 + $0x38] sm:$0xff] %v256
            %v258 = vld [vmem:[%s240 + $0x40] sm:$0xff]
            %259 = vst [vmem:[%s241 + $0x40] sm:$0xff] %v258
            %v260 = vld [vmem:[%s240 + $0x48] sm:$0xff]
            %261 = vst [vmem:[%s241 + $0x48] sm:$0xff] %v260
            %v262 = vld [vmem:[%s240 + $0x50] sm:$0xff]
            %263 = vst [vmem:[%s241 + $0x50] sm:$0xff] %v262
            %v264 = vld [vmem:[%s240 + $0x58] sm:$0xff]
            %265 = vst [vmem:[%s241 + $0x58] sm:$0xff] %v264
            %v266 = vld [vmem:[%s240 + $0x60] sm:$0xff]
            %267 = vst [vmem:[%s241 + $0x60] sm:$0xff] %v266
            %v268 = vld [vmem:[%s240 + $0x68] sm:$0xff]
            %269 = vst [vmem:[%s241 + $0x68] sm:$0xff] %v268
            %v270 = vld [vmem:[%s240 + $0x70] sm:$0xff]
            %271 = vst [vmem:[%s241 + $0x70] sm:$0xff] %v270
            %v272 = vld [vmem:[%s240 + $0x78] sm:$0xff]
            %273 = vst [vmem:[%s241 + $0x78] sm:$0xff] %v272
            %v274 = vld [vmem:[%s240 + $0x80] sm:$0xff]
            %275 = vst [vmem:[%s241 + $0x80] sm:$0xff] %v274
            %v276 = vld [vmem:[%s240 + $0x88] sm:$0xff]
            %277 = vst [vmem:[%s241 + $0x88] sm:$0xff] %v276
            %v278 = vld [vmem:[%s240 + $0x90] sm:$0xff]
            %279 = vst [vmem:[%s241 + $0x90] sm:$0xff] %v278
            %v280 = vld [vmem:[%s240 + $0x98] sm:$0xff]
            %281 = vst [vmem:[%s241 + $0x98] sm:$0xff] %v280
            %v282 = vld [vmem:[%s240 + $0xa0] sm:$0xff]
            %283 = vst [vmem:[%s241 + $0xa0] sm:$0xff] %v282
            %v284 = vld [vmem:[%s240 + $0xa8] sm:$0xff]
            %285 = vst [vmem:[%s241 + $0xa8] sm:$0xff] %v284
            %v286 = vld [vmem:[%s240 + $0xb0] sm:$0xff]
            %287 = vst [vmem:[%s241 + $0xb0] sm:$0xff] %v286
            %v288 = vld [vmem:[%s240 + $0xb8] sm:$0xff]
            %289 = vst [vmem:[%s241 + $0xb8] sm:$0xff] %v288
            %v290 = vld [vmem:[%s240 + $0xc0] sm:$0xff]
            %291 = vst [vmem:[%s241 + $0xc0] sm:$0xff] %v290
            %v292 = vld [vmem:[%s240 + $0xc8] sm:$0xff]
            %293 = vst [vmem:[%s241 + $0xc8] sm:$0xff] %v292
            %v294 = vld [vmem:[%s240 + $0xd0] sm:$0xff]
            %295 = vst [vmem:[%s241 + $0xd0] sm:$0xff] %v294
            %v296 = vld [vmem:[%s240 + $0xd8] sm:$0xff]
            %297 = vst [vmem:[%s241 + $0xd8] sm:$0xff] %v296
            %v298 = vld [vmem:[%s240 + $0xe0] sm:$0xff]
            %299 = vst [vmem:[%s241 + $0xe0] sm:$0xff] %v298
            %v300 = vld [vmem:[%s240 + $0xe8] sm:$0xff]
            %301 = vst [vmem:[%s241 + $0xe8] sm:$0xff] %v300
            %v302 = vld [vmem:[%s240 + $0xf0] sm:$0xff]
            %303 = vst [vmem:[%s241 + $0xf0] sm:$0xff] %v302
            %v304 = vld [vmem:[%s240 + $0xf8] sm:$0xff]
            %305 = vst [vmem:[%s241 + $0xf8] sm:$0xff] %v304
            %v306 = vld [vmem:[%s240 + $0x100] sm:$0xff]
            %307 = vst [vmem:[%s241 + $0x100] sm:$0xff] %v306
          $region60: #{up_forward.1} parent=54 // loop_footer
            %s239 = sadd.s32 1, %s235
          $region61: #{up_forward.1} parent=54 // loop_footer_branch
            %234 = sbr.rel target = $region57
          $region62: #{up_forward.1} parent=54 // loop_exit
            _
        $region55: #{up_forward.1} parent=39 // pred_fallthru
          _
        %p308 = pneg %p230
        // Predicated region
        $region63: #{up_forward.1} parent=39 // pred_check
          _
        $region64: #{up_forward.1} parent=39 // pred_check_branch
          %310 = sbr.rel (%p230) target = $region66
        $region65: #{up_forward.1} parent=39 // pred_region
          %s311 = sand.u32 264, 7
        $region66: #{up_forward.1} parent=39 // pred_fallthru
          _
      $region40: #{up_forward.1} parent=35 // pred_fallthru
        _
      // Predicated region
      $region41: #{up_forward.1} parent=35 // pred_check
        %p215 = pneg %p211
      $region42: #{up_forward.1} parent=35 // pred_check_branch
        %217 = sbr.rel (%p215) target = $region44
      $region43: #{up_forward.1} parent=35 // pred_region
        %s218 = sshllo.u32 0, 264
        loop: start=0, step=1, limit=1
        $region45: #{up_forward.1} parent=43 // loop_pre_header
          _
        $region46: #{up_forward.1} parent=43 // loop_header
          %s220 = sphi 0, %s224
          %p221 = scmp.ge.s32.totalorder %s220, 1
          %s225 = sphi %s209, %s209
          %s226 = sphi [#allocation2], [#allocation2]
        $region47: #{up_forward.1} parent=43 // loop_header_branch
          %223 = sbr.rel (%p221) target = $region51
        $region48: #{up_forward.1} parent=43 // loop_body
          %v227 = vld [vmem:[%s225] sm:%s218]
          %228 = vst [vmem:[%s226] sm:%s218] %v227
        $region49: #{up_forward.1} parent=43 // loop_footer
          %s224 = sadd.s32 1, %s220
        $region50: #{up_forward.1} parent=43 // loop_footer_branch
          %219 = sbr.rel target = $region46
        $region51: #{up_forward.1} parent=43 // loop_exit
          _
      $region44: #{up_forward.1} parent=35 // pred_fallthru
        _
      // Predicated region
      $region67: #{up_forward.1} parent=35 // pred_check
        _
      $region68: #{up_forward.1} parent=35 // pred_check_branch
        %314 = sbr.rel (0) target = $region70
      $region69: #{up_forward.1} parent=35 // pred_region
        %315 = vsyncadd [#allocation4], 4224
      $region70: #{up_forward.1} parent=35 // pred_fallthru
        _
      %s316 = sshra.s32 %s204, 3
      %s317 = sand.u32 %s204, 7
      %s318 = smul.addr %s316, 4
      %s319 = scalar_lea.vmem %s1, %s318
      %s320 = scalar_lea.sflag [#allocation4], 1
      %p322 = scmp.lt.u32.totalorder 264, 8
      %p323 = pneg %p322
      // Predicated region
      $region71: #{up_forward.1} parent=35 // pred_check
        _
      $region72: #{up_forward.1} parent=35 // pred_check_branch
        %325 = sbr.rel (%p322) target = $region74
      $region73: #{up_forward.1} parent=35 // pred_region
        %s340 = sand.u32 264, 7
        %p341 = scmp.eq.s32.totalorder %s340, 0
        // Predicated region
        $region86: #{up_forward.1} parent=73 // pred_check
          %p342 = pneg %p341
        $region87: #{up_forward.1} parent=73 // pred_check_branch
          %344 = sbr.rel (%p342) target = $region89
        $region88: #{up_forward.1} parent=73 // pred_region
          loop: start=0, step=1, limit=1
          $region90: #{up_forward.1} parent=88 // loop_pre_header
            _
          $region91: #{up_forward.1} parent=88 // loop_header
            %s346 = sphi 0, %s350
            %p347 = scmp.ge.s32.totalorder %s346, 1
            %s351 = sphi %s319, %s319
            %s352 = sphi [#allocation3], [#allocation3]
          $region92: #{up_forward.1} parent=88 // loop_header_branch
            %349 = sbr.rel (%p347) target = $region96
          $region93: #{up_forward.1} parent=88 // loop_body
            %v353 = vld [vmem:[%s351] sm:$0xff]
            %354 = vst [vmem:[%s352] sm:$0xff] %v353
            %v355 = vld [vmem:[%s351 + $0x8] sm:$0xff]
            %356 = vst [vmem:[%s352 + $0x8] sm:$0xff] %v355
            %v357 = vld [vmem:[%s351 + $0x10] sm:$0xff]
            %358 = vst [vmem:[%s352 + $0x10] sm:$0xff] %v357
            %v359 = vld [vmem:[%s351 + $0x18] sm:$0xff]
            %360 = vst [vmem:[%s352 + $0x18] sm:$0xff] %v359
            %v361 = vld [vmem:[%s351 + $0x20] sm:$0xff]
            %362 = vst [vmem:[%s352 + $0x20] sm:$0xff] %v361
            %v363 = vld [vmem:[%s351 + $0x28] sm:$0xff]
            %364 = vst [vmem:[%s352 + $0x28] sm:$0xff] %v363
            %v365 = vld [vmem:[%s351 + $0x30] sm:$0xff]
            %366 = vst [vmem:[%s352 + $0x30] sm:$0xff] %v365
            %v367 = vld [vmem:[%s351 + $0x38] sm:$0xff]
            %368 = vst [vmem:[%s352 + $0x38] sm:$0xff] %v367
            %v369 = vld [vmem:[%s351 + $0x40] sm:$0xff]
            %370 = vst [vmem:[%s352 + $0x40] sm:$0xff] %v369
            %v371 = vld [vmem:[%s351 + $0x48] sm:$0xff]
            %372 = vst [vmem:[%s352 + $0x48] sm:$0xff] %v371
            %v373 = vld [vmem:[%s351 + $0x50] sm:$0xff]
            %374 = vst [vmem:[%s352 + $0x50] sm:$0xff] %v373
            %v375 = vld [vmem:[%s351 + $0x58] sm:$0xff]
            %376 = vst [vmem:[%s352 + $0x58] sm:$0xff] %v375
            %v377 = vld [vmem:[%s351 + $0x60] sm:$0xff]
            %378 = vst [vmem:[%s352 + $0x60] sm:$0xff] %v377
            %v379 = vld [vmem:[%s351 + $0x68] sm:$0xff]
            %380 = vst [vmem:[%s352 + $0x68] sm:$0xff] %v379
            %v381 = vld [vmem:[%s351 + $0x70] sm:$0xff]
            %382 = vst [vmem:[%s352 + $0x70] sm:$0xff] %v381
            %v383 = vld [vmem:[%s351 + $0x78] sm:$0xff]
            %384 = vst [vmem:[%s352 + $0x78] sm:$0xff] %v383
            %v385 = vld [vmem:[%s351 + $0x80] sm:$0xff]
            %386 = vst [vmem:[%s352 + $0x80] sm:$0xff] %v385
            %v387 = vld [vmem:[%s351 + $0x88] sm:$0xff]
            %388 = vst [vmem:[%s352 + $0x88] sm:$0xff] %v387
            %v389 = vld [vmem:[%s351 + $0x90] sm:$0xff]
            %390 = vst [vmem:[%s352 + $0x90] sm:$0xff] %v389
            %v391 = vld [vmem:[%s351 + $0x98] sm:$0xff]
            %392 = vst [vmem:[%s352 + $0x98] sm:$0xff] %v391
            %v393 = vld [vmem:[%s351 + $0xa0] sm:$0xff]
            %394 = vst [vmem:[%s352 + $0xa0] sm:$0xff] %v393
            %v395 = vld [vmem:[%s351 + $0xa8] sm:$0xff]
            %396 = vst [vmem:[%s352 + $0xa8] sm:$0xff] %v395
            %v397 = vld [vmem:[%s351 + $0xb0] sm:$0xff]
            %398 = vst [vmem:[%s352 + $0xb0] sm:$0xff] %v397
            %v399 = vld [vmem:[%s351 + $0xb8] sm:$0xff]
            %400 = vst [vmem:[%s352 + $0xb8] sm:$0xff] %v399
            %v401 = vld [vmem:[%s351 + $0xc0] sm:$0xff]
            %402 = vst [vmem:[%s352 + $0xc0] sm:$0xff] %v401
            %v403 = vld [vmem:[%s351 + $0xc8] sm:$0xff]
            %404 = vst [vmem:[%s352 + $0xc8] sm:$0xff] %v403
            %v405 = vld [vmem:[%s351 + $0xd0] sm:$0xff]
            %406 = vst [vmem:[%s352 + $0xd0] sm:$0xff] %v405
            %v407 = vld [vmem:[%s351 + $0xd8] sm:$0xff]
            %408 = vst [vmem:[%s352 + $0xd8] sm:$0xff] %v407
            %v409 = vld [vmem:[%s351 + $0xe0] sm:$0xff]
            %410 = vst [vmem:[%s352 + $0xe0] sm:$0xff] %v409
            %v411 = vld [vmem:[%s351 + $0xe8] sm:$0xff]
            %412 = vst [vmem:[%s352 + $0xe8] sm:$0xff] %v411
            %v413 = vld [vmem:[%s351 + $0xf0] sm:$0xff]
            %414 = vst [vmem:[%s352 + $0xf0] sm:$0xff] %v413
            %v415 = vld [vmem:[%s351 + $0xf8] sm:$0xff]
            %416 = vst [vmem:[%s352 + $0xf8] sm:$0xff] %v415
            %v417 = vld [vmem:[%s351 + $0x100] sm:$0xff]
            %418 = vst [vmem:[%s352 + $0x100] sm:$0xff] %v417
          $region94: #{up_forward.1} parent=88 // loop_footer
            %s350 = sadd.s32 1, %s346
          $region95: #{up_forward.1} parent=88 // loop_footer_branch
            %345 = sbr.rel target = $region91
          $region96: #{up_forward.1} parent=88 // loop_exit
            _
        $region89: #{up_forward.1} parent=73 // pred_fallthru
          _
        %p419 = pneg %p341
        // Predicated region
        $region97: #{up_forward.1} parent=73 // pred_check
          _
        $region98: #{up_forward.1} parent=73 // pred_check_branch
          %421 = sbr.rel (%p341) target = $region100
        $region99: #{up_forward.1} parent=73 // pred_region
          %s422 = sand.u32 264, 7
        $region100: #{up_forward.1} parent=73 // pred_fallthru
          _
      $region74: #{up_forward.1} parent=35 // pred_fallthru
        _
      // Predicated region
      $region75: #{up_forward.1} parent=35 // pred_check
        %p326 = pneg %p322
      $region76: #{up_forward.1} parent=35 // pred_check_branch
        %328 = sbr.rel (%p326) target = $region78
      $region77: #{up_forward.1} parent=35 // pred_region
        %s329 = sshllo.u32 0, 264
        loop: start=0, step=1, limit=1
        $region79: #{up_forward.1} parent=77 // loop_pre_header
          _
        $region80: #{up_forward.1} parent=77 // loop_header
          %s331 = sphi 0, %s335
          %p332 = scmp.ge.s32.totalorder %s331, 1
          %s336 = sphi %s319, %s319
          %s337 = sphi [#allocation3], [#allocation3]
        $region81: #{up_forward.1} parent=77 // loop_header_branch
          %334 = sbr.rel (%p332) target = $region85
        $region82: #{up_forward.1} parent=77 // loop_body
          %v338 = vld [vmem:[%s336] sm:%s329]
          %339 = vst [vmem:[%s337] sm:%s329] %v338
        $region83: #{up_forward.1} parent=77 // loop_footer
          %s335 = sadd.s32 1, %s331
        $region84: #{up_forward.1} parent=77 // loop_footer_branch
          %330 = sbr.rel target = $region80
        $region85: #{up_forward.1} parent=77 // loop_exit
          _
      $region78: #{up_forward.1} parent=35 // pred_fallthru
        _
      // Predicated region
      $region101: #{up_forward.1} parent=35 // pred_check
        _
      $region102: #{up_forward.1} parent=35 // pred_check_branch
        %425 = sbr.rel (0) target = $region104
      $region103: #{up_forward.1} parent=35 // pred_region
        %426 = vsyncadd %s320, 4224
      $region104: #{up_forward.1} parent=35 // pred_fallthru
        _
      %s427 = smul.u32 4, 66
      %s428 = smul.u32 %s427, 1
      %s429 = sshll.u32 %s428, 4
      %430 = dma.done [#allocation4], %s429
      %s431 = sshll.u32 %s428, 4
      %432 = dma.done %s320, %s431
      %v433 = vld [vmem:[#allocation2] sm:$0x80]
      %v434 = vld [vmem:[#allocation2 + $0x8] sm:$0xff]
      %v435 = vld [vmem:[#allocation2 + $0x10] sm:$0xff]
      %v436 = vld [vmem:[#allocation2 + $0x18] sm:$0xff]
      %v437 = vld [vmem:[#allocation2 + $0x20] sm:$0xff]
      %v438 = vld [vmem:[#allocation2 + $0x28] sm:$0xff]
      %v439 = vld [vmem:[#allocation2 + $0x30] sm:$0xff]
      %v440 = vld [vmem:[#allocation2 + $0x38] sm:$0xff]
      %v441 = vld [vmem:[#allocation2 + $0x40] sm:$0xff]
      %v442 = vld [vmem:[#allocation2 + $0x48] sm:$0xff]
      %v443 = vld [vmem:[#allocation2 + $0x50] sm:$0xff]
      %v444 = vld [vmem:[#allocation2 + $0x58] sm:$0xff]
      %v445 = vld [vmem:[#allocation2 + $0x60] sm:$0xff]
      %v446 = vld [vmem:[#allocation2 + $0x68] sm:$0xff]
      %v447 = vld [vmem:[#allocation2 + $0x70] sm:$0xff]
      %v448 = vld [vmem:[#allocation2 + $0x78] sm:$0xff]
      %v449 = vld [vmem:[#allocation2 + $0x80] sm:$0xff]
      %v450 = vld [vmem:[#allocation2 + $0x88] sm:$0xff]
      %v451 = vld [vmem:[#allocation2 + $0x90] sm:$0xff]
      %v452 = vld [vmem:[#allocation2 + $0x98] sm:$0xff]
      %v453 = vld [vmem:[#allocation2 + $0xa0] sm:$0xff]
      %v454 = vld [vmem:[#allocation2 + $0xa8] sm:$0xff]
      %v455 = vld [vmem:[#allocation2 + $0xb0] sm:$0xff]
      %v456 = vld [vmem:[#allocation2 + $0xb8] sm:$0xff]
      %v457 = vld [vmem:[#allocation2 + $0xc0] sm:$0xff]
      %v458 = vld [vmem:[#allocation2 + $0xc8] sm:$0xff]
      %v459 = vld [vmem:[#allocation2 + $0xd0] sm:$0xff]
      %v460 = vld [vmem:[#allocation2 + $0xd8] sm:$0xff]
      %v461 = vld [vmem:[#allocation2 + $0xe0] sm:$0xff]
      %v462 = vld [vmem:[#allocation2 + $0xe8] sm:$0xff]
      %v463 = vld [vmem:[#allocation2 + $0xf0] sm:$0xff]
      %v464 = vld [vmem:[#allocation2 + $0xf8] sm:$0xff]
      %v465 = vld [vmem:[#allocation2 + $0x100] sm:$0x1]
      %vm466 = vsmask.f32 7424
      %v468 = vshll.u32 %v434, 16
      %v470 = vrot.slane %v468, 1
      %v471 = vshrl.u32 %v434, 16
      %v473 = vor.u32 %v471, %v470
      %v475 = vshll.u32 %v435, 16
      %v477 = vrot.slane %v475, 1
      %v478 = vsel %vm466, %v473, %v477
      %v479 = vshrl.u32 %v435, 16
      %v481 = vor.u32 %v479, %v477
      %v483 = vshll.u32 %v436, 16
      %v485 = vrot.slane %v483, 1
      %v486 = vsel %vm466, %v481, %v485
      %v487 = vshrl.u32 %v436, 16
      %v489 = vor.u32 %v487, %v485
      %v491 = vshll.u32 %v437, 16
      %v493 = vrot.slane %v491, 1
      %v494 = vsel %vm466, %v489, %v493
      %v495 = vshrl.u32 %v437, 16
      %v497 = vor.u32 %v495, %v493
      %v499 = vshll.u32 %v438, 16
      %v501 = vrot.slane %v499, 1
      %v502 = vsel %vm466, %v497, %v501
      %v503 = vshrl.u32 %v438, 16
      %v505 = vor.u32 %v503, %v501
      %v507 = vshll.u32 %v439, 16
      %v509 = vrot.slane %v507, 1
      %v510 = vsel %vm466, %v505, %v509
      %v511 = vshrl.u32 %v439, 16
      %v513 = vor.u32 %v511, %v509
      %v515 = vshll.u32 %v440, 16
      %v517 = vrot.slane %v515, 1
      %v518 = vsel %vm466, %v513, %v517
      %v519 = vshrl.u32 %v440, 16
      %v521 = vor.u32 %v519, %v517
      %v523 = vshll.u32 %v441, 16
      %v525 = vrot.slane %v523, 1
      %v526 = vsel %vm466, %v521, %v525
      %v527 = vshrl.u32 %v441, 16
      %v529 = vor.u32 %v527, %v525
      %v531 = vshll.u32 %v442, 16
      %v533 = vrot.slane %v531, 1
      %v534 = vsel %vm466, %v529, %v533
      %v535 = vshrl.u32 %v442, 16
      %v537 = vor.u32 %v535, %v533
      %v539 = vshll.u32 %v443, 16
      %v541 = vrot.slane %v539, 1
      %v542 = vsel %vm466, %v537, %v541
      %v543 = vshrl.u32 %v443, 16
      %v545 = vor.u32 %v543, %v541
      %v547 = vshll.u32 %v444, 16
      %v549 = vrot.slane %v547, 1
      %v550 = vsel %vm466, %v545, %v549
      %v551 = vshrl.u32 %v444, 16
      %v553 = vor.u32 %v551, %v549
      %v555 = vshll.u32 %v445, 16
      %v557 = vrot.slane %v555, 1
      %v558 = vsel %vm466, %v553, %v557
      %v559 = vshrl.u32 %v445, 16
      %v561 = vor.u32 %v559, %v557
      %v563 = vshll.u32 %v446, 16
      %v565 = vrot.slane %v563, 1
      %v566 = vsel %vm466, %v561, %v565
      %v567 = vshrl.u32 %v446, 16
      %v569 = vor.u32 %v567, %v565
      %v571 = vshll.u32 %v447, 16
      %v573 = vrot.slane %v571, 1
      %v574 = vsel %vm466, %v569, %v573
      %v575 = vshrl.u32 %v447, 16
      %v577 = vor.u32 %v575, %v573
      %v579 = vshll.u32 %v448, 16
      %v581 = vrot.slane %v579, 1
      %v582 = vsel %vm466, %v577, %v581
      %v583 = vshrl.u32 %v448, 16
      %v585 = vor.u32 %v583, %v581
      %v587 = vshll.u32 %v449, 16
      %v589 = vrot.slane %v587, 1
      %v590 = vsel %vm466, %v585, %v589
      %v591 = vshrl.u32 %v449, 16
      %v593 = vor.u32 %v591, %v589
      %v595 = vshll.u32 %v450, 16
      %v597 = vrot.slane %v595, 1
      %v598 = vsel %vm466, %v593, %v597
      %v599 = vshrl.u32 %v450, 16
      %v601 = vor.u32 %v599, %v597
      %v603 = vshll.u32 %v451, 16
      %v605 = vrot.slane %v603, 1
      %v606 = vsel %vm466, %v601, %v605
      %v607 = vshrl.u32 %v451, 16
      %v609 = vor.u32 %v607, %v605
      %v611 = vshll.u32 %v452, 16
      %v613 = vrot.slane %v611, 1
      %v614 = vsel %vm466, %v609, %v613
      %v615 = vshrl.u32 %v452, 16
      %v617 = vor.u32 %v615, %v613
      %v619 = vshll.u32 %v453, 16
      %v621 = vrot.slane %v619, 1
      %v622 = vsel %vm466, %v617, %v621
      %v623 = vshrl.u32 %v453, 16
      %v625 = vor.u32 %v623, %v621
      %v627 = vshll.u32 %v454, 16
      %v629 = vrot.slane %v627, 1
      %v630 = vsel %vm466, %v625, %v629
      %v631 = vshrl.u32 %v454, 16
      %v633 = vor.u32 %v631, %v629
      %v635 = vshll.u32 %v455, 16
      %v637 = vrot.slane %v635, 1
      %v638 = vsel %vm466, %v633, %v637
      %v639 = vshrl.u32 %v455, 16
      %v641 = vor.u32 %v639, %v637
      %v643 = vshll.u32 %v456, 16
      %v645 = vrot.slane %v643, 1
      %v646 = vsel %vm466, %v641, %v645
      %v647 = vshrl.u32 %v456, 16
      %v649 = vor.u32 %v647, %v645
      %v651 = vshll.u32 %v457, 16
      %v653 = vrot.slane %v651, 1
      %v654 = vsel %vm466, %v649, %v653
      %v655 = vshrl.u32 %v457, 16
      %v657 = vor.u32 %v655, %v653
      %v659 = vshll.u32 %v458, 16
      %v661 = vrot.slane %v659, 1
      %v662 = vsel %vm466, %v657, %v661
      %v663 = vshrl.u32 %v458, 16
      %v665 = vor.u32 %v663, %v661
      %v667 = vshll.u32 %v459, 16
      %v669 = vrot.slane %v667, 1
      %v670 = vsel %vm466, %v665, %v669
      %v671 = vshrl.u32 %v459, 16
      %v673 = vor.u32 %v671, %v669
      %v675 = vshll.u32 %v460, 16
      %v677 = vrot.slane %v675, 1
      %v678 = vsel %vm466, %v673, %v677
      %v679 = vshrl.u32 %v460, 16
      %v681 = vor.u32 %v679, %v677
      %v683 = vshll.u32 %v461, 16
      %v685 = vrot.slane %v683, 1
      %v686 = vsel %vm466, %v681, %v685
      %v687 = vshrl.u32 %v461, 16
      %v689 = vor.u32 %v687, %v685
      %v691 = vshll.u32 %v462, 16
      %v693 = vrot.slane %v691, 1
      %v694 = vsel %vm466, %v689, %v693
      %v695 = vshrl.u32 %v462, 16
      %v697 = vor.u32 %v695, %v693
      %v699 = vshll.u32 %v463, 16
      %v701 = vrot.slane %v699, 1
      %v702 = vsel %vm466, %v697, %v701
      %v703 = vshrl.u32 %v463, 16
      %v705 = vor.u32 %v703, %v701
      %v707 = vshll.u32 %v464, 16
      %v709 = vrot.slane %v707, 1
      %v710 = vsel %vm466, %v705, %v709
      %v711 = vshrl.u32 %v464, 16
      %v713 = vor.u32 %v711, %v709
      %714 = vrot.lane.b32.xlu0 %v470, 8
      %v715 = vpop.permute.xlu0 %714
      %716 = vrot.lane.b32.xlu0 %v478, 8
      %v717 = vpop.permute.xlu0 %716
      %718 = vrot.lane.b32.xlu0 %v486, 8
      %v719 = vpop.permute.xlu0 %718
      %720 = vrot.lane.b32.xlu0 %v494, 8
      %v721 = vpop.permute.xlu0 %720
      %722 = vrot.lane.b32.xlu0 %v502, 8
      %v723 = vpop.permute.xlu0 %722
      %724 = vrot.lane.b32.xlu0 %v510, 8
      %v725 = vpop.permute.xlu0 %724
      %726 = vrot.lane.b32.xlu0 %v518, 8
      %v727 = vpop.permute.xlu0 %726
      %728 = vrot.lane.b32.xlu0 %v526, 8
      %v729 = vpop.permute.xlu0 %728
      %730 = vrot.lane.b32.xlu0 %v534, 8
      %v731 = vpop.permute.xlu0 %730
      %732 = vrot.lane.b32.xlu0 %v542, 8
      %v733 = vpop.permute.xlu0 %732
      %734 = vrot.lane.b32.xlu0 %v550, 8
      %v735 = vpop.permute.xlu0 %734
      %736 = vrot.lane.b32.xlu0 %v558, 8
      %v737 = vpop.permute.xlu0 %736
      %738 = vrot.lane.b32.xlu0 %v566, 8
      %v739 = vpop.permute.xlu0 %738
      %740 = vrot.lane.b32.xlu0 %v574, 8
      %v741 = vpop.permute.xlu0 %740
      %742 = vrot.lane.b32.xlu0 %v582, 8
      %v743 = vpop.permute.xlu0 %742
      %744 = vrot.lane.b32.xlu0 %v590, 8
      %v745 = vpop.permute.xlu0 %744
      %746 = vrot.lane.b32.xlu0 %v598, 8
      %v747 = vpop.permute.xlu0 %746
      %748 = vrot.lane.b32.xlu0 %v606, 8
      %v749 = vpop.permute.xlu0 %748
      %750 = vrot.lane.b32.xlu0 %v614, 8
      %v751 = vpop.permute.xlu0 %750
      %752 = vrot.lane.b32.xlu0 %v622, 8
      %v753 = vpop.permute.xlu0 %752
      %754 = vrot.lane.b32.xlu0 %v630, 8
      %v755 = vpop.permute.xlu0 %754
      %756 = vrot.lane.b32.xlu0 %v638, 8
      %v757 = vpop.permute.xlu0 %756
      %758 = vrot.lane.b32.xlu0 %v646, 8
      %v759 = vpop.permute.xlu0 %758
      %760 = vrot.lane.b32.xlu0 %v654, 8
      %v761 = vpop.permute.xlu0 %760
      %762 = vrot.lane.b32.xlu0 %v662, 8
      %v763 = vpop.permute.xlu0 %762
      %764 = vrot.lane.b32.xlu0 %v670, 8
      %v765 = vpop.permute.xlu0 %764
      %766 = vrot.lane.b32.xlu0 %v678, 8
      %v767 = vpop.permute.xlu0 %766
      %768 = vrot.lane.b32.xlu0 %v686, 8
      %v769 = vpop.permute.xlu0 %768
      %770 = vrot.lane.b32.xlu0 %v694, 8
      %v771 = vpop.permute.xlu0 %770
      %772 = vrot.lane.b32.xlu0 %v702, 8
      %v773 = vpop.permute.xlu0 %772
      %774 = vrot.lane.b32.xlu0 %v710, 8
      %v775 = vpop.permute.xlu0 %774
      %776 = vrot.lane.b32.xlu0 %v713, 8
      %v777 = vpop.permute.xlu0 %776
      %vm810 = vcmask 1046528
      %v811 = vrot.slane %v434, 1
      %v812 = vrot.slane %v435, 1
      %v813 = vsel %vm810, %v811, %v812
      %v814 = vrot.slane %v436, 1
      %v815 = vsel %vm810, %v812, %v814
      %v816 = vrot.slane %v437, 1
      %v817 = vsel %vm810, %v814, %v816
      %v818 = vrot.slane %v438, 1
      %v819 = vsel %vm810, %v816, %v818
      %v820 = vrot.slane %v439, 1
      %v821 = vsel %vm810, %v818, %v820
      %v822 = vrot.slane %v440, 1
      %v823 = vsel %vm810, %v820, %v822
      %v824 = vrot.slane %v441, 1
      %v825 = vsel %vm810, %v822, %v824
      %v826 = vrot.slane %v442, 1
      %v827 = vsel %vm810, %v824, %v826
      %v828 = vrot.slane %v443, 1
      %v829 = vsel %vm810, %v826, %v828
      %v830 = vrot.slane %v444, 1
      %v831 = vsel %vm810, %v828, %v830
      %v832 = vrot.slane %v445, 1
      %v833 = vsel %vm810, %v830, %v832
      %v834 = vrot.slane %v446, 1
      %v835 = vsel %vm810, %v832, %v834
      %v836 = vrot.slane %v447, 1
      %v837 = vsel %vm810, %v834, %v836
      %v838 = vrot.slane %v448, 1
      %v839 = vsel %vm810, %v836, %v838
      %v840 = vrot.slane %v449, 1
      %v841 = vsel %vm810, %v838, %v840
      %v842 = vrot.slane %v450, 1
      %v843 = vsel %vm810, %v840, %v842
      %v844 = vrot.slane %v451, 1
      %v845 = vsel %vm810, %v842, %v844
      %v846 = vrot.slane %v452, 1
      %v847 = vsel %vm810, %v844, %v846
      %v848 = vrot.slane %v453, 1
      %v849 = vsel %vm810, %v846, %v848
      %v850 = vrot.slane %v454, 1
      %v851 = vsel %vm810, %v848, %v850
      %v852 = vrot.slane %v455, 1
      %v853 = vsel %vm810, %v850, %v852
      %v854 = vrot.slane %v456, 1
      %v855 = vsel %vm810, %v852, %v854
      %v856 = vrot.slane %v457, 1
      %v857 = vsel %vm810, %v854, %v856
      %v858 = vrot.slane %v458, 1
      %v859 = vsel %vm810, %v856, %v858
      %v860 = vrot.slane %v459, 1
      %v861 = vsel %vm810, %v858, %v860
      %v862 = vrot.slane %v460, 1
      %v863 = vsel %vm810, %v860, %v862
      %v864 = vrot.slane %v461, 1
      %v865 = vsel %vm810, %v862, %v864
      %v866 = vrot.slane %v462, 1
      %v867 = vsel %vm810, %v864, %v866
      %v868 = vrot.slane %v463, 1
      %v869 = vsel %vm810, %v866, %v868
      %v870 = vrot.slane %v464, 1
      %v871 = vsel %vm810, %v868, %v870
      %v872 = vrot.slane %v465, 1
      %v873 = vsel %vm810, %v870, %v872
      %874 = vrot.lane.b32.xlu0 %v811, 16
      %v875 = vpop.permute.xlu0 %874
      %876 = vrot.lane.b32.xlu0 %v813, 16
      %v877 = vpop.permute.xlu0 %876
      %878 = vrot.lane.b32.xlu0 %v815, 16
      %v879 = vpop.permute.xlu0 %878
      %880 = vrot.lane.b32.xlu0 %v817, 16
      %v881 = vpop.permute.xlu0 %880
      %882 = vrot.lane.b32.xlu0 %v819, 16
      %v883 = vpop.permute.xlu0 %882
      %884 = vrot.lane.b32.xlu0 %v821, 16
      %v885 = vpop.permute.xlu0 %884
      %886 = vrot.lane.b32.xlu0 %v823, 16
      %v887 = vpop.permute.xlu0 %886
      %888 = vrot.lane.b32.xlu0 %v825, 16
      %v889 = vpop.permute.xlu0 %888
      %890 = vrot.lane.b32.xlu0 %v827, 16
      %v891 = vpop.permute.xlu0 %890
      %892 = vrot.lane.b32.xlu0 %v829, 16
      %v893 = vpop.permute.xlu0 %892
      %894 = vrot.lane.b32.xlu0 %v831, 16
      %v895 = vpop.permute.xlu0 %894
      %896 = vrot.lane.b32.xlu0 %v833, 16
      %v897 = vpop.permute.xlu0 %896
      %898 = vrot.lane.b32.xlu0 %v835, 16
      %v899 = vpop.permute.xlu0 %898
      %900 = vrot.lane.b32.xlu0 %v837, 16
      %v901 = vpop.permute.xlu0 %900
      %902 = vrot.lane.b32.xlu0 %v839, 16
      %v903 = vpop.permute.xlu0 %902
      %904 = vrot.lane.b32.xlu0 %v841, 16
      %v905 = vpop.permute.xlu0 %904
      %906 = vrot.lane.b32.xlu0 %v843, 16
      %v907 = vpop.permute.xlu0 %906
      %908 = vrot.lane.b32.xlu0 %v845, 16
      %v909 = vpop.permute.xlu0 %908
      %910 = vrot.lane.b32.xlu0 %v847, 16
      %v911 = vpop.permute.xlu0 %910
      %912 = vrot.lane.b32.xlu0 %v849, 16
      %v913 = vpop.permute.xlu0 %912
      %914 = vrot.lane.b32.xlu0 %v851, 16
      %v915 = vpop.permute.xlu0 %914
      %916 = vrot.lane.b32.xlu0 %v853, 16
      %v917 = vpop.permute.xlu0 %916
      %918 = vrot.lane.b32.xlu0 %v855, 16
      %v919 = vpop.permute.xlu0 %918
      %920 = vrot.lane.b32.xlu0 %v857, 16
      %v921 = vpop.permute.xlu0 %920
      %922 = vrot.lane.b32.xlu0 %v859, 16
      %v923 = vpop.permute.xlu0 %922
      %924 = vrot.lane.b32.xlu0 %v861, 16
      %v925 = vpop.permute.xlu0 %924
      %926 = vrot.lane.b32.xlu0 %v863, 16
      %v927 = vpop.permute.xlu0 %926
      %928 = vrot.lane.b32.xlu0 %v865, 16
      %v929 = vpop.permute.xlu0 %928
      %930 = vrot.lane.b32.xlu0 %v867, 16
      %v931 = vpop.permute.xlu0 %930
      %932 = vrot.lane.b32.xlu0 %v869, 16
      %v933 = vpop.permute.xlu0 %932
      %934 = vrot.lane.b32.xlu0 %v871, 16
      %v935 = vpop.permute.xlu0 %934
      %936 = vrot.lane.b32.xlu0 %v873, 16
      %v937 = vpop.permute.xlu0 %936
      %vm938 = vcmask 64512
      %v941 = vsel %vm938, %v433, %v715
      %v943 = vsel %vm938, %v434, %v717
      %v945 = vsel %vm938, %v435, %v719
      %v947 = vsel %vm938, %v436, %v721
      %v949 = vsel %vm938, %v437, %v723
      %v951 = vsel %vm938, %v438, %v725
      %v953 = vsel %vm938, %v439, %v727
      %v955 = vsel %vm938, %v440, %v729
      %v957 = vsel %vm938, %v441, %v731
      %v959 = vsel %vm938, %v442, %v733
      %v961 = vsel %vm938, %v443, %v735
      %v963 = vsel %vm938, %v444, %v737
      %v965 = vsel %vm938, %v445, %v739
      %v967 = vsel %vm938, %v446, %v741
      %v969 = vsel %vm938, %v447, %v743
      %v971 = vsel %vm938, %v448, %v745
      %v973 = vsel %vm938, %v449, %v747
      %v975 = vsel %vm938, %v450, %v749
      %v977 = vsel %vm938, %v451, %v751
      %v979 = vsel %vm938, %v452, %v753
      %v981 = vsel %vm938, %v453, %v755
      %v983 = vsel %vm938, %v454, %v757
      %v985 = vsel %vm938, %v455, %v759
      %v987 = vsel %vm938, %v456, %v761
      %v989 = vsel %vm938, %v457, %v763
      %v991 = vsel %vm938, %v458, %v765
      %v993 = vsel %vm938, %v459, %v767
      %v995 = vsel %vm938, %v460, %v769
      %v997 = vsel %vm938, %v461, %v771
      %v999 = vsel %vm938, %v462, %v773
      %v1001 = vsel %vm938, %v463, %v775
      %v1003 = vsel %vm938, %v464, %v777
      %vm1004 = vcmask 130048
      %v1006 = vsel %vm1004, %v941, %v875
      %v1008 = vsel %vm1004, %v943, %v877
      %v1010 = vsel %vm1004, %v945, %v879
      %v1012 = vsel %vm1004, %v947, %v881
      %v1014 = vsel %vm1004, %v949, %v883
      %v1016 = vsel %vm1004, %v951, %v885
      %v1018 = vsel %vm1004, %v953, %v887
      %v1020 = vsel %vm1004, %v955, %v889
      %v1022 = vsel %vm1004, %v957, %v891
      %v1024 = vsel %vm1004, %v959, %v893
      %v1026 = vsel %vm1004, %v961, %v895
      %v1028 = vsel %vm1004, %v963, %v897
      %v1030 = vsel %vm1004, %v965, %v899
      %v1032 = vsel %vm1004, %v967, %v901
      %v1034 = vsel %vm1004, %v969, %v903
      %v1036 = vsel %vm1004, %v971, %v905
      %v1038 = vsel %vm1004, %v973, %v907
      %v1040 = vsel %vm1004, %v975, %v909
      %v1042 = vsel %vm1004, %v977, %v911
      %v1044 = vsel %vm1004, %v979, %v913
      %v1046 = vsel %vm1004, %v981, %v915
      %v1048 = vsel %vm1004, %v983, %v917
      %v1050 = vsel %vm1004, %v985, %v919
      %v1052 = vsel %vm1004, %v987, %v921
      %v1054 = vsel %vm1004, %v989, %v923
      %v1056 = vsel %vm1004, %v991, %v925
      %v1058 = vsel %vm1004, %v993, %v927
      %v1060 = vsel %vm1004, %v995, %v929
      %v1062 = vsel %vm1004, %v997, %v931
      %v1064 = vsel %vm1004, %v999, %v933
      %v1066 = vsel %vm1004, %v1001, %v935
      %v1068 = vsel %vm1004, %v1003, %v937
      %v1069 = vld [vmem:[%s2] sm:$0xf]
      %v1070 = vld [vmem:[%s2 + $0x4] sm:$0xf]
      %v1071 = vld [vmem:[%s2 + $0x8] sm:$0xf]
      %s1072 = scalar_lea.vmem %s2, 12
      %v1073 = vld [vmem:[%s1072] sm:$0xf]
      %v1074 = vld [vmem:[%s1072 + $0x4] sm:$0xf]
      %v1075 = vld [vmem:[%s1072 + $0x8] sm:$0xf]
      %vm1076 = vsmask.f32 4352
      %v1077 = vshrl.u32 %v1010, 16
      %v1079 = vrot.slane %v1077, 3
      %v1080 = vshll.u32 %v1010, 16
      %v1082 = vrot.slane %v1080, 4
      %v1083 = vor.u32 %v1079, %v1082
      %v1084 = vshrl.u32 %v1012, 16
      %v1086 = vrot.slane %v1084, 3
      %v1087 = vshll.u32 %v1012, 16
      %v1089 = vrot.slane %v1087, 4
      %v1090 = vor.u32 %v1086, %v1089
      %v1091 = vsel %vm1076, %v1083, %v1090
      %v1092 = vshrl.u32 %v1014, 16
      %v1094 = vrot.slane %v1092, 3
      %v1095 = vshll.u32 %v1014, 16
      %v1097 = vrot.slane %v1095, 4
      %v1098 = vor.u32 %v1094, %v1097
      %v1099 = vsel %vm1076, %v1090, %v1098
      %v1100 = vshrl.u32 %v1016, 16
      %v1102 = vrot.slane %v1100, 3
      %v1103 = vshll.u32 %v1016, 16
      %v1105 = vrot.slane %v1103, 4
      %v1106 = vor.u32 %v1102, %v1105
      %v1107 = vsel %vm1076, %v1098, %v1106
      %v1108 = vshrl.u32 %v1018, 16
      %v1110 = vrot.slane %v1108, 3
      %v1111 = vshll.u32 %v1018, 16
      %v1113 = vrot.slane %v1111, 4
      %v1114 = vor.u32 %v1110, %v1113
      %v1115 = vsel %vm1076, %v1106, %v1114
      %v1116 = vshrl.u32 %v1020, 16
      %v1118 = vrot.slane %v1116, 3
      %v1119 = vshll.u32 %v1020, 16
      %v1121 = vrot.slane %v1119, 4
      %v1122 = vor.u32 %v1118, %v1121
      %v1123 = vsel %vm1076, %v1114, %v1122
      %v1124 = vshrl.u32 %v1022, 16
      %v1126 = vrot.slane %v1124, 3
      %v1127 = vshll.u32 %v1022, 16
      %v1129 = vrot.slane %v1127, 4
      %v1130 = vor.u32 %v1126, %v1129
      %v1131 = vsel %vm1076, %v1122, %v1130
      %v1132 = vshrl.u32 %v1024, 16
      %v1134 = vrot.slane %v1132, 3
      %v1135 = vshll.u32 %v1024, 16
      %v1137 = vrot.slane %v1135, 4
      %v1138 = vor.u32 %v1134, %v1137
      %v1139 = vsel %vm1076, %v1130, %v1138
      %v1140 = vshrl.u32 %v1026, 16
      %v1142 = vrot.slane %v1140, 3
      %v1143 = vshll.u32 %v1026, 16
      %v1145 = vrot.slane %v1143, 4
      %v1146 = vor.u32 %v1142, %v1145
      %v1147 = vsel %vm1076, %v1138, %v1146
      %v1148 = vshrl.u32 %v1028, 16
      %v1150 = vrot.slane %v1148, 3
      %v1151 = vshll.u32 %v1028, 16
      %v1153 = vrot.slane %v1151, 4
      %v1154 = vor.u32 %v1150, %v1153
      %v1155 = vsel %vm1076, %v1146, %v1154
      %v1156 = vshrl.u32 %v1030, 16
      %v1158 = vrot.slane %v1156, 3
      %v1159 = vshll.u32 %v1030, 16
      %v1161 = vrot.slane %v1159, 4
      %v1162 = vor.u32 %v1158, %v1161
      %v1163 = vsel %vm1076, %v1154, %v1162
      %v1164 = vshrl.u32 %v1032, 16
      %v1166 = vrot.slane %v1164, 3
      %v1167 = vshll.u32 %v1032, 16
      %v1169 = vrot.slane %v1167, 4
      %v1170 = vor.u32 %v1166, %v1169
      %v1171 = vsel %vm1076, %v1162, %v1170
      %v1172 = vshrl.u32 %v1034, 16
      %v1174 = vrot.slane %v1172, 3
      %v1175 = vshll.u32 %v1034, 16
      %v1177 = vrot.slane %v1175, 4
      %v1178 = vor.u32 %v1174, %v1177
      %v1179 = vsel %vm1076, %v1170, %v1178
      %v1180 = vshrl.u32 %v1036, 16
      %v1182 = vrot.slane %v1180, 3
      %v1183 = vshll.u32 %v1036, 16
      %v1185 = vrot.slane %v1183, 4
      %v1186 = vor.u32 %v1182, %v1185
      %v1187 = vsel %vm1076, %v1178, %v1186
      %v1188 = vshrl.u32 %v1038, 16
      %v1190 = vrot.slane %v1188, 3
      %v1191 = vshll.u32 %v1038, 16
      %v1193 = vrot.slane %v1191, 4
      %v1194 = vor.u32 %v1190, %v1193
      %v1195 = vsel %vm1076, %v1186, %v1194
      %v1196 = vshrl.u32 %v1040, 16
      %v1198 = vrot.slane %v1196, 3
      %v1199 = vshll.u32 %v1040, 16
      %v1201 = vrot.slane %v1199, 4
      %v1202 = vor.u32 %v1198, %v1201
      %v1203 = vsel %vm1076, %v1194, %v1202
      %v1204 = vshrl.u32 %v1042, 16
      %v1206 = vrot.slane %v1204, 3
      %v1207 = vshll.u32 %v1042, 16
      %v1209 = vrot.slane %v1207, 4
      %v1210 = vor.u32 %v1206, %v1209
      %v1211 = vsel %vm1076, %v1202, %v1210
      %v1212 = vshrl.u32 %v1044, 16
      %v1214 = vrot.slane %v1212, 3
      %v1215 = vshll.u32 %v1044, 16
      %v1217 = vrot.slane %v1215, 4
      %v1218 = vor.u32 %v1214, %v1217
      %v1219 = vsel %vm1076, %v1210, %v1218
      %v1220 = vshrl.u32 %v1046, 16
      %v1222 = vrot.slane %v1220, 3
      %v1223 = vshll.u32 %v1046, 16
      %v1225 = vrot.slane %v1223, 4
      %v1226 = vor.u32 %v1222, %v1225
      %v1227 = vsel %vm1076, %v1218, %v1226
      %v1228 = vshrl.u32 %v1048, 16
      %v1230 = vrot.slane %v1228, 3
      %v1231 = vshll.u32 %v1048, 16
      %v1233 = vrot.slane %v1231, 4
      %v1234 = vor.u32 %v1230, %v1233
      %v1235 = vsel %vm1076, %v1226, %v1234
      %v1236 = vshrl.u32 %v1050, 16
      %v1238 = vrot.slane %v1236, 3
      %v1239 = vshll.u32 %v1050, 16
      %v1241 = vrot.slane %v1239, 4
      %v1242 = vor.u32 %v1238, %v1241
      %v1243 = vsel %vm1076, %v1234, %v1242
      %v1244 = vshrl.u32 %v1052, 16
      %v1246 = vrot.slane %v1244, 3
      %v1247 = vshll.u32 %v1052, 16
      %v1249 = vrot.slane %v1247, 4
      %v1250 = vor.u32 %v1246, %v1249
      %v1251 = vsel %vm1076, %v1242, %v1250
      %v1252 = vshrl.u32 %v1054, 16
      %v1254 = vrot.slane %v1252, 3
      %v1255 = vshll.u32 %v1054, 16
      %v1257 = vrot.slane %v1255, 4
      %v1258 = vor.u32 %v1254, %v1257
      %v1259 = vsel %vm1076, %v1250, %v1258
      %v1260 = vshrl.u32 %v1056, 16
      %v1262 = vrot.slane %v1260, 3
      %v1263 = vshll.u32 %v1056, 16
      %v1265 = vrot.slane %v1263, 4
      %v1266 = vor.u32 %v1262, %v1265
      %v1267 = vsel %vm1076, %v1258, %v1266
      %v1268 = vshrl.u32 %v1058, 16
      %v1270 = vrot.slane %v1268, 3
      %v1271 = vshll.u32 %v1058, 16
      %v1273 = vrot.slane %v1271, 4
      %v1274 = vor.u32 %v1270, %v1273
      %v1275 = vsel %vm1076, %v1266, %v1274
      %v1276 = vshrl.u32 %v1060, 16
      %v1278 = vrot.slane %v1276, 3
      %v1279 = vshll.u32 %v1060, 16
      %v1281 = vrot.slane %v1279, 4
      %v1282 = vor.u32 %v1278, %v1281
      %v1283 = vsel %vm1076, %v1274, %v1282
      %v1284 = vshrl.u32 %v1062, 16
      %v1286 = vrot.slane %v1284, 3
      %v1287 = vshll.u32 %v1062, 16
      %v1289 = vrot.slane %v1287, 4
      %v1290 = vor.u32 %v1286, %v1289
      %v1291 = vsel %vm1076, %v1282, %v1290
      %v1292 = vshrl.u32 %v1064, 16
      %v1294 = vrot.slane %v1292, 3
      %v1295 = vshll.u32 %v1064, 16
      %v1297 = vrot.slane %v1295, 4
      %v1298 = vor.u32 %v1294, %v1297
      %v1299 = vsel %vm1076, %v1290, %v1298
      %v1300 = vshrl.u32 %v1066, 16
      %v1302 = vrot.slane %v1300, 3
      %v1303 = vshll.u32 %v1066, 16
      %v1305 = vrot.slane %v1303, 4
      %v1306 = vor.u32 %v1302, %v1305
      %v1307 = vsel %vm1076, %v1298, %v1306
      %v1311 = vunpack.c.l.b16 %v1073
      %v1312 = vunpack.c.l.b16 %v1074
      %v1313 = vunpack.c.l.b16 %v1075
      %v1314 = vpack.c.b16 %v1312, %v1311
      %v1315 = vpack.c.b16 %v1313, %v1313
      %vm1317 = vcmask 195584
      %v1319 = vsel %vm1317, %v1091, 0
      %v1322 = vsel %vm1317, %v1099, 0
      %v1325 = vsel %vm1317, %v1107, 0
      %v1328 = vsel %vm1317, %v1115, 0
      %v1331 = vsel %vm1317, %v1123, 0
      %v1334 = vsel %vm1317, %v1131, 0
      %v1337 = vsel %vm1317, %v1139, 0
      %v1340 = vsel %vm1317, %v1147, 0
      %v1343 = vsel %vm1317, %v1155, 0
      %v1346 = vsel %vm1317, %v1163, 0
      %v1349 = vsel %vm1317, %v1171, 0
      %v1352 = vsel %vm1317, %v1179, 0
      %v1355 = vsel %vm1317, %v1187, 0
      %v1358 = vsel %vm1317, %v1195, 0
      %v1361 = vsel %vm1317, %v1203, 0
      %v1364 = vsel %vm1317, %v1211, 0
      %v1367 = vsel %vm1317, %v1219, 0
      %v1370 = vsel %vm1317, %v1227, 0
      %v1373 = vsel %vm1317, %v1235, 0
      %v1376 = vsel %vm1317, %v1243, 0
      %v1379 = vsel %vm1317, %v1251, 0
      %v1382 = vsel %vm1317, %v1259, 0
      %v1385 = vsel %vm1317, %v1267, 0
      %v1388 = vsel %vm1317, %v1275, 0
      %v1391 = vsel %vm1317, %v1283, 0
      %v1394 = vsel %vm1317, %v1291, 0
      %v1397 = vsel %vm1317, %v1299, 0
      %v1400 = vsel %vm1317, %v1307, 0
      %vm1402 = vcmask 1043456
      %v1404 = vsel %vm1402, %v1315, 0
      %1406 = vmatprep.subr.bf16.mxu0 0
      %1407 = vmatpush1.bf16.msra.mxu0 %v1314
      %1408 = vmatprep.subr.bf16.mxu0 0
      %1409 = vmatpush1.bf16.msra.mxu0 %v1404
      %1410 = vmatprep.subr.bf16.mxu0 0
      %1411 = vmatpush1.bf16.msra.mxu0 0
      %1412 = vmatprep.subr.bf16.mxu0 0
      %1413 = vmatpush1.bf16.msra.mxu0 0
      %1414 = vmatprep.subr.bf16.mxu0 0
      %1415 = vmatpush1.bf16.msra.mxu0 0
      %1416 = vmatprep.subr.bf16.mxu0 0
      %1417 = vmatpush1.bf16.msra.mxu0 0
      %1418 = vmatprep.subr.bf16.mxu0 0
      %1419 = vmatpush1.bf16.msra.mxu0 0
      %1420 = vmatprep.subr.bf16.mxu0 0
      %1421 = vmatpush1.bf16.msra.mxu0 0
      %1422 = vmatprep.subr.bf16.mxu0 0
      %1423 = vmatpush1.bf16.msra.mxu0 0
      %1424 = vmatprep.subr.bf16.mxu0 0
      %1425 = vmatpush1.bf16.msra.mxu0 0
      %1426 = vmatprep.subr.bf16.mxu0 0
      %1427 = vmatpush1.bf16.msra.mxu0 0
      %1428 = vmatprep.subr.bf16.mxu0 0
      %1429 = vmatpush1.bf16.msra.mxu0 0
      %1430 = vmatprep.subr.bf16.mxu0 0
      %1431 = vmatpush1.bf16.msra.mxu0 0
      %1432 = vmatprep.subr.bf16.mxu0 0
      %1433 = vmatpush1.bf16.msra.mxu0 0
      %1434 = vmatprep.subr.bf16.mxu0 0
      %1435 = vmatpush1.bf16.msra.mxu0 0
      %1436 = vmatprep.subr.bf16.mxu0 0
      %1437 = vmatpush1.bf16.msra.mxu0 0
      %1438 = vmatprep.mubr.bf16.mxu0 0
      %1439 = vmatmul.mubr.bf16.gmra.mrb[0].mxu0 %v1319
      %v1440 = vpop.f32.mrb[0].mxu0
      %v1441 = vadd.f32 0.0, %v1440
      %v1442 = vpop.f32.mrb[0].mxu0
      %v1443 = vpop.f32.mrb[0].mxu0
      %v1444 = vadd.f32 0.0, %v1443
      %v1445 = vpop.f32.mrb[0].mxu0
      %1446 = vmatprep.mubr.bf16.mxu0 0
      %1447 = vmatmul.mubr.bf16.gmra.mrb[0].mxu0 %v1322
      %v1448 = vpop.f32.mrb[0].mxu0
      %v1449 = vadd.f32 0.0, %v1448
      %v1450 = vpop.f32.mrb[0].mxu0
      %v1451 = vpop.f32.mrb[0].mxu0
      %v1452 = vadd.f32 0.0, %v1451
      %v1453 = vpop.f32.mrb[0].mxu0
      %1454 = vmatprep.mubr.bf16.mxu0 0
      %1455 = vmatmul.mubr.bf16.gmra.mrb[0].mxu0 %v1325
      %v1456 = vpop.f32.mrb[0].mxu0
      %v1457 = vadd.f32 0.0, %v1456
      %v1458 = vpop.f32.mrb[0].mxu0
      %v1459 = vpop.f32.mrb[0].mxu0
      %v1460 = vadd.f32 0.0, %v1459
      %v1461 = vpop.f32.mrb[0].mxu0
      %1462 = vmatprep.mubr.bf16.mxu0 0
      %1463 = vmatmul.mubr.bf16.gmra.mrb[0].mxu0 %v1328
      %v1464 = vpop.f32.mrb[0].mxu0
      %v1465 = vadd.f32 0.0, %v1464
      %v1466 = vpop.f32.mrb[0].mxu0
      %v1467 = vpop.f32.mrb[0].mxu0
      %v1468 = vadd.f32 0.0, %v1467
      %v1469 = vpop.f32.mrb[0].mxu0
      %1470 = vmatprep.mubr.bf16.mxu0 0
      %1471 = vmatmul.mubr.bf16.gmra.mrb[0].mxu0 %v1331
      %v1472 = vpop.f32.mrb[0].mxu0
      %v1473 = vadd.f32 0.0, %v1472
      %v1474 = vpop.f32.mrb[0].mxu0
      %v1475 = vpop.f32.mrb[0].mxu0
      %v1476 = vadd.f32 0.0, %v1475
      %v1477 = vpop.f32.mrb[0].mxu0
      %1478 = vmatprep.mubr.bf16.mxu0 0
      %1479 = vmatmul.mubr.bf16.gmra.mrb[0].mxu0 %v1334
      %v1480 = vpop.f32.mrb[0].mxu0
      %v1481 = vadd.f32 0.0, %v1480
      %v1482 = vpop.f32.mrb[0].mxu0
      %v1483 = vpop.f32.mrb[0].mxu0
      %v1484 = vadd.f32 0.0, %v1483
      %v1485 = vpop.f32.mrb[0].mxu0
      %1486 = vmatprep.mubr.bf16.mxu0 0
      %1487 = vmatmul.mubr.bf16.gmra.mrb[0].mxu0 %v1337
      %v1488 = vpop.f32.mrb[0].mxu0
      %v1489 = vadd.f32 0.0, %v1488
      %v1490 = vpop.f32.mrb[0].mxu0
      %v1491 = vpop.f32.mrb[0].mxu0
      %v1492 = vadd.f32 0.0, %v1491
      %v1493 = vpop.f32.mrb[0].mxu0
      %1494 = vmatprep.mubr.bf16.mxu0 0
      %1495 = vmatmul.mubr.bf16.gmra.mrb[0].mxu0 %v1340
      %v1496 = vpop.f32.mrb[0].mxu0
      %v1497 = vadd.f32 0.0, %v1496
      %v1498 = vpop.f32.mrb[0].mxu0
      %v1499 = vpop.f32.mrb[0].mxu0
      %v1500 = vadd.f32 0.0, %v1499
      %v1501 = vpop.f32.mrb[0].mxu0
      %1502 = vmatprep.mubr.bf16.mxu0 0
      %1503 = vmatmul.mubr.bf16.gmra.mrb[0].mxu0 %v1343
      %v1504 = vpop.f32.mrb[0].mxu0
      %v1505 = vadd.f32 0.0, %v1504
      %v1506 = vpop.f32.mrb[0].mxu0
      %v1507 = vpop.f32.mrb[0].mxu0
      %v1508 = vadd.f32 0.0, %v1507
      %v1509 = vpop.f32.mrb[0].mxu0
      %1510 = vmatprep.mubr.bf16.mxu0 0
      %1511 = vmatmul.mubr.bf16.gmra.mrb[0].mxu0 %v1346
      %v1512 = vpop.f32.mrb[0].mxu0
      %v1513 = vadd.f32 0.0, %v1512
      %v1514 = vpop.f32.mrb[0].mxu0
      %v1515 = vpop.f32.mrb[0].mxu0
      %v1516 = vadd.f32 0.0, %v1515
      %v1517 = vpop.f32.mrb[0].mxu0
      %1518 = vmatprep.mubr.bf16.mxu0 0
      %1519 = vmatmul.mubr.bf16.gmra.mrb[0].mxu0 %v1349
      %v1520 = vpop.f32.mrb[0].mxu0
      %v1521 = vadd.f32 0.0, %v1520
      %v1522 = vpop.f32.mrb[0].mxu0
      %v1523 = vpop.f32.mrb[0].mxu0
      %v1524 = vadd.f32 0.0, %v1523
      %v1525 = vpop.f32.mrb[0].mxu0
      %1526 = vmatprep.mubr.bf16.mxu0 0
      %1527 = vmatmul.mubr.bf16.gmra.mrb[0].mxu0 %v1352
      %v1528 = vpop.f32.mrb[0].mxu0
      %v1529 = vadd.f32 0.0, %v1528
      %v1530 = vpop.f32.mrb[0].mxu0
      %v1531 = vpop.f32.mrb[0].mxu0
      %v1532 = vadd.f32 0.0, %v1531
      %v1533 = vpop.f32.mrb[0].mxu0
      %1534 = vmatprep.mubr.bf16.mxu0 0
      %1535 = vmatmul.mubr.bf16.gmra.mrb[0].mxu0 %v1355
      %v1536 = vpop.f32.mrb[0].mxu0
      %v1537 = vadd.f32 0.0, %v1536
      %v1538 = vpop.f32.mrb[0].mxu0
      %v1539 = vpop.f32.mrb[0].mxu0
      %v1540 = vadd.f32 0.0, %v1539
      %v1541 = vpop.f32.mrb[0].mxu0
      %1542 = vmatprep.mubr.bf16.mxu0 0
      %1543 = vmatmul.mubr.bf16.gmra.mrb[0].mxu0 %v1358
      %v1544 = vpop.f32.mrb[0].mxu0
      %v1545 = vadd.f32 0.0, %v1544
      %v1546 = vpop.f32.mrb[0].mxu0
      %v1547 = vpop.f32.mrb[0].mxu0
      %v1548 = vadd.f32 0.0, %v1547
      %v1549 = vpop.f32.mrb[0].mxu0
      %1550 = vmatprep.mubr.bf16.mxu0 0
      %1551 = vmatmul.mubr.bf16.gmra.mrb[0].mxu0 %v1361
      %v1552 = vpop.f32.mrb[0].mxu0
      %v1553 = vadd.f32 0.0, %v1552
      %v1554 = vpop.f32.mrb[0].mxu0
      %v1555 = vpop.f32.mrb[0].mxu0
      %v1556 = vadd.f32 0.0, %v1555
      %v1557 = vpop.f32.mrb[0].mxu0
      %1558 = vmatprep.mubr.bf16.mxu0 0
      %1559 = vmatmul.mubr.bf16.gmra.mrb[0].mxu0 %v1364
      %v1560 = vpop.f32.mrb[0].mxu0
      %v1561 = vadd.f32 0.0, %v1560
      %v1562 = vpop.f32.mrb[0].mxu0
      %v1563 = vpop.f32.mrb[0].mxu0
      %v1564 = vadd.f32 0.0, %v1563
      %v1565 = vpop.f32.mrb[0].mxu0
      %1566 = vmatprep.mubr.bf16.mxu0 0
      %1567 = vmatmul.mubr.bf16.gmra.mrb[0].mxu0 %v1367
      %v1568 = vpop.f32.mrb[0].mxu0
      %v1569 = vadd.f32 0.0, %v1568
      %v1570 = vpop.f32.mrb[0].mxu0
      %v1571 = vpop.f32.mrb[0].mxu0
      %v1572 = vadd.f32 0.0, %v1571
      %v1573 = vpop.f32.mrb[0].mxu0
      %1574 = vmatprep.mubr.bf16.mxu0 0
      %1575 = vmatmul.mubr.bf16.gmra.mrb[0].mxu0 %v1370
      %v1576 = vpop.f32.mrb[0].mxu0
      %v1577 = vadd.f32 0.0, %v1576
      %v1578 = vpop.f32.mrb[0].mxu0
      %v1579 = vpop.f32.mrb[0].mxu0
      %v1580 = vadd.f32 0.0, %v1579
      %v1581 = vpop.f32.mrb[0].mxu0
      %1582 = vmatprep.mubr.bf16.mxu0 0
      %1583 = vmatmul.mubr.bf16.gmra.mrb[0].mxu0 %v1373
      %v1584 = vpop.f32.mrb[0].mxu0
      %v1585 = vadd.f32 0.0, %v1584
      %v1586 = vpop.f32.mrb[0].mxu0
      %v1587 = vpop.f32.mrb[0].mxu0
      %v1588 = vadd.f32 0.0, %v1587
      %v1589 = vpop.f32.mrb[0].mxu0
      %1590 = vmatprep.mubr.bf16.mxu0 0
      %1591 = vmatmul.mubr.bf16.gmra.mrb[0].mxu0 %v1376
      %v1592 = vpop.f32.mrb[0].mxu0
      %v1593 = vadd.f32 0.0, %v1592
      %v1594 = vpop.f32.mrb[0].mxu0
      %v1595 = vpop.f32.mrb[0].mxu0
      %v1596 = vadd.f32 0.0, %v1595
      %v1597 = vpop.f32.mrb[0].mxu0
      %1598 = vmatprep.mubr.bf16.mxu0 0
      %1599 = vmatmul.mubr.bf16.gmra.mrb[0].mxu0 %v1379
      %v1600 = vpop.f32.mrb[0].mxu0
      %v1601 = vadd.f32 0.0, %v1600
      %v1602 = vpop.f32.mrb[0].mxu0
      %v1603 = vpop.f32.mrb[0].mxu0
      %v1604 = vadd.f32 0.0, %v1603
      %v1605 = vpop.f32.mrb[0].mxu0
      %1606 = vmatprep.mubr.bf16.mxu0 0
      %1607 = vmatmul.mubr.bf16.gmra.mrb[0].mxu0 %v1382
      %v1608 = vpop.f32.mrb[0].mxu0
      %v1609 = vadd.f32 0.0, %v1608
      %v1610 = vpop.f32.mrb[0].mxu0
      %v1611 = vpop.f32.mrb[0].mxu0
      %v1612 = vadd.f32 0.0, %v1611
      %v1613 = vpop.f32.mrb[0].mxu0
      %1614 = vmatprep.mubr.bf16.mxu0 0
      %1615 = vmatmul.mubr.bf16.gmra.mrb[0].mxu0 %v1385
      %v1616 = vpop.f32.mrb[0].mxu0
      %v1617 = vadd.f32 0.0, %v1616
      %v1618 = vpop.f32.mrb[0].mxu0
      %v1619 = vpop.f32.mrb[0].mxu0
      %v1620 = vadd.f32 0.0, %v1619
      %v1621 = vpop.f32.mrb[0].mxu0
      %1622 = vmatprep.mubr.bf16.mxu0 0
      %1623 = vmatmul.mubr.bf16.gmra.mrb[0].mxu0 %v1388
      %v1624 = vpop.f32.mrb[0].mxu0
      %v1625 = vadd.f32 0.0, %v1624
      %v1626 = vpop.f32.mrb[0].mxu0
      %v1627 = vpop.f32.mrb[0].mxu0
      %v1628 = vadd.f32 0.0, %v1627
      %v1629 = vpop.f32.mrb[0].mxu0
      %1630 = vmatprep.mubr.bf16.mxu0 0
      %1631 = vmatmul.mubr.bf16.gmra.mrb[0].mxu0 %v1391
      %v1632 = vpop.f32.mrb[0].mxu0
      %v1633 = vadd.f32 0.0, %v1632
      %v1634 = vpop.f32.mrb[0].mxu0
      %v1635 = vpop.f32.mrb[0].mxu0
      %v1636 = vadd.f32 0.0, %v1635
      %v1637 = vpop.f32.mrb[0].mxu0
      %1638 = vmatprep.mubr.bf16.mxu0 0
      %1639 = vmatmul.mubr.bf16.gmra.mrb[0].mxu0 %v1394
      %v1640 = vpop.f32.mrb[0].mxu0
      %v1641 = vadd.f32 0.0, %v1640
      %v1642 = vpop.f32.mrb[0].mxu0
      %v1643 = vpop.f32.mrb[0].mxu0
      %v1644 = vadd.f32 0.0, %v1643
      %v1645 = vpop.f32.mrb[0].mxu0
      %1646 = vmatprep.mubr.bf16.mxu0 0
      %1647 = vmatmul.mubr.bf16.gmra.mrb[0].mxu0 %v1397
      %v1648 = vpop.f32.mrb[0].mxu0
      %v1649 = vadd.f32 0.0, %v1648
      %v1650 = vpop.f32.mrb[0].mxu0
      %v1651 = vpop.f32.mrb[0].mxu0
      %v1652 = vadd.f32 0.0, %v1651
      %v1653 = vpop.f32.mrb[0].mxu0
      %1654 = vmatprep.mubr.bf16.mxu0 0
      %1655 = vmatmul.mubr.bf16.gmra.mrb[0].mxu0 %v1400
      %v1656 = vpop.f32.mrb[0].mxu0
      %v1657 = vadd.f32 0.0, %v1656
      %v1658 = vpop.f32.mrb[0].mxu0
      %v1659 = vpop.f32.mrb[0].mxu0
      %v1660 = vadd.f32 0.0, %v1659
      %v1661 = vpop.f32.mrb[0].mxu0
      %1662 = vdwg.mxu0
      %vm1663 = vsmask.f32 256
      %v1664 = vshrl.u32 %v1006, 16
      %v1666 = vrot.slane %v1664, 7
      %v1667 = vshrl.u32 %v1008, 16
      %v1669 = vrot.slane %v1667, 7
      %v1670 = vshll.u32 %v1008, 16
      %v1672 = vor.u32 %v1669, %v1670
      %v1673 = vsel %vm1663, %v1666, %v1672
      %v1674 = vrot.slane %v1077, 7
      %v1675 = vor.u32 %v1674, %v1080
      %v1676 = vsel %vm1663, %v1669, %v1675
      %v1677 = vrot.slane %v1084, 7
      %v1678 = vor.u32 %v1677, %v1087
      %v1679 = vsel %vm1663, %v1674, %v1678
      %v1680 = vrot.slane %v1092, 7
      %v1681 = vor.u32 %v1680, %v1095
      %v1682 = vsel %vm1663, %v1677, %v1681
      %v1683 = vrot.slane %v1100, 7
      %v1684 = vor.u32 %v1683, %v1103
      %v1685 = vsel %vm1663, %v1680, %v1684
      %v1686 = vrot.slane %v1108, 7
      %v1687 = vor.u32 %v1686, %v1111
      %v1688 = vsel %vm1663, %v1683, %v1687
      %v1689 = vrot.slane %v1116, 7
      %v1690 = vor.u32 %v1689, %v1119
      %v1691 = vsel %vm1663, %v1686, %v1690
      %v1692 = vrot.slane %v1124, 7
      %v1693 = vor.u32 %v1692, %v1127
      %v1694 = vsel %vm1663, %v1689, %v1693
      %v1695 = vrot.slane %v1132, 7
      %v1696 = vor.u32 %v1695, %v1135
      %v1697 = vsel %vm1663, %v1692, %v1696
      %v1698 = vrot.slane %v1140, 7
      %v1699 = vor.u32 %v1698, %v1143
      %v1700 = vsel %vm1663, %v1695, %v1699
      %v1701 = vrot.slane %v1148, 7
      %v1702 = vor.u32 %v1701, %v1151
      %v1703 = vsel %vm1663, %v1698, %v1702
      %v1704 = vrot.slane %v1156, 7
      %v1705 = vor.u32 %v1704, %v1159
      %v1706 = vsel %vm1663, %v1701, %v1705
      %v1707 = vrot.slane %v1164, 7
      %v1708 = vor.u32 %v1707, %v1167
      %v1709 = vsel %vm1663, %v1704, %v1708
      %v1710 = vrot.slane %v1172, 7
      %v1711 = vor.u32 %v1710, %v1175
      %v1712 = vsel %vm1663, %v1707, %v1711
      %v1713 = vrot.slane %v1180, 7
      %v1714 = vor.u32 %v1713, %v1183
      %v1715 = vsel %vm1663, %v1710, %v1714
      %v1716 = vrot.slane %v1188, 7
      %v1717 = vor.u32 %v1716, %v1191
      %v1718 = vsel %vm1663, %v1713, %v1717
      %v1719 = vrot.slane %v1196, 7
      %v1720 = vor.u32 %v1719, %v1199
      %v1721 = vsel %vm1663, %v1716, %v1720
      %v1722 = vrot.slane %v1204, 7
      %v1723 = vor.u32 %v1722, %v1207
      %v1724 = vsel %vm1663, %v1719, %v1723
      %v1725 = vrot.slane %v1212, 7
      %v1726 = vor.u32 %v1725, %v1215
      %v1727 = vsel %vm1663, %v1722, %v1726
      %v1728 = vrot.slane %v1220, 7
      %v1729 = vor.u32 %v1728, %v1223
      %v1730 = vsel %vm1663, %v1725, %v1729
      %v1731 = vrot.slane %v1228, 7
      %v1732 = vor.u32 %v1731, %v1231
      %v1733 = vsel %vm1663, %v1728, %v1732
      %v1734 = vrot.slane %v1236, 7
      %v1735 = vor.u32 %v1734, %v1239
      %v1736 = vsel %vm1663, %v1731, %v1735
      %v1737 = vrot.slane %v1244, 7
      %v1738 = vor.u32 %v1737, %v1247
      %v1739 = vsel %vm1663, %v1734, %v1738
      %v1740 = vrot.slane %v1252, 7
      %v1741 = vor.u32 %v1740, %v1255
      %v1742 = vsel %vm1663, %v1737, %v1741
      %v1743 = vrot.slane %v1260, 7
      %v1744 = vor.u32 %v1743, %v1263
      %v1745 = vsel %vm1663, %v1740, %v1744
      %v1746 = vrot.slane %v1268, 7
      %v1747 = vor.u32 %v1746, %v1271
      %v1748 = vsel %vm1663, %v1743, %v1747
      %v1749 = vrot.slane %v1276, 7
      %v1750 = vor.u32 %v1749, %v1279
      %v1751 = vsel %vm1663, %v1746, %v1750
      %v1752 = vrot.slane %v1284, 7
      %v1753 = vor.u32 %v1752, %v1287
      %v1754 = vsel %vm1663, %v1749, %v1753
      %v1758 = vunpack.c.l.b16 %v1069
      %v1759 = vunpack.c.l.b16 %v1070
      %v1760 = vunpack.c.l.b16 %v1071
      %v1761 = vpack.c.b16 %v1759, %v1758
      %v1762 = vpack.c.b16 %v1760, %v1760
      %v1765 = vsel %vm1317, %v1673, 0
      %v1768 = vsel %vm1317, %v1676, 0
      %v1771 = vsel %vm1317, %v1679, 0
      %v1774 = vsel %vm1317, %v1682, 0
      %v1777 = vsel %vm1317, %v1685, 0
      %v1780 = vsel %vm1317, %v1688, 0
      %v1783 = vsel %vm1317, %v1691, 0
      %v1786 = vsel %vm1317, %v1694, 0
      %v1789 = vsel %vm1317, %v1697, 0
      %v1792 = vsel %vm1317, %v1700, 0
      %v1795 = vsel %vm1317, %v1703, 0
      %v1798 = vsel %vm1317, %v1706, 0
      %v1801 = vsel %vm1317, %v1709, 0
      %v1804 = vsel %vm1317, %v1712, 0
      %v1807 = vsel %vm1317, %v1715, 0
      %v1810 = vsel %vm1317, %v1718, 0
      %v1813 = vsel %vm1317, %v1721, 0
      %v1816 = vsel %vm1317, %v1724, 0
      %v1819 = vsel %vm1317, %v1727, 0
      %v1822 = vsel %vm1317, %v1730, 0
      %v1825 = vsel %vm1317, %v1733, 0
      %v1828 = vsel %vm1317, %v1736, 0
      %v1831 = vsel %vm1317, %v1739, 0
      %v1834 = vsel %vm1317, %v1742, 0
      %v1837 = vsel %vm1317, %v1745, 0
      %v1840 = vsel %vm1317, %v1748, 0
      %v1843 = vsel %vm1317, %v1751, 0
      %v1846 = vsel %vm1317, %v1754, 0
      %v1849 = vsel %vm1402, %v1762, 0
      %1851 = vmatprep.subr.bf16.mxu0 0
      %1852 = vmatpush1.bf16.msra.mxu0 %v1761
      %1853 = vmatprep.subr.bf16.mxu0 0
      %1854 = vmatpush1.bf16.msra.mxu0 %v1849
      %1855 = vmatprep.subr.bf16.mxu0 0
      %1856 = vmatpush1.bf16.msra.mxu0 0
      %1857 = vmatprep.subr.bf16.mxu0 0
      %1858 = vmatpush1.bf16.msra.mxu0 0
      %1859 = vmatprep.subr.bf16.mxu0 0
      %1860 = vmatpush1.bf16.msra.mxu0 0
      %1861 = vmatprep.subr.bf16.mxu0 0
      %1862 = vmatpush1.bf16.msra.mxu0 0
      %1863 = vmatprep.subr.bf16.mxu0 0
      %1864 = vmatpush1.bf16.msra.mxu0 0
      %1865 = vmatprep.subr.bf16.mxu0 0
      %1866 = vmatpush1.bf16.msra.mxu0 0
      %1867 = vmatprep.subr.bf16.mxu0 0
      %1868 = vmatpush1.bf16.msra.mxu0 0
      %1869 = vmatprep.subr.bf16.mxu0 0
      %1870 = vmatpush1.bf16.msra.mxu0 0
      %1871 = vmatprep.subr.bf16.mxu0 0
      %1872 = vmatpush1.bf16.msra.mxu0 0
      %1873 = vmatprep.subr.bf16.mxu0 0
      %1874 = vmatpush1.bf16.msra.mxu0 0
      %1875 = vmatprep.subr.bf16.mxu0 0
      %1876 = vmatpush1.bf16.msra.mxu0 0
      %1877 = vmatprep.subr.bf16.mxu0 0
      %1878 = vmatpush1.bf16.msra.mxu0 0
      %1879 = vmatprep.subr.bf16.mxu0 0
      %1880 = vmatpush1.bf16.msra.mxu0 0
      %1881 = vmatprep.subr.bf16.mxu0 0
      %1882 = vmatpush1.bf16.msra.mxu0 0
      %1883 = vmatprep.mubr.bf16.mxu0 0
      %1884 = vmatmul.mubr.bf16.gmra.mrb[0].mxu0 %v1765
      %v1885 = vpop.f32.mrb[0].mxu0
      %v1886 = vadd.f32 %v1441, %v1885
      %v1887 = vpop.f32.mrb[0].mxu0
      %v1888 = vpop.f32.mrb[0].mxu0
      %v1889 = vadd.f32 %v1444, %v1888
      %v1890 = vpop.f32.mrb[0].mxu0
      %1891 = vmatprep.mubr.bf16.mxu0 0
      %1892 = vmatmul.mubr.bf16.gmra.mrb[0].mxu0 %v1768
      %v1893 = vpop.f32.mrb[0].mxu0
      %v1894 = vadd.f32 %v1449, %v1893
      %v1895 = vpop.f32.mrb[0].mxu0
      %v1896 = vpop.f32.mrb[0].mxu0
      %v1897 = vadd.f32 %v1452, %v1896
      %v1898 = vpop.f32.mrb[0].mxu0
      %1899 = vmatprep.mubr.bf16.mxu0 0
      %1900 = vmatmul.mubr.bf16.gmra.mrb[0].mxu0 %v1771
      %v1901 = vpop.f32.mrb[0].mxu0
      %v1902 = vadd.f32 %v1457, %v1901
      %v1903 = vpop.f32.mrb[0].mxu0
      %v1904 = vpop.f32.mrb[0].mxu0
      %v1905 = vadd.f32 %v1460, %v1904
      %v1906 = vpop.f32.mrb[0].mxu0
      %1907 = vmatprep.mubr.bf16.mxu0 0
      %1908 = vmatmul.mubr.bf16.gmra.mrb[0].mxu0 %v1774
      %v1909 = vpop.f32.mrb[0].mxu0
      %v1910 = vadd.f32 %v1465, %v1909
      %v1911 = vpop.f32.mrb[0].mxu0
      %v1912 = vpop.f32.mrb[0].mxu0
      %v1913 = vadd.f32 %v1468, %v1912
      %v1914 = vpop.f32.mrb[0].mxu0
      %1915 = vmatprep.mubr.bf16.mxu0 0
      %1916 = vmatmul.mubr.bf16.gmra.mrb[0].mxu0 %v1777
      %v1917 = vpop.f32.mrb[0].mxu0
      %v1918 = vadd.f32 %v1473, %v1917
      %v1919 = vpop.f32.mrb[0].mxu0
      %v1920 = vpop.f32.mrb[0].mxu0
      %v1921 = vadd.f32 %v1476, %v1920
      %v1922 = vpop.f32.mrb[0].mxu0
      %1923 = vmatprep.mubr.bf16.mxu0 0
      %1924 = vmatmul.mubr.bf16.gmra.mrb[0].mxu0 %v1780
      %v1925 = vpop.f32.mrb[0].mxu0
      %v1926 = vadd.f32 %v1481, %v1925
      %v1927 = vpop.f32.mrb[0].mxu0
      %v1928 = vpop.f32.mrb[0].mxu0
      %v1929 = vadd.f32 %v1484, %v1928
      %v1930 = vpop.f32.mrb[0].mxu0
      %1931 = vmatprep.mubr.bf16.mxu0 0
      %1932 = vmatmul.mubr.bf16.gmra.mrb[0].mxu0 %v1783
      %v1933 = vpop.f32.mrb[0].mxu0
      %v1934 = vadd.f32 %v1489, %v1933
      %v1935 = vpop.f32.mrb[0].mxu0
      %v1936 = vpop.f32.mrb[0].mxu0
      %v1937 = vadd.f32 %v1492, %v1936
      %v1938 = vpop.f32.mrb[0].mxu0
      %1939 = vmatprep.mubr.bf16.mxu0 0
      %1940 = vmatmul.mubr.bf16.gmra.mrb[0].mxu0 %v1786
      %v1941 = vpop.f32.mrb[0].mxu0
      %v1942 = vadd.f32 %v1497, %v1941
      %v1943 = vpop.f32.mrb[0].mxu0
      %v1944 = vpop.f32.mrb[0].mxu0
      %v1945 = vadd.f32 %v1500, %v1944
      %v1946 = vpop.f32.mrb[0].mxu0
      %1947 = vmatprep.mubr.bf16.mxu0 0
      %1948 = vmatmul.mubr.bf16.gmra.mrb[0].mxu0 %v1789
      %v1949 = vpop.f32.mrb[0].mxu0
      %v1950 = vadd.f32 %v1505, %v1949
      %v1951 = vpop.f32.mrb[0].mxu0
      %v1952 = vpop.f32.mrb[0].mxu0
      %v1953 = vadd.f32 %v1508, %v1952
      %v1954 = vpop.f32.mrb[0].mxu0
      %1955 = vmatprep.mubr.bf16.mxu0 0
      %1956 = vmatmul.mubr.bf16.gmra.mrb[0].mxu0 %v1792
      %v1957 = vpop.f32.mrb[0].mxu0
      %v1958 = vadd.f32 %v1513, %v1957
      %v1959 = vpop.f32.mrb[0].mxu0
      %v1960 = vpop.f32.mrb[0].mxu0
      %v1961 = vadd.f32 %v1516, %v1960
      %v1962 = vpop.f32.mrb[0].mxu0
      %1963 = vmatprep.mubr.bf16.mxu0 0
      %1964 = vmatmul.mubr.bf16.gmra.mrb[0].mxu0 %v1795
      %v1965 = vpop.f32.mrb[0].mxu0
      %v1966 = vadd.f32 %v1521, %v1965
      %v1967 = vpop.f32.mrb[0].mxu0
      %v1968 = vpop.f32.mrb[0].mxu0
      %v1969 = vadd.f32 %v1524, %v1968
      %v1970 = vpop.f32.mrb[0].mxu0
      %1971 = vmatprep.mubr.bf16.mxu0 0
      %1972 = vmatmul.mubr.bf16.gmra.mrb[0].mxu0 %v1798
      %v1973 = vpop.f32.mrb[0].mxu0
      %v1974 = vadd.f32 %v1529, %v1973
      %v1975 = vpop.f32.mrb[0].mxu0
      %v1976 = vpop.f32.mrb[0].mxu0
      %v1977 = vadd.f32 %v1532, %v1976
      %v1978 = vpop.f32.mrb[0].mxu0
      %1979 = vmatprep.mubr.bf16.mxu0 0
      %1980 = vmatmul.mubr.bf16.gmra.mrb[0].mxu0 %v1801
      %v1981 = vpop.f32.mrb[0].mxu0
      %v1982 = vadd.f32 %v1537, %v1981
      %v1983 = vpop.f32.mrb[0].mxu0
      %v1984 = vpop.f32.mrb[0].mxu0
      %v1985 = vadd.f32 %v1540, %v1984
      %v1986 = vpop.f32.mrb[0].mxu0
      %1987 = vmatprep.mubr.bf16.mxu0 0
      %1988 = vmatmul.mubr.bf16.gmra.mrb[0].mxu0 %v1804
      %v1989 = vpop.f32.mrb[0].mxu0
      %v1990 = vadd.f32 %v1545, %v1989
      %v1991 = vpop.f32.mrb[0].mxu0
      %v1992 = vpop.f32.mrb[0].mxu0
      %v1993 = vadd.f32 %v1548, %v1992
      %v1994 = vpop.f32.mrb[0].mxu0
      %1995 = vmatprep.mubr.bf16.mxu0 0
      %1996 = vmatmul.mubr.bf16.gmra.mrb[0].mxu0 %v1807
      %v1997 = vpop.f32.mrb[0].mxu0
      %v1998 = vadd.f32 %v1553, %v1997
      %v1999 = vpop.f32.mrb[0].mxu0
      %v2000 = vpop.f32.mrb[0].mxu0
      %v2001 = vadd.f32 %v1556, %v2000
      %v2002 = vpop.f32.mrb[0].mxu0
      %2003 = vmatprep.mubr.bf16.mxu0 0
      %2004 = vmatmul.mubr.bf16.gmra.mrb[0].mxu0 %v1810
      %v2005 = vpop.f32.mrb[0].mxu0
      %v2006 = vadd.f32 %v1561, %v2005
      %v2007 = vpop.f32.mrb[0].mxu0
      %v2008 = vpop.f32.mrb[0].mxu0
      %v2009 = vadd.f32 %v1564, %v2008
      %v2010 = vpop.f32.mrb[0].mxu0
      %2011 = vmatprep.mubr.bf16.mxu0 0
      %2012 = vmatmul.mubr.bf16.gmra.mrb[0].mxu0 %v1813
      %v2013 = vpop.f32.mrb[0].mxu0
      %v2014 = vadd.f32 %v1569, %v2013
      %v2015 = vpop.f32.mrb[0].mxu0
      %v2016 = vpop.f32.mrb[0].mxu0
      %v2017 = vadd.f32 %v1572, %v2016
      %v2018 = vpop.f32.mrb[0].mxu0
      %2019 = vmatprep.mubr.bf16.mxu0 0
      %2020 = vmatmul.mubr.bf16.gmra.mrb[0].mxu0 %v1816
      %v2021 = vpop.f32.mrb[0].mxu0
      %v2022 = vadd.f32 %v1577, %v2021
      %v2023 = vpop.f32.mrb[0].mxu0
      %v2024 = vpop.f32.mrb[0].mxu0
      %v2025 = vadd.f32 %v1580, %v2024
      %v2026 = vpop.f32.mrb[0].mxu0
      %2027 = vmatprep.mubr.bf16.mxu0 0
      %2028 = vmatmul.mubr.bf16.gmra.mrb[0].mxu0 %v1819
      %v2029 = vpop.f32.mrb[0].mxu0
      %v2030 = vadd.f32 %v1585, %v2029
      %v2031 = vpop.f32.mrb[0].mxu0
      %v2032 = vpop.f32.mrb[0].mxu0
      %v2033 = vadd.f32 %v1588, %v2032
      %v2034 = vpop.f32.mrb[0].mxu0
      %2035 = vmatprep.mubr.bf16.mxu0 0
      %2036 = vmatmul.mubr.bf16.gmra.mrb[0].mxu0 %v1822
      %v2037 = vpop.f32.mrb[0].mxu0
      %v2038 = vadd.f32 %v1593, %v2037
      %v2039 = vpop.f32.mrb[0].mxu0
      %v2040 = vpop.f32.mrb[0].mxu0
      %v2041 = vadd.f32 %v1596, %v2040
      %v2042 = vpop.f32.mrb[0].mxu0
      %2043 = vmatprep.mubr.bf16.mxu0 0
      %2044 = vmatmul.mubr.bf16.gmra.mrb[0].mxu0 %v1825
      %v2045 = vpop.f32.mrb[0].mxu0
      %v2046 = vadd.f32 %v1601, %v2045
      %v2047 = vpop.f32.mrb[0].mxu0
      %v2048 = vpop.f32.mrb[0].mxu0
      %v2049 = vadd.f32 %v1604, %v2048
      %v2050 = vpop.f32.mrb[0].mxu0
      %2051 = vmatprep.mubr.bf16.mxu0 0
      %2052 = vmatmul.mubr.bf16.gmra.mrb[0].mxu0 %v1828
      %v2053 = vpop.f32.mrb[0].mxu0
      %v2054 = vadd.f32 %v1609, %v2053
      %v2055 = vpop.f32.mrb[0].mxu0
      %v2056 = vpop.f32.mrb[0].mxu0
      %v2057 = vadd.f32 %v1612, %v2056
      %v2058 = vpop.f32.mrb[0].mxu0
      %2059 = vmatprep.mubr.bf16.mxu0 0
      %2060 = vmatmul.mubr.bf16.gmra.mrb[0].mxu0 %v1831
      %v2061 = vpop.f32.mrb[0].mxu0
      %v2062 = vadd.f32 %v1617, %v2061
      %v2063 = vpop.f32.mrb[0].mxu0
      %v2064 = vpop.f32.mrb[0].mxu0
      %v2065 = vadd.f32 %v1620, %v2064
      %v2066 = vpop.f32.mrb[0].mxu0
      %2067 = vmatprep.mubr.bf16.mxu0 0
      %2068 = vmatmul.mubr.bf16.gmra.mrb[0].mxu0 %v1834
      %v2069 = vpop.f32.mrb[0].mxu0
      %v2070 = vadd.f32 %v1625, %v2069
      %v2071 = vpop.f32.mrb[0].mxu0
      %v2072 = vpop.f32.mrb[0].mxu0
      %v2073 = vadd.f32 %v1628, %v2072
      %v2074 = vpop.f32.mrb[0].mxu0
      %2075 = vmatprep.mubr.bf16.mxu0 0
      %2076 = vmatmul.mubr.bf16.gmra.mrb[0].mxu0 %v1837
      %v2077 = vpop.f32.mrb[0].mxu0
      %v2078 = vadd.f32 %v1633, %v2077
      %v2079 = vpop.f32.mrb[0].mxu0
      %v2080 = vpop.f32.mrb[0].mxu0
      %v2081 = vadd.f32 %v1636, %v2080
      %v2082 = vpop.f32.mrb[0].mxu0
      %2083 = vmatprep.mubr.bf16.mxu0 0
      %2084 = vmatmul.mubr.bf16.gmra.mrb[0].mxu0 %v1840
      %v2085 = vpop.f32.mrb[0].mxu0
      %v2086 = vadd.f32 %v1641, %v2085
      %v2087 = vpop.f32.mrb[0].mxu0
      %v2088 = vpop.f32.mrb[0].mxu0
      %v2089 = vadd.f32 %v1644, %v2088
      %v2090 = vpop.f32.mrb[0].mxu0
      %2091 = vmatprep.mubr.bf16.mxu0 0
      %2092 = vmatmul.mubr.bf16.gmra.mrb[0].mxu0 %v1843
      %v2093 = vpop.f32.mrb[0].mxu0
      %v2094 = vadd.f32 %v1649, %v2093
      %v2095 = vpop.f32.mrb[0].mxu0
      %v2096 = vpop.f32.mrb[0].mxu0
      %v2097 = vadd.f32 %v1652, %v2096
      %v2098 = vpop.f32.mrb[0].mxu0
      %2099 = vmatprep.mubr.bf16.mxu0 0
      %2100 = vmatmul.mubr.bf16.gmra.mrb[0].mxu0 %v1846
      %v2101 = vpop.f32.mrb[0].mxu0
      %v2102 = vadd.f32 %v1657, %v2101
      %v2103 = vpop.f32.mrb[0].mxu0
      %v2104 = vpop.f32.mrb[0].mxu0
      %v2105 = vadd.f32 %v1660, %v2104
      %v2106 = vpop.f32.mrb[0].mxu0
      %2107 = vdwg.mxu0
      %s2108 = scalar_lea.vmem %s2, 24
      %v2109 = vld [vmem:[%s2108] sm:$0xf]
      %v2110 = vld [vmem:[%s2108 + $0x4] sm:$0xf]
      %v2111 = vld [vmem:[%s2108 + $0x8] sm:$0xf]
      %v2112 = vrot.slane %v1292, 7
      %v2113 = vor.u32 %v2112, %v1295
      %v2114 = vsel %vm1663, %v1752, %v2113
      %v2115 = vrot.slane %v1300, 7
      %v2116 = vor.u32 %v2115, %v1303
      %v2117 = vsel %vm1663, %v2112, %v2116
      %v2118 = vshrl.u32 %v1068, 16
      %v2120 = vrot.slane %v2118, 7
      %v2121 = vshll.u32 %v1068, 16
      %v2123 = vor.u32 %v2120, %v2121
      %v2124 = vsel %vm1663, %v2115, %v2123
      %v2128 = vunpack.c.l.b16 %v2109
      %v2129 = vunpack.c.l.b16 %v2110
      %v2130 = vunpack.c.l.b16 %v2111
      %v2131 = vpack.c.b16 %v2129, %v2128
      %v2132 = vpack.c.b16 %v2130, %v2130
      %v2135 = vsel %vm1317, %v2114, 0
      %v2138 = vsel %vm1317, %v2117, 0
      %v2141 = vsel %vm1317, %v2124, 0
      %v2144 = vsel %vm1402, %v2132, 0
      %2146 = vmatprep.subr.bf16.mxu0 0
      %2147 = vmatpush1.bf16.msra.mxu0 %v2131
      %2148 = vmatprep.subr.bf16.mxu0 0
      %2149 = vmatpush1.bf16.msra.mxu0 %v2144
      %2150 = vmatprep.subr.bf16.mxu0 0
      %2151 = vmatpush1.bf16.msra.mxu0 0
      %2152 = vmatprep.subr.bf16.mxu0 0
      %2153 = vmatpush1.bf16.msra.mxu0 0
      %2154 = vmatprep.subr.bf16.mxu0 0
      %2155 = vmatpush1.bf16.msra.mxu0 0
      %2156 = vmatprep.subr.bf16.mxu0 0
      %2157 = vmatpush1.bf16.msra.mxu0 0
      %2158 = vmatprep.subr.bf16.mxu0 0
      %2159 = vmatpush1.bf16.msra.mxu0 0
      %2160 = vmatprep.subr.bf16.mxu0 0
      %2161 = vmatpush1.bf16.msra.mxu0 0
      %2162 = vmatprep.subr.bf16.mxu0 0
      %2163 = vmatpush1.bf16.msra.mxu0 0
      %2164 = vmatprep.subr.bf16.mxu0 0
      %2165 = vmatpush1.bf16.msra.mxu0 0
      %2166 = vmatprep.subr.bf16.mxu0 0
      %2167 = vmatpush1.bf16.msra.mxu0 0
      %2168 = vmatprep.subr.bf16.mxu0 0
      %2169 = vmatpush1.bf16.msra.mxu0 0
      %2170 = vmatprep.subr.bf16.mxu0 0
      %2171 = vmatpush1.bf16.msra.mxu0 0
      %2172 = vmatprep.subr.bf16.mxu0 0
      %2173 = vmatpush1.bf16.msra.mxu0 0
      %2174 = vmatprep.subr.bf16.mxu0 0
      %2175 = vmatpush1.bf16.msra.mxu0 0
      %2176 = vmatprep.subr.bf16.mxu0 0
      %2177 = vmatpush1.bf16.msra.mxu0 0
      %2178 = vmatprep.mubr.bf16.mxu0 0
      %2179 = vmatmul.mubr.bf16.gmra.mrb[0].mxu0 %v1774
      %v2180 = vpop.f32.mrb[0].mxu0
      %v2181 = vadd.f32 0.0, %v2180
      %v2182 = vpop.f32.mrb[0].mxu0
      %v2183 = vpop.f32.mrb[0].mxu0
      %v2184 = vadd.f32 0.0, %v2183
      %v2185 = vpop.f32.mrb[0].mxu0
      %2186 = vmatprep.mubr.bf16.mxu0 0
      %2187 = vmatmul.mubr.bf16.gmra.mrb[0].mxu0 %v1777
      %v2188 = vpop.f32.mrb[0].mxu0
      %v2189 = vadd.f32 0.0, %v2188
      %v2190 = vpop.f32.mrb[0].mxu0
      %v2191 = vpop.f32.mrb[0].mxu0
      %v2192 = vadd.f32 0.0, %v2191
      %v2193 = vpop.f32.mrb[0].mxu0
      %2194 = vmatprep.mubr.bf16.mxu0 0
      %2195 = vmatmul.mubr.bf16.gmra.mrb[0].mxu0 %v1780
      %v2196 = vpop.f32.mrb[0].mxu0
      %v2197 = vadd.f32 0.0, %v2196
      %v2198 = vpop.f32.mrb[0].mxu0
      %v2199 = vpop.f32.mrb[0].mxu0
      %v2200 = vadd.f32 0.0, %v2199
      %v2201 = vpop.f32.mrb[0].mxu0
      %2202 = vmatprep.mubr.bf16.mxu0 0
      %2203 = vmatmul.mubr.bf16.gmra.mrb[0].mxu0 %v1783
      %v2204 = vpop.f32.mrb[0].mxu0
      %v2205 = vadd.f32 0.0, %v2204
      %v2206 = vpop.f32.mrb[0].mxu0
      %v2207 = vpop.f32.mrb[0].mxu0
      %v2208 = vadd.f32 0.0, %v2207
      %v2209 = vpop.f32.mrb[0].mxu0
      %2210 = vmatprep.mubr.bf16.mxu0 0
      %2211 = vmatmul.mubr.bf16.gmra.mrb[0].mxu0 %v1786
      %v2212 = vpop.f32.mrb[0].mxu0
      %v2213 = vadd.f32 0.0, %v2212
      %v2214 = vpop.f32.mrb[0].mxu0
      %v2215 = vpop.f32.mrb[0].mxu0
      %v2216 = vadd.f32 0.0, %v2215
      %v2217 = vpop.f32.mrb[0].mxu0
      %2218 = vmatprep.mubr.bf16.mxu0 0
      %2219 = vmatmul.mubr.bf16.gmra.mrb[0].mxu0 %v1789
      %v2220 = vpop.f32.mrb[0].mxu0
      %v2221 = vadd.f32 0.0, %v2220
      %v2222 = vpop.f32.mrb[0].mxu0
      %v2223 = vpop.f32.mrb[0].mxu0
      %v2224 = vadd.f32 0.0, %v2223
      %v2225 = vpop.f32.mrb[0].mxu0
      %2226 = vmatprep.mubr.bf16.mxu0 0
      %2227 = vmatmul.mubr.bf16.gmra.mrb[0].mxu0 %v1792
      %v2228 = vpop.f32.mrb[0].mxu0
      %v2229 = vadd.f32 0.0, %v2228
      %v2230 = vpop.f32.mrb[0].mxu0
      %v2231 = vpop.f32.mrb[0].mxu0
      %v2232 = vadd.f32 0.0, %v2231
      %v2233 = vpop.f32.mrb[0].mxu0
      %2234 = vmatprep.mubr.bf16.mxu0 0
      %2235 = vmatmul.mubr.bf16.gmra.mrb[0].mxu0 %v1795
      %v2236 = vpop.f32.mrb[0].mxu0
      %v2237 = vadd.f32 0.0, %v2236
      %v2238 = vpop.f32.mrb[0].mxu0
      %v2239 = vpop.f32.mrb[0].mxu0
      %v2240 = vadd.f32 0.0, %v2239
      %v2241 = vpop.f32.mrb[0].mxu0
      %2242 = vmatprep.mubr.bf16.mxu0 0
      %2243 = vmatmul.mubr.bf16.gmra.mrb[0].mxu0 %v1798
      %v2244 = vpop.f32.mrb[0].mxu0
      %v2245 = vadd.f32 0.0, %v2244
      %v2246 = vpop.f32.mrb[0].mxu0
      %v2247 = vpop.f32.mrb[0].mxu0
      %v2248 = vadd.f32 0.0, %v2247
      %v2249 = vpop.f32.mrb[0].mxu0
      %2250 = vmatprep.mubr.bf16.mxu0 0
      %2251 = vmatmul.mubr.bf16.gmra.mrb[0].mxu0 %v1801
      %v2252 = vpop.f32.mrb[0].mxu0
      %v2253 = vadd.f32 0.0, %v2252
      %v2254 = vpop.f32.mrb[0].mxu0
      %v2255 = vpop.f32.mrb[0].mxu0
      %v2256 = vadd.f32 0.0, %v2255
      %v2257 = vpop.f32.mrb[0].mxu0
      %2258 = vmatprep.mubr.bf16.mxu0 0
      %2259 = vmatmul.mubr.bf16.gmra.mrb[0].mxu0 %v1804
      %v2260 = vpop.f32.mrb[0].mxu0
      %v2261 = vadd.f32 0.0, %v2260
      %v2262 = vpop.f32.mrb[0].mxu0
      %v2263 = vpop.f32.mrb[0].mxu0
      %v2264 = vadd.f32 0.0, %v2263
      %v2265 = vpop.f32.mrb[0].mxu0
      %2266 = vmatprep.mubr.bf16.mxu0 0
      %2267 = vmatmul.mubr.bf16.gmra.mrb[0].mxu0 %v1807
      %v2268 = vpop.f32.mrb[0].mxu0
      %v2269 = vadd.f32 0.0, %v2268
      %v2270 = vpop.f32.mrb[0].mxu0
      %v2271 = vpop.f32.mrb[0].mxu0
      %v2272 = vadd.f32 0.0, %v2271
      %v2273 = vpop.f32.mrb[0].mxu0
      %2274 = vmatprep.mubr.bf16.mxu0 0
      %2275 = vmatmul.mubr.bf16.gmra.mrb[0].mxu0 %v1810
      %v2276 = vpop.f32.mrb[0].mxu0
      %v2277 = vadd.f32 0.0, %v2276
      %v2278 = vpop.f32.mrb[0].mxu0
      %v2279 = vpop.f32.mrb[0].mxu0
      %v2280 = vadd.f32 0.0, %v2279
      %v2281 = vpop.f32.mrb[0].mxu0
      %2282 = vmatprep.mubr.bf16.mxu0 0
      %2283 = vmatmul.mubr.bf16.gmra.mrb[0].mxu0 %v1813
      %v2284 = vpop.f32.mrb[0].mxu0
      %v2285 = vadd.f32 0.0, %v2284
      %v2286 = vpop.f32.mrb[0].mxu0
      %v2287 = vpop.f32.mrb[0].mxu0
      %v2288 = vadd.f32 0.0, %v2287
      %v2289 = vpop.f32.mrb[0].mxu0
      %2290 = vmatprep.mubr.bf16.mxu0 0
      %2291 = vmatmul.mubr.bf16.gmra.mrb[0].mxu0 %v1816
      %v2292 = vpop.f32.mrb[0].mxu0
      %v2293 = vadd.f32 0.0, %v2292
      %v2294 = vpop.f32.mrb[0].mxu0
      %v2295 = vpop.f32.mrb[0].mxu0
      %v2296 = vadd.f32 0.0, %v2295
      %v2297 = vpop.f32.mrb[0].mxu0
      %2298 = vmatprep.mubr.bf16.mxu0 0
      %2299 = vmatmul.mubr.bf16.gmra.mrb[0].mxu0 %v1819
      %v2300 = vpop.f32.mrb[0].mxu0
      %v2301 = vadd.f32 0.0, %v2300
      %v2302 = vpop.f32.mrb[0].mxu0
      %v2303 = vpop.f32.mrb[0].mxu0
      %v2304 = vadd.f32 0.0, %v2303
      %v2305 = vpop.f32.mrb[0].mxu0
      %2306 = vmatprep.mubr.bf16.mxu0 0
      %2307 = vmatmul.mubr.bf16.gmra.mrb[0].mxu0 %v1822
      %v2308 = vpop.f32.mrb[0].mxu0
      %v2309 = vadd.f32 0.0, %v2308
      %v2310 = vpop.f32.mrb[0].mxu0
      %v2311 = vpop.f32.mrb[0].mxu0
      %v2312 = vadd.f32 0.0, %v2311
      %v2313 = vpop.f32.mrb[0].mxu0
      %2314 = vmatprep.mubr.bf16.mxu0 0
      %2315 = vmatmul.mubr.bf16.gmra.mrb[0].mxu0 %v1825
      %v2316 = vpop.f32.mrb[0].mxu0
      %v2317 = vadd.f32 0.0, %v2316
      %v2318 = vpop.f32.mrb[0].mxu0
      %v2319 = vpop.f32.mrb[0].mxu0
      %v2320 = vadd.f32 0.0, %v2319
      %v2321 = vpop.f32.mrb[0].mxu0
      %2322 = vmatprep.mubr.bf16.mxu0 0
      %2323 = vmatmul.mubr.bf16.gmra.mrb[0].mxu0 %v1828
      %v2324 = vpop.f32.mrb[0].mxu0
      %v2325 = vadd.f32 0.0, %v2324
      %v2326 = vpop.f32.mrb[0].mxu0
      %v2327 = vpop.f32.mrb[0].mxu0
      %v2328 = vadd.f32 0.0, %v2327
      %v2329 = vpop.f32.mrb[0].mxu0
      %2330 = vmatprep.mubr.bf16.mxu0 0
      %2331 = vmatmul.mubr.bf16.gmra.mrb[0].mxu0 %v1831
      %v2332 = vpop.f32.mrb[0].mxu0
      %v2333 = vadd.f32 0.0, %v2332
      %v2334 = vpop.f32.mrb[0].mxu0
      %v2335 = vpop.f32.mrb[0].mxu0
      %v2336 = vadd.f32 0.0, %v2335
      %v2337 = vpop.f32.mrb[0].mxu0
      %2338 = vmatprep.mubr.bf16.mxu0 0
      %2339 = vmatmul.mubr.bf16.gmra.mrb[0].mxu0 %v1834
      %v2340 = vpop.f32.mrb[0].mxu0
      %v2341 = vadd.f32 0.0, %v2340
      %v2342 = vpop.f32.mrb[0].mxu0
      %v2343 = vpop.f32.mrb[0].mxu0
      %v2344 = vadd.f32 0.0, %v2343
      %v2345 = vpop.f32.mrb[0].mxu0
      %2346 = vmatprep.mubr.bf16.mxu0 0
      %2347 = vmatmul.mubr.bf16.gmra.mrb[0].mxu0 %v1837
      %v2348 = vpop.f32.mrb[0].mxu0
      %v2349 = vadd.f32 0.0, %v2348
      %v2350 = vpop.f32.mrb[0].mxu0
      %v2351 = vpop.f32.mrb[0].mxu0
      %v2352 = vadd.f32 0.0, %v2351
      %v2353 = vpop.f32.mrb[0].mxu0
      %2354 = vmatprep.mubr.bf16.mxu0 0
      %2355 = vmatmul.mubr.bf16.gmra.mrb[0].mxu0 %v1840
      %v2356 = vpop.f32.mrb[0].mxu0
      %v2357 = vadd.f32 0.0, %v2356
      %v2358 = vpop.f32.mrb[0].mxu0
      %v2359 = vpop.f32.mrb[0].mxu0
      %v2360 = vadd.f32 0.0, %v2359
      %v2361 = vpop.f32.mrb[0].mxu0
      %2362 = vmatprep.mubr.bf16.mxu0 0
      %2363 = vmatmul.mubr.bf16.gmra.mrb[0].mxu0 %v1843
      %v2364 = vpop.f32.mrb[0].mxu0
      %v2365 = vadd.f32 0.0, %v2364
      %v2366 = vpop.f32.mrb[0].mxu0
      %v2367 = vpop.f32.mrb[0].mxu0
      %v2368 = vadd.f32 0.0, %v2367
      %v2369 = vpop.f32.mrb[0].mxu0
      %2370 = vmatprep.mubr.bf16.mxu0 0
      %2371 = vmatmul.mubr.bf16.gmra.mrb[0].mxu0 %v1846
      %v2372 = vpop.f32.mrb[0].mxu0
      %v2373 = vadd.f32 0.0, %v2372
      %v2374 = vpop.f32.mrb[0].mxu0
      %v2375 = vpop.f32.mrb[0].mxu0
      %v2376 = vadd.f32 0.0, %v2375
      %v2377 = vpop.f32.mrb[0].mxu0
      %2378 = vmatprep.mubr.bf16.mxu0 0
      %2379 = vmatmul.mubr.bf16.gmra.mrb[0].mxu0 %v2135
      %v2380 = vpop.f32.mrb[0].mxu0
      %v2381 = vadd.f32 0.0, %v2380
      %v2382 = vpop.f32.mrb[0].mxu0
      %v2383 = vpop.f32.mrb[0].mxu0
      %v2384 = vadd.f32 0.0, %v2383
      %v2385 = vpop.f32.mrb[0].mxu0
      %2386 = vmatprep.mubr.bf16.mxu0 0
      %2387 = vmatmul.mubr.bf16.gmra.mrb[0].mxu0 %v2138
      %v2388 = vpop.f32.mrb[0].mxu0
      %v2389 = vadd.f32 0.0, %v2388
      %v2390 = vpop.f32.mrb[0].mxu0
      %v2391 = vpop.f32.mrb[0].mxu0
      %v2392 = vadd.f32 0.0, %v2391
      %v2393 = vpop.f32.mrb[0].mxu0
      %2394 = vmatprep.mubr.bf16.mxu0 0
      %2395 = vmatmul.mubr.bf16.gmra.mrb[0].mxu0 %v2141
      %v2396 = vpop.f32.mrb[0].mxu0
      %v2397 = vadd.f32 0.0, %v2396
      %v2398 = vpop.f32.mrb[0].mxu0
      %v2399 = vpop.f32.mrb[0].mxu0
      %v2400 = vadd.f32 0.0, %v2399
      %v2401 = vpop.f32.mrb[0].mxu0
      %2402 = vdwg.mxu0
      %v2403 = vadd.f32 %v1886, %v2181
      %v2404 = vadd.f32 %v1889, %v2184
      %v2405 = vadd.f32 %v1894, %v2189
      %v2406 = vadd.f32 %v1897, %v2192
      %v2407 = vadd.f32 %v1902, %v2197
      %v2408 = vadd.f32 %v1905, %v2200
      %v2409 = vadd.f32 %v1910, %v2205
      %v2410 = vadd.f32 %v1913, %v2208
      %v2411 = vadd.f32 %v1918, %v2213
      %v2412 = vadd.f32 %v1921, %v2216
      %v2413 = vadd.f32 %v1926, %v2221
      %v2414 = vadd.f32 %v1929, %v2224
      %v2415 = vadd.f32 %v1934, %v2229
      %v2416 = vadd.f32 %v1937, %v2232
      %v2417 = vadd.f32 %v1942, %v2237
      %v2418 = vadd.f32 %v1945, %v2240
      %v2419 = vadd.f32 %v1950, %v2245
      %v2420 = vadd.f32 %v1953, %v2248
      %v2421 = vadd.f32 %v1958, %v2253
      %v2422 = vadd.f32 %v1961, %v2256
      %v2423 = vadd.f32 %v1966, %v2261
      %v2424 = vadd.f32 %v1969, %v2264
      %v2425 = vadd.f32 %v1974, %v2269
      %v2426 = vadd.f32 %v1977, %v2272
      %v2427 = vadd.f32 %v1982, %v2277
      %v2428 = vadd.f32 %v1985, %v2280
      %v2429 = vadd.f32 %v1990, %v2285
      %v2430 = vadd.f32 %v1993, %v2288
      %v2431 = vadd.f32 %v1998, %v2293
      %v2432 = vadd.f32 %v2001, %v2296
      %v2433 = vadd.f32 %v2006, %v2301
      %v2434 = vadd.f32 %v2009, %v2304
      %v2435 = vadd.f32 %v2014, %v2309
      %v2436 = vadd.f32 %v2017, %v2312
      %v2437 = vadd.f32 %v2022, %v2317
      %v2438 = vadd.f32 %v2025, %v2320
      %v2439 = vadd.f32 %v2030, %v2325
      %v2440 = vadd.f32 %v2033, %v2328
      %v2441 = vadd.f32 %v2038, %v2333
      %v2442 = vadd.f32 %v2041, %v2336
      %v2443 = vadd.f32 %v2046, %v2341
      %v2444 = vadd.f32 %v2049, %v2344
      %v2445 = vadd.f32 %v2054, %v2349
      %v2446 = vadd.f32 %v2057, %v2352
      %v2447 = vadd.f32 %v2062, %v2357
      %v2448 = vadd.f32 %v2065, %v2360
      %v2449 = vadd.f32 %v2070, %v2365
      %v2450 = vadd.f32 %v2073, %v2368
      %v2451 = vadd.f32 %v2078, %v2373
      %v2452 = vadd.f32 %v2081, %v2376
      %v2453 = vadd.f32 %v2086, %v2381
      %v2454 = vadd.f32 %v2089, %v2384
      %v2455 = vadd.f32 %v2094, %v2389
      %v2456 = vadd.f32 %v2097, %v2392
      %v2457 = vadd.f32 %v2102, %v2397
      %v2458 = vadd.f32 %v2105, %v2400
      %v2459 = vld [vmem:[%s3] sm:$0x1]
      %v2461 = vlaneseq
      %v2462 = vshrl.u32 %v2461, 7
      %v2463 = vsub.s32 0, %v2462
      %v2464 = vrot.slane %v2459, %v2463
      %v2466 = vadd.f32 %v2403, %v2464
      %v2467 = vadd.f32 %v2404, %v2464
      %v2468 = vadd.f32 %v2405, %v2464
      %v2469 = vadd.f32 %v2406, %v2464
      %v2470 = vadd.f32 %v2407, %v2464
      %v2471 = vadd.f32 %v2408, %v2464
      %v2472 = vadd.f32 %v2409, %v2464
      %v2473 = vadd.f32 %v2410, %v2464
      %v2474 = vadd.f32 %v2411, %v2464
      %v2475 = vadd.f32 %v2412, %v2464
      %v2476 = vadd.f32 %v2413, %v2464
      %v2477 = vadd.f32 %v2414, %v2464
      %v2478 = vadd.f32 %v2415, %v2464
      %v2479 = vadd.f32 %v2416, %v2464
      %v2480 = vadd.f32 %v2417, %v2464
      %v2481 = vadd.f32 %v2418, %v2464
      %v2482 = vadd.f32 %v2419, %v2464
      %v2483 = vadd.f32 %v2420, %v2464
      %v2484 = vadd.f32 %v2421, %v2464
      %v2485 = vadd.f32 %v2422, %v2464
      %v2486 = vadd.f32 %v2423, %v2464
      %v2487 = vadd.f32 %v2424, %v2464
      %v2488 = vadd.f32 %v2425, %v2464
      %v2489 = vadd.f32 %v2426, %v2464
      %v2490 = vadd.f32 %v2427, %v2464
      %v2491 = vadd.f32 %v2428, %v2464
      %v2492 = vadd.f32 %v2429, %v2464
      %v2493 = vadd.f32 %v2430, %v2464
      %v2494 = vadd.f32 %v2431, %v2464
      %v2495 = vadd.f32 %v2432, %v2464
      %v2496 = vadd.f32 %v2433, %v2464
      %v2497 = vadd.f32 %v2434, %v2464
      %v2498 = vadd.f32 %v2435, %v2464
      %v2499 = vadd.f32 %v2436, %v2464
      %v2500 = vadd.f32 %v2437, %v2464
      %v2501 = vadd.f32 %v2438, %v2464
      %v2502 = vadd.f32 %v2439, %v2464
      %v2503 = vadd.f32 %v2440, %v2464
      %v2504 = vadd.f32 %v2441, %v2464
      %v2505 = vadd.f32 %v2442, %v2464
      %v2506 = vadd.f32 %v2443, %v2464
      %v2507 = vadd.f32 %v2444, %v2464
      %v2508 = vadd.f32 %v2445, %v2464
      %v2509 = vadd.f32 %v2446, %v2464
      %v2510 = vadd.f32 %v2447, %v2464
      %v2511 = vadd.f32 %v2448, %v2464
      %v2512 = vadd.f32 %v2449, %v2464
      %v2513 = vadd.f32 %v2450, %v2464
      %v2514 = vadd.f32 %v2451, %v2464
      %v2515 = vadd.f32 %v2452, %v2464
      %v2516 = vadd.f32 %v2453, %v2464
      %v2517 = vadd.f32 %v2454, %v2464
      %v2518 = vadd.f32 %v2455, %v2464
      %v2519 = vadd.f32 %v2456, %v2464
      %v2520 = vadd.f32 %v2457, %v2464
      %v2521 = vadd.f32 %v2458, %v2464
      %v2522 = vmax.f32 %v2466, 0.0
      %v2523 = vmax.f32 %v2467, 0.0
      %v2524 = vmax.f32 %v2468, 0.0
      %v2525 = vmax.f32 %v2469, 0.0
      %v2526 = vmax.f32 %v2470, 0.0
      %v2527 = vmax.f32 %v2471, 0.0
      %v2528 = vmax.f32 %v2472, 0.0
      %v2529 = vmax.f32 %v2473, 0.0
      %v2530 = vmax.f32 %v2474, 0.0
      %v2531 = vmax.f32 %v2475, 0.0
      %v2532 = vmax.f32 %v2476, 0.0
      %v2533 = vmax.f32 %v2477, 0.0
      %v2534 = vmax.f32 %v2478, 0.0
      %v2535 = vmax.f32 %v2479, 0.0
      %v2536 = vmax.f32 %v2480, 0.0
      %v2537 = vmax.f32 %v2481, 0.0
      %v2538 = vmax.f32 %v2482, 0.0
      %v2539 = vmax.f32 %v2483, 0.0
      %v2540 = vmax.f32 %v2484, 0.0
      %v2541 = vmax.f32 %v2485, 0.0
      %v2542 = vmax.f32 %v2486, 0.0
      %v2543 = vmax.f32 %v2487, 0.0
      %v2544 = vmax.f32 %v2488, 0.0
      %v2545 = vmax.f32 %v2489, 0.0
      %v2546 = vmax.f32 %v2490, 0.0
      %v2547 = vmax.f32 %v2491, 0.0
      %v2548 = vmax.f32 %v2492, 0.0
      %v2549 = vmax.f32 %v2493, 0.0
      %v2550 = vmax.f32 %v2494, 0.0
      %v2551 = vmax.f32 %v2495, 0.0
      %v2552 = vmax.f32 %v2496, 0.0
      %v2553 = vmax.f32 %v2497, 0.0
      %v2554 = vmax.f32 %v2498, 0.0
      %v2555 = vmax.f32 %v2499, 0.0
      %v2556 = vmax.f32 %v2500, 0.0
      %v2557 = vmax.f32 %v2501, 0.0
      %v2558 = vmax.f32 %v2502, 0.0
      %v2559 = vmax.f32 %v2503, 0.0
      %v2560 = vmax.f32 %v2504, 0.0
      %v2561 = vmax.f32 %v2505, 0.0
      %v2562 = vmax.f32 %v2506, 0.0
      %v2563 = vmax.f32 %v2507, 0.0
      %v2564 = vmax.f32 %v2508, 0.0
      %v2565 = vmax.f32 %v2509, 0.0
      %v2566 = vmax.f32 %v2510, 0.0
      %v2567 = vmax.f32 %v2511, 0.0
      %v2568 = vmax.f32 %v2512, 0.0
      %v2569 = vmax.f32 %v2513, 0.0
      %v2570 = vmax.f32 %v2514, 0.0
      %v2571 = vmax.f32 %v2515, 0.0
      %v2572 = vmax.f32 %v2516, 0.0
      %v2573 = vmax.f32 %v2517, 0.0
      %v2574 = vmax.f32 %v2518, 0.0
      %v2575 = vmax.f32 %v2519, 0.0
      %v2576 = vmax.f32 %v2520, 0.0
      %v2577 = vmax.f32 %v2521, 0.0
      %v2578 = vld [vmem:[#allocation3 + $0x10] sm:$0xf0]
      %v2579 = vld [vmem:[#allocation3 + $0x18] sm:$0xff]
      %v2580 = vld [vmem:[#allocation3 + $0x20] sm:$0xff]
      %v2581 = vld [vmem:[#allocation3 + $0x28] sm:$0xff]
      %v2582 = vld [vmem:[#allocation3 + $0x30] sm:$0xff]
      %v2583 = vld [vmem:[#allocation3 + $0x38] sm:$0xff]
      %v2584 = vld [vmem:[#allocation3 + $0x40] sm:$0xff]
      %v2585 = vld [vmem:[#allocation3 + $0x48] sm:$0xff]
      %v2586 = vld [vmem:[#allocation3 + $0x50] sm:$0xff]
      %v2587 = vld [vmem:[#allocation3 + $0x58] sm:$0xff]
      %v2588 = vld [vmem:[#allocation3 + $0x60] sm:$0xff]
      %v2589 = vld [vmem:[#allocation3 + $0x68] sm:$0xff]
      %v2590 = vld [vmem:[#allocation3 + $0x70] sm:$0xff]
      %v2591 = vld [vmem:[#allocation3 + $0x78] sm:$0xff]
      %v2592 = vld [vmem:[#allocation3 + $0x80] sm:$0xff]
      %v2593 = vld [vmem:[#allocation3 + $0x88] sm:$0xff]
      %v2594 = vld [vmem:[#allocation3 + $0x90] sm:$0xff]
      %v2595 = vld [vmem:[#allocation3 + $0x98] sm:$0xff]
      %v2596 = vld [vmem:[#allocation3 + $0xa0] sm:$0xff]
      %v2597 = vld [vmem:[#allocation3 + $0xa8] sm:$0xff]
      %v2598 = vld [vmem:[#allocation3 + $0xb0] sm:$0xff]
      %v2599 = vld [vmem:[#allocation3 + $0xb8] sm:$0xff]
      %v2600 = vld [vmem:[#allocation3 + $0xc0] sm:$0xff]
      %v2601 = vld [vmem:[#allocation3 + $0xc8] sm:$0xff]
      %v2602 = vld [vmem:[#allocation3 + $0xd0] sm:$0xff]
      %v2603 = vld [vmem:[#allocation3 + $0xd8] sm:$0xff]
      %v2604 = vld [vmem:[#allocation3 + $0xe0] sm:$0xff]
      %v2605 = vld [vmem:[#allocation3 + $0xe8] sm:$0xff]
      %v2606 = vld [vmem:[#allocation3 + $0xf0] sm:$0xf]
      %vm2636 = vcmask 1043456
      %v2637 = vrot.slane %v2578, 4
      %v2638 = vrot.slane %v2579, 4
      %v2639 = vsel %vm2636, %v2637, %v2638
      %v2640 = vrot.slane %v2580, 4
      %v2641 = vsel %vm2636, %v2638, %v2640
      %v2642 = vrot.slane %v2581, 4
      %v2643 = vsel %vm2636, %v2640, %v2642
      %v2644 = vrot.slane %v2582, 4
      %v2645 = vsel %vm2636, %v2642, %v2644
      %v2646 = vrot.slane %v2583, 4
      %v2647 = vsel %vm2636, %v2644, %v2646
      %v2648 = vrot.slane %v2584, 4
      %v2649 = vsel %vm2636, %v2646, %v2648
      %v2650 = vrot.slane %v2585, 4
      %v2651 = vsel %vm2636, %v2648, %v2650
      %v2652 = vrot.slane %v2586, 4
      %v2653 = vsel %vm2636, %v2650, %v2652
      %v2654 = vrot.slane %v2587, 4
      %v2655 = vsel %vm2636, %v2652, %v2654
      %v2656 = vrot.slane %v2588, 4
      %v2657 = vsel %vm2636, %v2654, %v2656
      %v2658 = vrot.slane %v2589, 4
      %v2659 = vsel %vm2636, %v2656, %v2658
      %v2660 = vrot.slane %v2590, 4
      %v2661 = vsel %vm2636, %v2658, %v2660
      %v2662 = vrot.slane %v2591, 4
      %v2663 = vsel %vm2636, %v2660, %v2662
      %v2664 = vrot.slane %v2592, 4
      %v2665 = vsel %vm2636, %v2662, %v2664
      %v2666 = vrot.slane %v2593, 4
      %v2667 = vsel %vm2636, %v2664, %v2666
      %v2668 = vrot.slane %v2594, 4
      %v2669 = vsel %vm2636, %v2666, %v2668
      %v2670 = vrot.slane %v2595, 4
      %v2671 = vsel %vm2636, %v2668, %v2670
      %v2672 = vrot.slane %v2596, 4
      %v2673 = vsel %vm2636, %v2670, %v2672
      %v2674 = vrot.slane %v2597, 4
      %v2675 = vsel %vm2636, %v2672, %v2674
      %v2676 = vrot.slane %v2598, 4
      %v2677 = vsel %vm2636, %v2674, %v2676
      %v2678 = vrot.slane %v2599, 4
      %v2679 = vsel %vm2636, %v2676, %v2678
      %v2680 = vrot.slane %v2600, 4
      %v2681 = vsel %vm2636, %v2678, %v2680
      %v2682 = vrot.slane %v2601, 4
      %v2683 = vsel %vm2636, %v2680, %v2682
      %v2684 = vrot.slane %v2602, 4
      %v2685 = vsel %vm2636, %v2682, %v2684
      %v2686 = vrot.slane %v2603, 4
      %v2687 = vsel %vm2636, %v2684, %v2686
      %v2688 = vrot.slane %v2604, 4
      %v2689 = vsel %vm2636, %v2686, %v2688
      %v2690 = vrot.slane %v2605, 4
      %v2691 = vsel %vm2636, %v2688, %v2690
      %v2692 = vrot.slane %v2606, 4
      %v2693 = vsel %vm2636, %v2690, %v2692
      %v2722 = vunpack.c.l.bf16 %v2639
      %v2723 = vunpack.c.h.bf16 %v2639
      %v2724 = vunpack.c.l.bf16 %v2641
      %v2725 = vunpack.c.h.bf16 %v2641
      %v2726 = vunpack.c.l.bf16 %v2643
      %v2727 = vunpack.c.h.bf16 %v2643
      %v2728 = vunpack.c.l.bf16 %v2645
      %v2729 = vunpack.c.h.bf16 %v2645
      %v2730 = vunpack.c.l.bf16 %v2647
      %v2731 = vunpack.c.h.bf16 %v2647
      %v2732 = vunpack.c.l.bf16 %v2649
      %v2733 = vunpack.c.h.bf16 %v2649
      %v2734 = vunpack.c.l.bf16 %v2651
      %v2735 = vunpack.c.h.bf16 %v2651
      %v2736 = vunpack.c.l.bf16 %v2653
      %v2737 = vunpack.c.h.bf16 %v2653
      %v2738 = vunpack.c.l.bf16 %v2655
      %v2739 = vunpack.c.h.bf16 %v2655
      %v2740 = vunpack.c.l.bf16 %v2657
      %v2741 = vunpack.c.h.bf16 %v2657
      %v2742 = vunpack.c.l.bf16 %v2659
      %v2743 = vunpack.c.h.bf16 %v2659
      %v2744 = vunpack.c.l.bf16 %v2661
      %v2745 = vunpack.c.h.bf16 %v2661
      %v2746 = vunpack.c.l.bf16 %v2663
      %v2747 = vunpack.c.h.bf16 %v2663
      %v2748 = vunpack.c.l.bf16 %v2665
      %v2749 = vunpack.c.h.bf16 %v2665
      %v2750 = vunpack.c.l.bf16 %v2667
      %v2751 = vunpack.c.h.bf16 %v2667
      %v2752 = vunpack.c.l.bf16 %v2669
      %v2753 = vunpack.c.h.bf16 %v2669
      %v2754 = vunpack.c.l.bf16 %v2671
      %v2755 = vunpack.c.h.bf16 %v2671
      %v2756 = vunpack.c.l.bf16 %v2673
      %v2757 = vunpack.c.h.bf16 %v2673
      %v2758 = vunpack.c.l.bf16 %v2675
      %v2759 = vunpack.c.h.bf16 %v2675
      %v2760 = vunpack.c.l.bf16 %v2677
      %v2761 = vunpack.c.h.bf16 %v2677
      %v2762 = vunpack.c.l.bf16 %v2679
      %v2763 = vunpack.c.h.bf16 %v2679
      %v2764 = vunpack.c.l.bf16 %v2681
      %v2765 = vunpack.c.h.bf16 %v2681
      %v2766 = vunpack.c.l.bf16 %v2683
      %v2767 = vunpack.c.h.bf16 %v2683
      %v2768 = vunpack.c.l.bf16 %v2685
      %v2769 = vunpack.c.h.bf16 %v2685
      %v2770 = vunpack.c.l.bf16 %v2687
      %v2771 = vunpack.c.h.bf16 %v2687
      %v2772 = vunpack.c.l.bf16 %v2689
      %v2773 = vunpack.c.h.bf16 %v2689
      %v2774 = vunpack.c.l.bf16 %v2691
      %v2775 = vunpack.c.h.bf16 %v2691
      %v2776 = vunpack.c.l.bf16 %v2693
      %v2777 = vunpack.c.h.bf16 %v2693
      %2779 = vset.pattern.permute.xlu0 0
      %2780 = vperm.xlu0 %2779, %v2722
      %v2781 = vpop.permute.xlu0 %2780
      %2784 = vset.pattern.permute.xlu0 0
      %2785 = vperm.xlu0 %2784, %v2723
      %v2786 = vpop.permute.xlu0 %2785
      %2789 = vset.pattern.permute.xlu0 0
      %2790 = vperm.xlu0 %2789, %v2724
      %v2791 = vpop.permute.xlu0 %2790
      %2794 = vset.pattern.permute.xlu0 0
      %2795 = vperm.xlu0 %2794, %v2725
      %v2796 = vpop.permute.xlu0 %2795
      %2799 = vset.pattern.permute.xlu0 0
      %2800 = vperm.xlu0 %2799, %v2726
      %v2801 = vpop.permute.xlu0 %2800
      %2804 = vset.pattern.permute.xlu0 0
      %2805 = vperm.xlu0 %2804, %v2727
      %v2806 = vpop.permute.xlu0 %2805
      %2809 = vset.pattern.permute.xlu0 0
      %2810 = vperm.xlu0 %2809, %v2728
      %v2811 = vpop.permute.xlu0 %2810
      %2814 = vset.pattern.permute.xlu0 0
      %2815 = vperm.xlu0 %2814, %v2729
      %v2816 = vpop.permute.xlu0 %2815
      %2819 = vset.pattern.permute.xlu0 0
      %2820 = vperm.xlu0 %2819, %v2730
      %v2821 = vpop.permute.xlu0 %2820
      %2824 = vset.pattern.permute.xlu0 0
      %2825 = vperm.xlu0 %2824, %v2731
      %v2826 = vpop.permute.xlu0 %2825
      %2829 = vset.pattern.permute.xlu0 0
      %2830 = vperm.xlu0 %2829, %v2732
      %v2831 = vpop.permute.xlu0 %2830
      %2834 = vset.pattern.permute.xlu0 0
      %2835 = vperm.xlu0 %2834, %v2733
      %v2836 = vpop.permute.xlu0 %2835
      %2839 = vset.pattern.permute.xlu0 0
      %2840 = vperm.xlu0 %2839, %v2734
      %v2841 = vpop.permute.xlu0 %2840
      %2844 = vset.pattern.permute.xlu0 0
      %2845 = vperm.xlu0 %2844, %v2735
      %v2846 = vpop.permute.xlu0 %2845
      %2849 = vset.pattern.permute.xlu0 0
      %2850 = vperm.xlu0 %2849, %v2736
      %v2851 = vpop.permute.xlu0 %2850
      %2854 = vset.pattern.permute.xlu0 0
      %2855 = vperm.xlu0 %2854, %v2737
      %v2856 = vpop.permute.xlu0 %2855
      %2859 = vset.pattern.permute.xlu0 0
      %2860 = vperm.xlu0 %2859, %v2738
      %v2861 = vpop.permute.xlu0 %2860
      %2864 = vset.pattern.permute.xlu0 0
      %2865 = vperm.xlu0 %2864, %v2739
      %v2866 = vpop.permute.xlu0 %2865
      %2869 = vset.pattern.permute.xlu0 0
      %2870 = vperm.xlu0 %2869, %v2740
      %v2871 = vpop.permute.xlu0 %2870
      %2874 = vset.pattern.permute.xlu0 0
      %2875 = vperm.xlu0 %2874, %v2741
      %v2876 = vpop.permute.xlu0 %2875
      %2879 = vset.pattern.permute.xlu0 0
      %2880 = vperm.xlu0 %2879, %v2742
      %v2881 = vpop.permute.xlu0 %2880
      %2884 = vset.pattern.permute.xlu0 0
      %2885 = vperm.xlu0 %2884, %v2743
      %v2886 = vpop.permute.xlu0 %2885
      %2889 = vset.pattern.permute.xlu0 0
      %2890 = vperm.xlu0 %2889, %v2744
      %v2891 = vpop.permute.xlu0 %2890
      %2894 = vset.pattern.permute.xlu0 0
      %2895 = vperm.xlu0 %2894, %v2745
      %v2896 = vpop.permute.xlu0 %2895
      %2899 = vset.pattern.permute.xlu0 0
      %2900 = vperm.xlu0 %2899, %v2746
      %v2901 = vpop.permute.xlu0 %2900
      %2904 = vset.pattern.permute.xlu0 0
      %2905 = vperm.xlu0 %2904, %v2747
      %v2906 = vpop.permute.xlu0 %2905
      %2909 = vset.pattern.permute.xlu0 0
      %2910 = vperm.xlu0 %2909, %v2748
      %v2911 = vpop.permute.xlu0 %2910
      %2914 = vset.pattern.permute.xlu0 0
      %2915 = vperm.xlu0 %2914, %v2749
      %v2916 = vpop.permute.xlu0 %2915
      %2919 = vset.pattern.permute.xlu0 0
      %2920 = vperm.xlu0 %2919, %v2750
      %v2921 = vpop.permute.xlu0 %2920
      %2924 = vset.pattern.permute.xlu0 0
      %2925 = vperm.xlu0 %2924, %v2751
      %v2926 = vpop.permute.xlu0 %2925
      %2929 = vset.pattern.permute.xlu0 0
      %2930 = vperm.xlu0 %2929, %v2752
      %v2931 = vpop.permute.xlu0 %2930
      %2934 = vset.pattern.permute.xlu0 0
      %2935 = vperm.xlu0 %2934, %v2753
      %v2936 = vpop.permute.xlu0 %2935
      %2939 = vset.pattern.permute.xlu0 0
      %2940 = vperm.xlu0 %2939, %v2754
      %v2941 = vpop.permute.xlu0 %2940
      %2944 = vset.pattern.permute.xlu0 0
      %2945 = vperm.xlu0 %2944, %v2755
      %v2946 = vpop.permute.xlu0 %2945
      %2949 = vset.pattern.permute.xlu0 0
      %2950 = vperm.xlu0 %2949, %v2756
      %v2951 = vpop.permute.xlu0 %2950
      %2954 = vset.pattern.permute.xlu0 0
      %2955 = vperm.xlu0 %2954, %v2757
      %v2956 = vpop.permute.xlu0 %2955
      %2959 = vset.pattern.permute.xlu0 0
      %2960 = vperm.xlu0 %2959, %v2758
      %v2961 = vpop.permute.xlu0 %2960
      %2964 = vset.pattern.permute.xlu0 0
      %2965 = vperm.xlu0 %2964, %v2759
      %v2966 = vpop.permute.xlu0 %2965
      %2969 = vset.pattern.permute.xlu0 0
      %2970 = vperm.xlu0 %2969, %v2760
      %v2971 = vpop.permute.xlu0 %2970
      %2974 = vset.pattern.permute.xlu0 0
      %2975 = vperm.xlu0 %2974, %v2761
      %v2976 = vpop.permute.xlu0 %2975
      %2979 = vset.pattern.permute.xlu0 0
      %2980 = vperm.xlu0 %2979, %v2762
      %v2981 = vpop.permute.xlu0 %2980
      %2984 = vset.pattern.permute.xlu0 0
      %2985 = vperm.xlu0 %2984, %v2763
      %v2986 = vpop.permute.xlu0 %2985
      %2989 = vset.pattern.permute.xlu0 0
      %2990 = vperm.xlu0 %2989, %v2764
      %v2991 = vpop.permute.xlu0 %2990
      %2994 = vset.pattern.permute.xlu0 0
      %2995 = vperm.xlu0 %2994, %v2765
      %v2996 = vpop.permute.xlu0 %2995
      %2999 = vset.pattern.permute.xlu0 0
      %3000 = vperm.xlu0 %2999, %v2766
      %v3001 = vpop.permute.xlu0 %3000
      %3004 = vset.pattern.permute.xlu0 0
      %3005 = vperm.xlu0 %3004, %v2767
      %v3006 = vpop.permute.xlu0 %3005
      %3009 = vset.pattern.permute.xlu0 0
      %3010 = vperm.xlu0 %3009, %v2768
      %v3011 = vpop.permute.xlu0 %3010
      %3014 = vset.pattern.permute.xlu0 0
      %3015 = vperm.xlu0 %3014, %v2769
      %v3016 = vpop.permute.xlu0 %3015
      %3019 = vset.pattern.permute.xlu0 0
      %3020 = vperm.xlu0 %3019, %v2770
      %v3021 = vpop.permute.xlu0 %3020
      %3024 = vset.pattern.permute.xlu0 0
      %3025 = vperm.xlu0 %3024, %v2771
      %v3026 = vpop.permute.xlu0 %3025
      %3029 = vset.pattern.permute.xlu0 0
      %3030 = vperm.xlu0 %3029, %v2772
      %v3031 = vpop.permute.xlu0 %3030
      %3034 = vset.pattern.permute.xlu0 0
      %3035 = vperm.xlu0 %3034, %v2773
      %v3036 = vpop.permute.xlu0 %3035
      %3039 = vset.pattern.permute.xlu0 0
      %3040 = vperm.xlu0 %3039, %v2774
      %v3041 = vpop.permute.xlu0 %3040
      %3044 = vset.pattern.permute.xlu0 0
      %3045 = vperm.xlu0 %3044, %v2775
      %v3046 = vpop.permute.xlu0 %3045
      %3049 = vset.pattern.permute.xlu0 0
      %3050 = vperm.xlu0 %3049, %v2776
      %v3051 = vpop.permute.xlu0 %3050
      %3054 = vset.pattern.permute.xlu0 0
      %3055 = vperm.xlu0 %3054, %v2777
      %v3056 = vpop.permute.xlu0 %3055
      %v3058 = vmul.f32 %v2522, %v2781
      %v3059 = vmul.f32 %v2523, %v2786
      %v3060 = vmul.f32 %v2524, %v2791
      %v3061 = vmul.f32 %v2525, %v2796
      %v3062 = vmul.f32 %v2526, %v2801
      %v3063 = vmul.f32 %v2527, %v2806
      %v3064 = vmul.f32 %v2528, %v2811
      %v3065 = vmul.f32 %v2529, %v2816
      %v3066 = vmul.f32 %v2530, %v2821
      %v3067 = vmul.f32 %v2531, %v2826
      %v3068 = vmul.f32 %v2532, %v2831
      %v3069 = vmul.f32 %v2533, %v2836
      %v3070 = vmul.f32 %v2534, %v2841
      %v3071 = vmul.f32 %v2535, %v2846
      %v3072 = vmul.f32 %v2536, %v2851
      %v3073 = vmul.f32 %v2537, %v2856
      %v3074 = vmul.f32 %v2538, %v2861
      %v3075 = vmul.f32 %v2539, %v2866
      %v3076 = vmul.f32 %v2540, %v2871
      %v3077 = vmul.f32 %v2541, %v2876
      %v3078 = vmul.f32 %v2542, %v2881
      %v3079 = vmul.f32 %v2543, %v2886
      %v3080 = vmul.f32 %v2544, %v2891
      %v3081 = vmul.f32 %v2545, %v2896
      %v3082 = vmul.f32 %v2546, %v2901
      %v3083 = vmul.f32 %v2547, %v2906
      %v3084 = vmul.f32 %v2548, %v2911
      %v3085 = vmul.f32 %v2549, %v2916
      %v3086 = vmul.f32 %v2550, %v2921
      %v3087 = vmul.f32 %v2551, %v2926
      %v3088 = vmul.f32 %v2552, %v2931
      %v3089 = vmul.f32 %v2553, %v2936
      %v3090 = vmul.f32 %v2554, %v2941
      %v3091 = vmul.f32 %v2555, %v2946
      %v3092 = vmul.f32 %v2556, %v2951
      %v3093 = vmul.f32 %v2557, %v2956
      %v3094 = vmul.f32 %v2558, %v2961
      %v3095 = vmul.f32 %v2559, %v2966
      %v3096 = vmul.f32 %v2560, %v2971
      %v3097 = vmul.f32 %v2561, %v2976
      %v3098 = vmul.f32 %v2562, %v2981
      %v3099 = vmul.f32 %v2563, %v2986
      %v3100 = vmul.f32 %v2564, %v2991
      %v3101 = vmul.f32 %v2565, %v2996
      %v3102 = vmul.f32 %v2566, %v3001
      %v3103 = vmul.f32 %v2567, %v3006
      %v3104 = vmul.f32 %v2568, %v3011
      %v3105 = vmul.f32 %v2569, %v3016
      %v3106 = vmul.f32 %v2570, %v3021
      %v3107 = vmul.f32 %v2571, %v3026
      %v3108 = vmul.f32 %v2572, %v3031
      %v3109 = vmul.f32 %v2573, %v3036
      %v3110 = vmul.f32 %v2574, %v3041
      %v3111 = vmul.f32 %v2575, %v3046
      %v3112 = vmul.f32 %v2576, %v3051
      %v3113 = vmul.f32 %v2577, %v3056
      %v3114 = vpack.c.bf16 %v3059, %v3058
      %v3115 = vpack.c.bf16 %v3061, %v3060
      %v3116 = vpack.c.bf16 %v3063, %v3062
      %v3117 = vpack.c.bf16 %v3065, %v3064
      %v3118 = vpack.c.bf16 %v3067, %v3066
      %v3119 = vpack.c.bf16 %v3069, %v3068
      %v3120 = vpack.c.bf16 %v3071, %v3070
      %v3121 = vpack.c.bf16 %v3073, %v3072
      %v3122 = vpack.c.bf16 %v3075, %v3074
      %v3123 = vpack.c.bf16 %v3077, %v3076
      %v3124 = vpack.c.bf16 %v3079, %v3078
      %v3125 = vpack.c.bf16 %v3081, %v3080
      %v3126 = vpack.c.bf16 %v3083, %v3082
      %v3127 = vpack.c.bf16 %v3085, %v3084
      %v3128 = vpack.c.bf16 %v3087, %v3086
      %v3129 = vpack.c.bf16 %v3089, %v3088
      %v3130 = vpack.c.bf16 %v3091, %v3090
      %v3131 = vpack.c.bf16 %v3093, %v3092
      %v3132 = vpack.c.bf16 %v3095, %v3094
      %v3133 = vpack.c.bf16 %v3097, %v3096
      %v3134 = vpack.c.bf16 %v3099, %v3098
      %v3135 = vpack.c.bf16 %v3101, %v3100
      %v3136 = vpack.c.bf16 %v3103, %v3102
      %v3137 = vpack.c.bf16 %v3105, %v3104
      %v3138 = vpack.c.bf16 %v3107, %v3106
      %v3139 = vpack.c.bf16 %v3109, %v3108
      %v3140 = vpack.c.bf16 %v3111, %v3110
      %v3141 = vpack.c.bf16 %v3113, %v3112
      %v3143 = vshrl.u32 %v3114, 16
      %v3145 = vshll.u32 %v3114, 16
      %v3147 = vrot.slane %v3145, 1
      %v3148 = vor.u32 %v3143, %v3147
      %v3150 = vshll.u32 %v3115, 16
      %v3152 = vrot.slane %v3150, 1
      %v3153 = vsel %vm466, %v3148, %v3152
      %v3154 = vshrl.u32 %v3115, 16
      %v3156 = vor.u32 %v3154, %v3152
      %v3158 = vshll.u32 %v3116, 16
      %v3160 = vrot.slane %v3158, 1
      %v3161 = vsel %vm466, %v3156, %v3160
      %v3162 = vshrl.u32 %v3116, 16
      %v3164 = vor.u32 %v3162, %v3160
      %v3166 = vshll.u32 %v3117, 16
      %v3168 = vrot.slane %v3166, 1
      %v3169 = vsel %vm466, %v3164, %v3168
      %v3170 = vshrl.u32 %v3117, 16
      %v3172 = vor.u32 %v3170, %v3168
      %v3174 = vshll.u32 %v3118, 16
      %v3176 = vrot.slane %v3174, 1
      %v3177 = vsel %vm466, %v3172, %v3176
      %v3178 = vshrl.u32 %v3118, 16
      %v3180 = vor.u32 %v3178, %v3176
      %v3182 = vshll.u32 %v3119, 16
      %v3184 = vrot.slane %v3182, 1
      %v3185 = vsel %vm466, %v3180, %v3184
      %v3186 = vshrl.u32 %v3119, 16
      %v3188 = vor.u32 %v3186, %v3184
      %v3190 = vshll.u32 %v3120, 16
      %v3192 = vrot.slane %v3190, 1
      %v3193 = vsel %vm466, %v3188, %v3192
      %v3194 = vshrl.u32 %v3120, 16
      %v3196 = vor.u32 %v3194, %v3192
      %v3198 = vshll.u32 %v3121, 16
      %v3200 = vrot.slane %v3198, 1
      %v3201 = vsel %vm466, %v3196, %v3200
      %v3202 = vshrl.u32 %v3121, 16
      %v3204 = vor.u32 %v3202, %v3200
      %v3206 = vshll.u32 %v3122, 16
      %v3208 = vrot.slane %v3206, 1
      %v3209 = vsel %vm466, %v3204, %v3208
      %v3210 = vshrl.u32 %v3122, 16
      %v3212 = vor.u32 %v3210, %v3208
      %v3214 = vshll.u32 %v3123, 16
      %v3216 = vrot.slane %v3214, 1
      %v3217 = vsel %vm466, %v3212, %v3216
      %v3218 = vshrl.u32 %v3123, 16
      %v3220 = vor.u32 %v3218, %v3216
      %v3222 = vshll.u32 %v3124, 16
      %v3224 = vrot.slane %v3222, 1
      %v3225 = vsel %vm466, %v3220, %v3224
      %v3226 = vshrl.u32 %v3124, 16
      %v3228 = vor.u32 %v3226, %v3224
      %v3230 = vshll.u32 %v3125, 16
      %v3232 = vrot.slane %v3230, 1
      %v3233 = vsel %vm466, %v3228, %v3232
      %v3234 = vshrl.u32 %v3125, 16
      %v3236 = vor.u32 %v3234, %v3232
      %v3238 = vshll.u32 %v3126, 16
      %v3240 = vrot.slane %v3238, 1
      %v3241 = vsel %vm466, %v3236, %v3240
      %v3242 = vshrl.u32 %v3126, 16
      %v3244 = vor.u32 %v3242, %v3240
      %v3246 = vshll.u32 %v3127, 16
      %v3248 = vrot.slane %v3246, 1
      %v3249 = vsel %vm466, %v3244, %v3248
      %v3250 = vshrl.u32 %v3127, 16
      %v3252 = vor.u32 %v3250, %v3248
      %v3254 = vshll.u32 %v3128, 16
      %v3256 = vrot.slane %v3254, 1
      %v3257 = vsel %vm466, %v3252, %v3256
      %v3258 = vshrl.u32 %v3128, 16
      %v3260 = vor.u32 %v3258, %v3256
      %v3262 = vshll.u32 %v3129, 16
      %v3264 = vrot.slane %v3262, 1
      %v3265 = vsel %vm466, %v3260, %v3264
      %v3266 = vshrl.u32 %v3129, 16
      %v3268 = vor.u32 %v3266, %v3264
      %v3270 = vshll.u32 %v3130, 16
      %v3272 = vrot.slane %v3270, 1
      %v3273 = vsel %vm466, %v3268, %v3272
      %v3274 = vshrl.u32 %v3130, 16
      %v3276 = vor.u32 %v3274, %v3272
      %v3278 = vshll.u32 %v3131, 16
      %v3280 = vrot.slane %v3278, 1
      %v3281 = vsel %vm466, %v3276, %v3280
      %v3282 = vshrl.u32 %v3131, 16
      %v3284 = vor.u32 %v3282, %v3280
      %v3286 = vshll.u32 %v3132, 16
      %v3288 = vrot.slane %v3286, 1
      %v3289 = vsel %vm466, %v3284, %v3288
      %v3290 = vshrl.u32 %v3132, 16
      %v3292 = vor.u32 %v3290, %v3288
      %v3294 = vshll.u32 %v3133, 16
      %v3296 = vrot.slane %v3294, 1
      %v3297 = vsel %vm466, %v3292, %v3296
      %v3298 = vshrl.u32 %v3133, 16
      %v3300 = vor.u32 %v3298, %v3296
      %v3302 = vshll.u32 %v3134, 16
      %v3304 = vrot.slane %v3302, 1
      %v3305 = vsel %vm466, %v3300, %v3304
      %v3306 = vshrl.u32 %v3134, 16
      %v3308 = vor.u32 %v3306, %v3304
      %v3310 = vshll.u32 %v3135, 16
      %v3312 = vrot.slane %v3310, 1
      %v3313 = vsel %vm466, %v3308, %v3312
      %v3314 = vshrl.u32 %v3135, 16
      %v3316 = vor.u32 %v3314, %v3312
      %v3318 = vshll.u32 %v3136, 16
      %v3320 = vrot.slane %v3318, 1
      %v3321 = vsel %vm466, %v3316, %v3320
      %v3322 = vshrl.u32 %v3136, 16
      %v3324 = vor.u32 %v3322, %v3320
      %v3326 = vshll.u32 %v3137, 16
      %v3328 = vrot.slane %v3326, 1
      %v3329 = vsel %vm466, %v3324, %v3328
      %v3330 = vshrl.u32 %v3137, 16
      %v3332 = vor.u32 %v3330, %v3328
      %v3334 = vshll.u32 %v3138, 16
      %v3336 = vrot.slane %v3334, 1
      %v3337 = vsel %vm466, %v3332, %v3336
      %v3338 = vshrl.u32 %v3138, 16
      %v3340 = vor.u32 %v3338, %v3336
      %v3342 = vshll.u32 %v3139, 16
      %v3344 = vrot.slane %v3342, 1
      %v3345 = vsel %vm466, %v3340, %v3344
      %v3346 = vshrl.u32 %v3139, 16
      %v3348 = vor.u32 %v3346, %v3344
      %v3350 = vshll.u32 %v3140, 16
      %v3352 = vrot.slane %v3350, 1
      %v3353 = vsel %vm466, %v3348, %v3352
      %v3354 = vshrl.u32 %v3140, 16
      %v3356 = vor.u32 %v3354, %v3352
      %v3358 = vshll.u32 %v3141, 16
      %v3360 = vrot.slane %v3358, 1
      %v3361 = vsel %vm466, %v3356, %v3360
      %v3362 = vshrl.u32 %v3141, 16
      %v3364 = vor.u32 %v3362, %v3360
      %v3393 = vrot.slane %v3114, 1
      %v3394 = vrot.slane %v3115, 1
      %v3395 = vsel %vm810, %v3393, %v3394
      %v3396 = vrot.slane %v3116, 1
      %v3397 = vsel %vm810, %v3394, %v3396
      %v3398 = vrot.slane %v3117, 1
      %v3399 = vsel %vm810, %v3396, %v3398
      %v3400 = vrot.slane %v3118, 1
      %v3401 = vsel %vm810, %v3398, %v3400
      %v3402 = vrot.slane %v3119, 1
      %v3403 = vsel %vm810, %v3400, %v3402
      %v3404 = vrot.slane %v3120, 1
      %v3405 = vsel %vm810, %v3402, %v3404
      %v3406 = vrot.slane %v3121, 1
      %v3407 = vsel %vm810, %v3404, %v3406
      %v3408 = vrot.slane %v3122, 1
      %v3409 = vsel %vm810, %v3406, %v3408
      %v3410 = vrot.slane %v3123, 1
      %v3411 = vsel %vm810, %v3408, %v3410
      %v3412 = vrot.slane %v3124, 1
      %v3413 = vsel %vm810, %v3410, %v3412
      %v3414 = vrot.slane %v3125, 1
      %v3415 = vsel %vm810, %v3412, %v3414
      %v3416 = vrot.slane %v3126, 1
      %v3417 = vsel %vm810, %v3414, %v3416
      %v3418 = vrot.slane %v3127, 1
      %v3419 = vsel %vm810, %v3416, %v3418
      %v3420 = vrot.slane %v3128, 1
      %v3421 = vsel %vm810, %v3418, %v3420
      %v3422 = vrot.slane %v3129, 1
      %v3423 = vsel %vm810, %v3420, %v3422
      %v3424 = vrot.slane %v3130, 1
      %v3425 = vsel %vm810, %v3422, %v3424
      %v3426 = vrot.slane %v3131, 1
      %v3427 = vsel %vm810, %v3424, %v3426
      %v3428 = vrot.slane %v3132, 1
      %v3429 = vsel %vm810, %v3426, %v3428
      %v3430 = vrot.slane %v3133, 1
      %v3431 = vsel %vm810, %v3428, %v3430
      %v3432 = vrot.slane %v3134, 1
      %v3433 = vsel %vm810, %v3430, %v3432
      %v3434 = vrot.slane %v3135, 1
      %v3435 = vsel %vm810, %v3432, %v3434
      %v3436 = vrot.slane %v3136, 1
      %v3437 = vsel %vm810, %v3434, %v3436
      %v3438 = vrot.slane %v3137, 1
      %v3439 = vsel %vm810, %v3436, %v3438
      %v3440 = vrot.slane %v3138, 1
      %v3441 = vsel %vm810, %v3438, %v3440
      %v3442 = vrot.slane %v3139, 1
      %v3443 = vsel %vm810, %v3440, %v3442
      %v3444 = vrot.slane %v3140, 1
      %v3445 = vsel %vm810, %v3442, %v3444
      %v3446 = vrot.slane %v3141, 1
      %v3447 = vsel %vm810, %v3444, %v3446
      %v3448 = vld [vmem:[%s4] sm:$0xf]
      %v3449 = vld [vmem:[%s4 + $0x4] sm:$0xf]
      %v3450 = vld [vmem:[%s4 + $0x8] sm:$0xf]
      %v3451 = vld [vmem:[%s4 + $0xc] sm:$0xf]
      %v3452 = vld [vmem:[%s4 + $0x10] sm:$0xf]
      %v3453 = vld [vmem:[%s4 + $0x14] sm:$0xf]
      %v3454 = vld [vmem:[%s4 + $0x18] sm:$0xf]
      %v3455 = vld [vmem:[%s4 + $0x1c] sm:$0xf]
      %v3456 = vld [vmem:[%s4 + $0x20] sm:$0xf]
      %v3457 = vld [vmem:[%s4 + $0x24] sm:$0xf]
      %v3458 = vld [vmem:[%s4 + $0x28] sm:$0xf]
      %v3459 = vld [vmem:[%s4 + $0x2c] sm:$0xf]
      %v3460 = vld [vmem:[%s4 + $0x30] sm:$0xf]
      %v3461 = vld [vmem:[%s4 + $0x34] sm:$0xf]
      %v3462 = vld [vmem:[%s4 + $0x38] sm:$0xf]
      %v3463 = vld [vmem:[%s4 + $0x3c] sm:$0xf]
      %v3464 = vld [vmem:[%s4 + $0x40] sm:$0xf]
      %v3465 = vld [vmem:[%s4 + $0x44] sm:$0xf]
      %v3466 = vld [vmem:[%s4 + $0x48] sm:$0xf]
      %v3467 = vld [vmem:[%s4 + $0x4c] sm:$0xf]
      %v3468 = vld [vmem:[%s4 + $0x50] sm:$0xf]
      %v3469 = vld [vmem:[%s4 + $0x54] sm:$0xf]
      %v3470 = vld [vmem:[%s4 + $0x58] sm:$0xf]
      %v3471 = vld [vmem:[%s4 + $0x5c] sm:$0xf]
      %v3472 = vld [vmem:[%s4 + $0x60] sm:$0xf]
      %v3473 = vld [vmem:[%s4 + $0x64] sm:$0xf]
      %v3474 = vld [vmem:[%s4 + $0x68] sm:$0xf]
      %v3475 = vld [vmem:[%s4 + $0x6c] sm:$0xf]
      %v3476 = vld [vmem:[%s4 + $0x70] sm:$0xf]
      %v3477 = vld [vmem:[%s4 + $0x74] sm:$0xf]
      %v3478 = vld [vmem:[%s4 + $0x78] sm:$0xf]
      %v3479 = vld [vmem:[%s4 + $0x7c] sm:$0xf]
      %v3480 = vld [vmem:[%s4 + $0x80] sm:$0xf]
      %v3481 = vld [vmem:[%s4 + $0x84] sm:$0xf]
      %v3482 = vld [vmem:[%s4 + $0x88] sm:$0xf]
      %v3483 = vld [vmem:[%s4 + $0x8c] sm:$0xf]
      %v3484 = vld [vmem:[%s4 + $0x90] sm:$0xf]
      %v3485 = vld [vmem:[%s4 + $0x94] sm:$0xf]
      %v3486 = vld [vmem:[%s4 + $0x98] sm:$0xf]
      %v3487 = vld [vmem:[%s4 + $0x9c] sm:$0xf]
      %v3488 = vld [vmem:[%s4 + $0xa0] sm:$0xf]
      %v3489 = vld [vmem:[%s4 + $0xa4] sm:$0xf]
      %v3490 = vld [vmem:[%s4 + $0xa8] sm:$0xf]
      %v3491 = vld [vmem:[%s4 + $0xac] sm:$0xf]
      %v3492 = vld [vmem:[%s4 + $0xb0] sm:$0xf]
      %v3493 = vld [vmem:[%s4 + $0xb4] sm:$0xf]
      %v3494 = vld [vmem:[%s4 + $0xb8] sm:$0xf]
      %v3495 = vld [vmem:[%s4 + $0xbc] sm:$0xf]
      %s3496 = scalar_lea.vmem %s4, 192
      %v3497 = vld [vmem:[%s3496] sm:$0xf]
      %v3498 = vld [vmem:[%s3496 + $0x4] sm:$0xf]
      %v3499 = vld [vmem:[%s3496 + $0x8] sm:$0xf]
      %v3500 = vld [vmem:[%s3496 + $0xc] sm:$0xf]
      %v3501 = vld [vmem:[%s3496 + $0x10] sm:$0xf]
      %v3502 = vld [vmem:[%s3496 + $0x14] sm:$0xf]
      %v3503 = vld [vmem:[%s3496 + $0x18] sm:$0xf]
      %v3504 = vld [vmem:[%s3496 + $0x1c] sm:$0xf]
      %v3505 = vld [vmem:[%s3496 + $0x20] sm:$0xf]
      %v3506 = vld [vmem:[%s3496 + $0x24] sm:$0xf]
      %v3507 = vld [vmem:[%s3496 + $0x28] sm:$0xf]
      %v3508 = vld [vmem:[%s3496 + $0x2c] sm:$0xf]
      %v3509 = vld [vmem:[%s3496 + $0x30] sm:$0xf]
      %v3510 = vld [vmem:[%s3496 + $0x34] sm:$0xf]
      %v3511 = vld [vmem:[%s3496 + $0x38] sm:$0xf]
      %v3512 = vld [vmem:[%s3496 + $0x3c] sm:$0xf]
      %v3513 = vld [vmem:[%s3496 + $0x40] sm:$0xf]
      %v3514 = vld [vmem:[%s3496 + $0x44] sm:$0xf]
      %v3515 = vld [vmem:[%s3496 + $0x48] sm:$0xf]
      %v3516 = vld [vmem:[%s3496 + $0x4c] sm:$0xf]
      %v3517 = vld [vmem:[%s3496 + $0x50] sm:$0xf]
      %v3518 = vld [vmem:[%s3496 + $0x54] sm:$0xf]
      %v3519 = vld [vmem:[%s3496 + $0x58] sm:$0xf]
      %v3520 = vld [vmem:[%s3496 + $0x5c] sm:$0xf]
      %v3521 = vld [vmem:[%s3496 + $0x60] sm:$0xf]
      %v3522 = vld [vmem:[%s3496 + $0x64] sm:$0xf]
      %v3523 = vld [vmem:[%s3496 + $0x68] sm:$0xf]
      %v3524 = vld [vmem:[%s3496 + $0x6c] sm:$0xf]
      %v3525 = vld [vmem:[%s3496 + $0x70] sm:$0xf]
      %v3526 = vld [vmem:[%s3496 + $0x74] sm:$0xf]
      %v3527 = vld [vmem:[%s3496 + $0x78] sm:$0xf]
      %v3528 = vld [vmem:[%s3496 + $0x7c] sm:$0xf]
      %v3529 = vld [vmem:[%s3496 + $0x80] sm:$0xf]
      %v3530 = vld [vmem:[%s3496 + $0x84] sm:$0xf]
      %v3531 = vld [vmem:[%s3496 + $0x88] sm:$0xf]
      %v3532 = vld [vmem:[%s3496 + $0x8c] sm:$0xf]
      %v3533 = vld [vmem:[%s3496 + $0x90] sm:$0xf]
      %v3534 = vld [vmem:[%s3496 + $0x94] sm:$0xf]
      %v3535 = vld [vmem:[%s3496 + $0x98] sm:$0xf]
      %v3536 = vld [vmem:[%s3496 + $0x9c] sm:$0xf]
      %v3537 = vld [vmem:[%s3496 + $0xa0] sm:$0xf]
      %v3538 = vld [vmem:[%s3496 + $0xa4] sm:$0xf]
      %v3539 = vld [vmem:[%s3496 + $0xa8] sm:$0xf]
      %v3540 = vld [vmem:[%s3496 + $0xac] sm:$0xf]
      %v3541 = vld [vmem:[%s3496 + $0xb0] sm:$0xf]
      %v3542 = vld [vmem:[%s3496 + $0xb4] sm:$0xf]
      %v3543 = vld [vmem:[%s3496 + $0xb8] sm:$0xf]
      %v3544 = vld [vmem:[%s3496 + $0xbc] sm:$0xf]
      %v3545 = vrot.slane %v3154, 7
      %v3546 = vrot.slane %v3162, 7
      %v3547 = vor.u32 %v3546, %v3158
      %v3548 = vsel %vm1663, %v3545, %v3547
      %v3550 = vshrl.u32 %v3161, 16
      %v3552 = vrot.slane %v3550, 7
      %v3554 = vshrl.u32 %v3169, 16
      %v3556 = vrot.slane %v3554, 7
      %v3557 = vshll.u32 %v3169, 16
      %v3559 = vor.u32 %v3556, %v3557
      %v3560 = vsel %vm1663, %v3552, %v3559
      %v3562 = vshrl.u32 %v3397, 16
      %v3564 = vrot.slane %v3562, 7
      %v3566 = vshrl.u32 %v3399, 16
      %v3568 = vrot.slane %v3566, 7
      %v3569 = vshll.u32 %v3399, 16
      %v3571 = vor.u32 %v3568, %v3569
      %v3572 = vsel %vm1663, %v3564, %v3571
      %v3573 = vrot.slane %v3170, 7
      %v3574 = vor.u32 %v3573, %v3166
      %v3575 = vsel %vm1663, %v3546, %v3574
      %v3577 = vshrl.u32 %v3177, 16
      %v3579 = vrot.slane %v3577, 7
      %v3580 = vshll.u32 %v3177, 16
      %v3582 = vor.u32 %v3579, %v3580
      %v3583 = vsel %vm1663, %v3556, %v3582
      %v3585 = vshrl.u32 %v3401, 16
      %v3587 = vrot.slane %v3585, 7
      %v3588 = vshll.u32 %v3401, 16
      %v3590 = vor.u32 %v3587, %v3588
      %v3591 = vsel %vm1663, %v3568, %v3590
      %v3592 = vrot.slane %v3178, 7
      %v3593 = vor.u32 %v3592, %v3174
      %v3594 = vsel %vm1663, %v3573, %v3593
      %v3596 = vshrl.u32 %v3185, 16
      %v3598 = vrot.slane %v3596, 7
      %v3599 = vshll.u32 %v3185, 16
      %v3601 = vor.u32 %v3598, %v3599
      %v3602 = vsel %vm1663, %v3579, %v3601
      %v3604 = vshrl.u32 %v3403, 16
      %v3606 = vrot.slane %v3604, 7
      %v3607 = vshll.u32 %v3403, 16
      %v3609 = vor.u32 %v3606, %v3607
      %v3610 = vsel %vm1663, %v3587, %v3609
      %v3611 = vrot.slane %v3186, 7
      %v3612 = vor.u32 %v3611, %v3182
      %v3613 = vsel %vm1663, %v3592, %v3612
      %v3615 = vshrl.u32 %v3193, 16
      %v3617 = vrot.slane %v3615, 7
      %v3618 = vshll.u32 %v3193, 16
      %v3620 = vor.u32 %v3617, %v3618
      %v3621 = vsel %vm1663, %v3598, %v3620
      %v3623 = vshrl.u32 %v3405, 16
      %v3625 = vrot.slane %v3623, 7
      %v3626 = vshll.u32 %v3405, 16
      %v3628 = vor.u32 %v3625, %v3626
      %v3629 = vsel %vm1663, %v3606, %v3628
      %v3630 = vrot.slane %v3194, 7
      %v3631 = vor.u32 %v3630, %v3190
      %v3632 = vsel %vm1663, %v3611, %v3631
      %v3634 = vshrl.u32 %v3201, 16
      %v3636 = vrot.slane %v3634, 7
      %v3637 = vshll.u32 %v3201, 16
      %v3639 = vor.u32 %v3636, %v3637
      %v3640 = vsel %vm1663, %v3617, %v3639
      %v3642 = vshrl.u32 %v3407, 16
      %v3644 = vrot.slane %v3642, 7
      %v3645 = vshll.u32 %v3407, 16
      %v3647 = vor.u32 %v3644, %v3645
      %v3648 = vsel %vm1663, %v3625, %v3647
      %v3649 = vrot.slane %v3202, 7
      %v3650 = vor.u32 %v3649, %v3198
      %v3651 = vsel %vm1663, %v3630, %v3650
      %v3653 = vshrl.u32 %v3209, 16
      %v3655 = vrot.slane %v3653, 7
      %v3656 = vshll.u32 %v3209, 16
      %v3658 = vor.u32 %v3655, %v3656
      %v3659 = vsel %vm1663, %v3636, %v3658
      %v3661 = vshrl.u32 %v3409, 16
      %v3663 = vrot.slane %v3661, 7
      %v3664 = vshll.u32 %v3409, 16
      %v3666 = vor.u32 %v3663, %v3664
      %v3667 = vsel %vm1663, %v3644, %v3666
      %v3668 = vrot.slane %v3210, 7
      %v3669 = vor.u32 %v3668, %v3206
      %v3670 = vsel %vm1663, %v3649, %v3669
      %v3672 = vshrl.u32 %v3217, 16
      %v3674 = vrot.slane %v3672, 7
      %v3675 = vshll.u32 %v3217, 16
      %v3677 = vor.u32 %v3674, %v3675
      %v3678 = vsel %vm1663, %v3655, %v3677
      %v3680 = vshrl.u32 %v3411, 16
      %v3682 = vrot.slane %v3680, 7
      %v3683 = vshll.u32 %v3411, 16
      %v3685 = vor.u32 %v3682, %v3683
      %v3686 = vsel %vm1663, %v3663, %v3685
      %v3687 = vrot.slane %v3218, 7
      %v3688 = vor.u32 %v3687, %v3214
      %v3689 = vsel %vm1663, %v3668, %v3688
      %v3691 = vshrl.u32 %v3225, 16
      %v3693 = vrot.slane %v3691, 7
      %v3694 = vshll.u32 %v3225, 16
      %v3696 = vor.u32 %v3693, %v3694
      %v3697 = vsel %vm1663, %v3674, %v3696
      %v3699 = vshrl.u32 %v3413, 16
      %v3701 = vrot.slane %v3699, 7
      %v3702 = vshll.u32 %v3413, 16
      %v3704 = vor.u32 %v3701, %v3702
      %v3705 = vsel %vm1663, %v3682, %v3704
      %v3706 = vrot.slane %v3226, 7
      %v3707 = vor.u32 %v3706, %v3222
      %v3708 = vsel %vm1663, %v3687, %v3707
      %v3710 = vshrl.u32 %v3233, 16
      %v3712 = vrot.slane %v3710, 7
      %v3713 = vshll.u32 %v3233, 16
      %v3715 = vor.u32 %v3712, %v3713
      %v3716 = vsel %vm1663, %v3693, %v3715
      %v3718 = vshrl.u32 %v3415, 16
      %v3720 = vrot.slane %v3718, 7
      %v3721 = vshll.u32 %v3415, 16
      %v3723 = vor.u32 %v3720, %v3721
      %v3724 = vsel %vm1663, %v3701, %v3723
      %v3725 = vrot.slane %v3234, 7
      %v3726 = vor.u32 %v3725, %v3230
      %v3727 = vsel %vm1663, %v3706, %v3726
      %v3729 = vshrl.u32 %v3241, 16
      %v3731 = vrot.slane %v3729, 7
      %v3732 = vshll.u32 %v3241, 16
      %v3734 = vor.u32 %v3731, %v3732
      %v3735 = vsel %vm1663, %v3712, %v3734
      %v3737 = vshrl.u32 %v3417, 16
      %v3739 = vrot.slane %v3737, 7
      %v3740 = vshll.u32 %v3417, 16
      %v3742 = vor.u32 %v3739, %v3740
      %v3743 = vsel %vm1663, %v3720, %v3742
      %v3744 = vrot.slane %v3242, 7
      %v3745 = vor.u32 %v3744, %v3238
      %v3746 = vsel %vm1663, %v3725, %v3745
      %v3748 = vshrl.u32 %v3249, 16
      %v3750 = vrot.slane %v3748, 7
      %v3751 = vshll.u32 %v3249, 16
      %v3753 = vor.u32 %v3750, %v3751
      %v3754 = vsel %vm1663, %v3731, %v3753
      %v3756 = vshrl.u32 %v3419, 16
      %v3758 = vrot.slane %v3756, 7
      %v3759 = vshll.u32 %v3419, 16
      %v3761 = vor.u32 %v3758, %v3759
      %v3762 = vsel %vm1663, %v3739, %v3761
      %v3763 = vrot.slane %v3250, 7
      %v3764 = vor.u32 %v3763, %v3246
      %v3765 = vsel %vm1663, %v3744, %v3764
      %v3767 = vshrl.u32 %v3257, 16
      %v3769 = vrot.slane %v3767, 7
      %v3770 = vshll.u32 %v3257, 16
      %v3772 = vor.u32 %v3769, %v3770
      %v3773 = vsel %vm1663, %v3750, %v3772
      %v3775 = vshrl.u32 %v3421, 16
      %v3777 = vrot.slane %v3775, 7
      %v3778 = vshll.u32 %v3421, 16
      %v3780 = vor.u32 %v3777, %v3778
      %v3781 = vsel %vm1663, %v3758, %v3780
      %v3782 = vrot.slane %v3258, 7
      %v3783 = vor.u32 %v3782, %v3254
      %v3784 = vsel %vm1663, %v3763, %v3783
      %v3786 = vshrl.u32 %v3265, 16
      %v3788 = vrot.slane %v3786, 7
      %v3789 = vshll.u32 %v3265, 16
      %v3791 = vor.u32 %v3788, %v3789
      %v3792 = vsel %vm1663, %v3769, %v3791
      %v3794 = vshrl.u32 %v3423, 16
      %v3796 = vrot.slane %v3794, 7
      %v3797 = vshll.u32 %v3423, 16
      %v3799 = vor.u32 %v3796, %v3797
      %v3800 = vsel %vm1663, %v3777, %v3799
      %v3801 = vrot.slane %v3266, 7
      %v3802 = vor.u32 %v3801, %v3262
      %v3803 = vsel %vm1663, %v3782, %v3802
      %v3805 = vshrl.u32 %v3273, 16
      %v3807 = vrot.slane %v3805, 7
      %v3808 = vshll.u32 %v3273, 16
      %v3810 = vor.u32 %v3807, %v3808
      %v3811 = vsel %vm1663, %v3788, %v3810
      %v3813 = vshrl.u32 %v3425, 16
      %v3815 = vrot.slane %v3813, 7
      %v3816 = vshll.u32 %v3425, 16
      %v3818 = vor.u32 %v3815, %v3816
      %v3819 = vsel %vm1663, %v3796, %v3818
      %v3820 = vrot.slane %v3274, 7
      %v3821 = vor.u32 %v3820, %v3270
      %v3822 = vsel %vm1663, %v3801, %v3821
      %v3824 = vshrl.u32 %v3281, 16
      %v3826 = vrot.slane %v3824, 7
      %v3827 = vshll.u32 %v3281, 16
      %v3829 = vor.u32 %v3826, %v3827
      %v3830 = vsel %vm1663, %v3807, %v3829
      %v3832 = vshrl.u32 %v3427, 16
      %v3834 = vrot.slane %v3832, 7
      %v3835 = vshll.u32 %v3427, 16
      %v3837 = vor.u32 %v3834, %v3835
      %v3838 = vsel %vm1663, %v3815, %v3837
      %v3839 = vrot.slane %v3282, 7
      %v3840 = vor.u32 %v3839, %v3278
      %v3841 = vsel %vm1663, %v3820, %v3840
      %v3843 = vshrl.u32 %v3289, 16
      %v3845 = vrot.slane %v3843, 7
      %v3846 = vshll.u32 %v3289, 16
      %v3848 = vor.u32 %v3845, %v3846
      %v3849 = vsel %vm1663, %v3826, %v3848
      %v3851 = vshrl.u32 %v3429, 16
      %v3853 = vrot.slane %v3851, 7
      %v3854 = vshll.u32 %v3429, 16
      %v3856 = vor.u32 %v3853, %v3854
      %v3857 = vsel %vm1663, %v3834, %v3856
      %v3858 = vrot.slane %v3290, 7
      %v3859 = vor.u32 %v3858, %v3286
      %v3860 = vsel %vm1663, %v3839, %v3859
      %v3862 = vshrl.u32 %v3297, 16
      %v3864 = vrot.slane %v3862, 7
      %v3865 = vshll.u32 %v3297, 16
      %v3867 = vor.u32 %v3864, %v3865
      %v3868 = vsel %vm1663, %v3845, %v3867
      %v3870 = vshrl.u32 %v3431, 16
      %v3872 = vrot.slane %v3870, 7
      %v3873 = vshll.u32 %v3431, 16
      %v3875 = vor.u32 %v3872, %v3873
      %v3876 = vsel %vm1663, %v3853, %v3875
      %v3877 = vrot.slane %v3298, 7
      %v3878 = vor.u32 %v3877, %v3294
      %v3879 = vsel %vm1663, %v3858, %v3878
      %v3881 = vshrl.u32 %v3305, 16
      %v3883 = vrot.slane %v3881, 7
      %v3884 = vshll.u32 %v3305, 16
      %v3886 = vor.u32 %v3883, %v3884
      %v3887 = vsel %vm1663, %v3864, %v3886
      %v3889 = vshrl.u32 %v3433, 16
      %v3891 = vrot.slane %v3889, 7
      %v3892 = vshll.u32 %v3433, 16
      %v3894 = vor.u32 %v3891, %v3892
      %v3895 = vsel %vm1663, %v3872, %v3894
      %v3896 = vrot.slane %v3306, 7
      %v3897 = vor.u32 %v3896, %v3302
      %v3898 = vsel %vm1663, %v3877, %v3897
      %v3900 = vshrl.u32 %v3313, 16
      %v3902 = vrot.slane %v3900, 7
      %v3903 = vshll.u32 %v3313, 16
      %v3905 = vor.u32 %v3902, %v3903
      %v3906 = vsel %vm1663, %v3883, %v3905
      %v3908 = vshrl.u32 %v3435, 16
      %v3910 = vrot.slane %v3908, 7
      %v3911 = vshll.u32 %v3435, 16
      %v3913 = vor.u32 %v3910, %v3911
      %v3914 = vsel %vm1663, %v3891, %v3913
      %v3915 = vrot.slane %v3314, 7
      %v3916 = vor.u32 %v3915, %v3310
      %v3917 = vsel %vm1663, %v3896, %v3916
      %v3919 = vshrl.u32 %v3321, 16
      %v3921 = vrot.slane %v3919, 7
      %v3922 = vshll.u32 %v3321, 16
      %v3924 = vor.u32 %v3921, %v3922
      %v3925 = vsel %vm1663, %v3902, %v3924
      %v3927 = vshrl.u32 %v3437, 16
      %v3929 = vrot.slane %v3927, 7
      %v3930 = vshll.u32 %v3437, 16
      %v3932 = vor.u32 %v3929, %v3930
      %v3933 = vsel %vm1663, %v3910, %v3932
      %v3934 = vrot.slane %v3322, 7
      %v3935 = vor.u32 %v3934, %v3318
      %v3936 = vsel %vm1663, %v3915, %v3935
      %v3938 = vshrl.u32 %v3329, 16
      %v3940 = vrot.slane %v3938, 7
      %v3941 = vshll.u32 %v3329, 16
      %v3943 = vor.u32 %v3940, %v3941
      %v3944 = vsel %vm1663, %v3921, %v3943
      %v3946 = vshrl.u32 %v3439, 16
      %v3948 = vrot.slane %v3946, 7
      %v3949 = vshll.u32 %v3439, 16
      %v3951 = vor.u32 %v3948, %v3949
      %v3952 = vsel %vm1663, %v3929, %v3951
      %v3953 = vrot.slane %v3330, 7
      %v3954 = vor.u32 %v3953, %v3326
      %v3955 = vsel %vm1663, %v3934, %v3954
      %v3957 = vshrl.u32 %v3337, 16
      %v3959 = vrot.slane %v3957, 7
      %v3960 = vshll.u32 %v3337, 16
      %v3962 = vor.u32 %v3959, %v3960
      %v3963 = vsel %vm1663, %v3940, %v3962
      %v3965 = vshrl.u32 %v3441, 16
      %v3967 = vrot.slane %v3965, 7
      %v3968 = vshll.u32 %v3441, 16
      %v3970 = vor.u32 %v3967, %v3968
      %v3971 = vsel %vm1663, %v3948, %v3970
      %v3972 = vrot.slane %v3338, 7
      %v3973 = vor.u32 %v3972, %v3334
      %v3974 = vsel %vm1663, %v3953, %v3973
      %v3976 = vshrl.u32 %v3345, 16
      %v3978 = vrot.slane %v3976, 7
      %v3979 = vshll.u32 %v3345, 16
      %v3981 = vor.u32 %v3978, %v3979
      %v3982 = vsel %vm1663, %v3959, %v3981
      %v3984 = vshrl.u32 %v3443, 16
      %v3986 = vrot.slane %v3984, 7
      %v3987 = vshll.u32 %v3443, 16
      %v3989 = vor.u32 %v3986, %v3987
      %v3990 = vsel %vm1663, %v3967, %v3989
      %v3991 = vrot.slane %v3346, 7
      %v3992 = vor.u32 %v3991, %v3342
      %v3993 = vsel %vm1663, %v3972, %v3992
      %v3995 = vshrl.u32 %v3353, 16
      %v3997 = vrot.slane %v3995, 7
      %v3998 = vshll.u32 %v3353, 16
      %v4000 = vor.u32 %v3997, %v3998
      %v4001 = vsel %vm1663, %v3978, %v4000
      %v4003 = vshrl.u32 %v3445, 16
      %v4005 = vrot.slane %v4003, 7
      %v4006 = vshll.u32 %v3445, 16
      %v4008 = vor.u32 %v4005, %v4006
      %v4009 = vsel %vm1663, %v3986, %v4008
      %v4130 = vunpack.c.l.b16 %v3497
      %v4131 = vunpack.c.l.b16 %v3498
      %v4132 = vunpack.c.l.b16 %v3499
      %v4133 = vunpack.c.l.b16 %v3500
      %v4134 = vunpack.c.l.b16 %v3501
      %v4135 = vunpack.c.l.b16 %v3502
      %v4136 = vunpack.c.l.b16 %v3503
      %v4137 = vunpack.c.l.b16 %v3504
      %v4138 = vunpack.c.l.b16 %v3505
      %v4139 = vunpack.c.l.b16 %v3506
      %v4140 = vunpack.c.l.b16 %v3507
      %v4141 = vunpack.c.l.b16 %v3508
      %v4142 = vunpack.c.l.b16 %v3509
      %v4143 = vunpack.c.l.b16 %v3510
      %v4144 = vunpack.c.l.b16 %v3511
      %v4145 = vunpack.c.l.b16 %v3512
      %v4146 = vunpack.c.l.b16 %v3513
      %v4147 = vunpack.c.l.b16 %v3514
      %v4148 = vunpack.c.l.b16 %v3515
      %v4149 = vunpack.c.l.b16 %v3516
      %v4150 = vunpack.c.l.b16 %v3517
      %v4151 = vunpack.c.l.b16 %v3518
      %v4152 = vunpack.c.l.b16 %v3519
      %v4153 = vunpack.c.l.b16 %v3520
      %v4154 = vunpack.c.l.b16 %v3521
      %v4155 = vunpack.c.l.b16 %v3522
      %v4156 = vunpack.c.l.b16 %v3523
      %v4157 = vunpack.c.l.b16 %v3524
      %v4158 = vunpack.c.l.b16 %v3525
      %v4159 = vunpack.c.l.b16 %v3526
      %v4160 = vunpack.c.l.b16 %v3527
      %v4161 = vunpack.c.l.b16 %v3528
      %v4162 = vunpack.c.l.b16 %v3529
      %v4163 = vunpack.c.l.b16 %v3530
      %v4164 = vunpack.c.l.b16 %v3531
      %v4165 = vunpack.c.l.b16 %v3532
      %v4166 = vunpack.c.l.b16 %v3533
      %v4167 = vunpack.c.l.b16 %v3534
      %v4168 = vunpack.c.l.b16 %v3535
      %v4169 = vunpack.c.l.b16 %v3536
      %v4170 = vunpack.c.l.b16 %v3537
      %v4171 = vunpack.c.l.b16 %v3538
      %v4172 = vunpack.c.l.b16 %v3539
      %v4173 = vunpack.c.l.b16 %v3540
      %v4174 = vunpack.c.l.b16 %v3541
      %v4175 = vunpack.c.l.b16 %v3542
      %v4176 = vunpack.c.l.b16 %v3543
      %v4177 = vunpack.c.l.b16 %v3544
      %v4178 = vpack.c.b16 %v4131, %v4130
      %v4179 = vpack.c.b16 %v4133, %v4132
      %v4180 = vpack.c.b16 %v4135, %v4134
      %v4181 = vpack.c.b16 %v4137, %v4136
      %v4182 = vpack.c.b16 %v4139, %v4138
      %v4183 = vpack.c.b16 %v4141, %v4140
      %v4184 = vpack.c.b16 %v4143, %v4142
      %v4185 = vpack.c.b16 %v4145, %v4144
      %v4186 = vpack.c.b16 %v4147, %v4146
      %v4187 = vpack.c.b16 %v4149, %v4148
      %v4188 = vpack.c.b16 %v4151, %v4150
      %v4189 = vpack.c.b16 %v4153, %v4152
      %v4190 = vpack.c.b16 %v4155, %v4154
      %v4191 = vpack.c.b16 %v4157, %v4156
      %v4192 = vpack.c.b16 %v4159, %v4158
      %v4193 = vpack.c.b16 %v4161, %v4160
      %v4194 = vpack.c.b16 %v4163, %v4162
      %v4195 = vpack.c.b16 %v4165, %v4164
      %v4196 = vpack.c.b16 %v4167, %v4166
      %v4197 = vpack.c.b16 %v4169, %v4168
      %v4198 = vpack.c.b16 %v4171, %v4170
      %v4199 = vpack.c.b16 %v4173, %v4172
      %v4200 = vpack.c.b16 %v4175, %v4174
      %v4201 = vpack.c.b16 %v4177, %v4176
      %4226 = vmatprep.subr.bf16.mxu0 0
      %4227 = vmatpush1.bf16.msra.mxu0 %v4178
      %4228 = vmatprep.subr.bf16.mxu0 0
      %4229 = vmatpush1.bf16.msra.mxu0 %v4179
      %4230 = vmatprep.subr.bf16.mxu0 0
      %4231 = vmatpush1.bf16.msra.mxu0 %v4180
      %4232 = vmatprep.subr.bf16.mxu0 0
      %4233 = vmatpush1.bf16.msra.mxu0 %v4181
      %4234 = vmatprep.subr.bf16.mxu0 0
      %4235 = vmatpush1.bf16.msra.mxu0 %v4182
      %4236 = vmatprep.subr.bf16.mxu0 0
      %4237 = vmatpush1.bf16.msra.mxu0 %v4183
      %4238 = vmatprep.subr.bf16.mxu0 0
      %4239 = vmatpush1.bf16.msra.mxu0 %v4184
      %4240 = vmatprep.subr.bf16.mxu0 0
      %4241 = vmatpush1.bf16.msra.mxu0 %v4185
      %4242 = vmatprep.subr.bf16.mxu0 0
      %4243 = vmatpush1.bf16.msra.mxu0 %v4186
      %4244 = vmatprep.subr.bf16.mxu0 0
      %4245 = vmatpush1.bf16.msra.mxu0 %v4187
      %4246 = vmatprep.subr.bf16.mxu0 0
      %4247 = vmatpush1.bf16.msra.mxu0 %v4188
      %4248 = vmatprep.subr.bf16.mxu0 0
      %4249 = vmatpush1.bf16.msra.mxu0 %v4189
      %4250 = vmatprep.subr.bf16.mxu0 0
      %4251 = vmatpush1.bf16.msra.mxu0 %v4190
      %4252 = vmatprep.subr.bf16.mxu0 0
      %4253 = vmatpush1.bf16.msra.mxu0 %v4191
      %4254 = vmatprep.subr.bf16.mxu0 0
      %4255 = vmatpush1.bf16.msra.mxu0 %v4192
      %4256 = vmatprep.subr.bf16.mxu0 0
      %4257 = vmatpush1.bf16.msra.mxu0 %v4193
      %4258 = vmatprep.mubr.bf16.mxu0 %v3560
      %4259 = vmatmul.mubr.bf16.gmra.mrb[0].mxu0 %v3548
      %v4260 = vpop.f32.mrb[0].mxu0
      %v4261 = vadd.f32 0.0, %v4260
      %v4262 = vpop.f32.mrb[0].mxu0
      %v4263 = vpop.f32.mrb[0].mxu0
      %v4264 = vadd.f32 0.0, %v4263
      %v4265 = vpop.f32.mrb[0].mxu0
      %4266 = vmatprep.mubr.bf16.mxu0 %v3583
      %4267 = vmatmul.mubr.bf16.gmra.mrb[0].mxu0 %v3575
      %v4268 = vpop.f32.mrb[0].mxu0
      %v4269 = vadd.f32 0.0, %v4268
      %v4270 = vpop.f32.mrb[0].mxu0
      %v4271 = vpop.f32.mrb[0].mxu0
      %v4272 = vadd.f32 0.0, %v4271
      %v4273 = vpop.f32.mrb[0].mxu0
      %4274 = vmatprep.mubr.bf16.mxu0 %v3602
      %4275 = vmatmul.mubr.bf16.gmra.mrb[0].mxu0 %v3594
      %v4276 = vpop.f32.mrb[0].mxu0
      %v4277 = vadd.f32 0.0, %v4276
      %v4278 = vpop.f32.mrb[0].mxu0
      %v4279 = vpop.f32.mrb[0].mxu0
      %v4280 = vadd.f32 0.0, %v4279
      %v4281 = vpop.f32.mrb[0].mxu0
      %4282 = vmatprep.mubr.bf16.mxu0 %v3621
      %4283 = vmatmul.mubr.bf16.gmra.mrb[0].mxu0 %v3613
      %v4284 = vpop.f32.mrb[0].mxu0
      %v4285 = vadd.f32 0.0, %v4284
      %v4286 = vpop.f32.mrb[0].mxu0
      %v4287 = vpop.f32.mrb[0].mxu0
      %v4288 = vadd.f32 0.0, %v4287
      %v4289 = vpop.f32.mrb[0].mxu0
      %4290 = vmatprep.mubr.bf16.mxu0 %v3640
      %4291 = vmatmul.mubr.bf16.gmra.mrb[0].mxu0 %v3632
      %v4292 = vpop.f32.mrb[0].mxu0
      %v4293 = vadd.f32 0.0, %v4292
      %v4294 = vpop.f32.mrb[0].mxu0
      %v4295 = vpop.f32.mrb[0].mxu0
      %v4296 = vadd.f32 0.0, %v4295
      %v4297 = vpop.f32.mrb[0].mxu0
      %4298 = vmatprep.mubr.bf16.mxu0 %v3659
      %4299 = vmatmul.mubr.bf16.gmra.mrb[0].mxu0 %v3651
      %v4300 = vpop.f32.mrb[0].mxu0
      %v4301 = vadd.f32 0.0, %v4300
      %v4302 = vpop.f32.mrb[0].mxu0
      %v4303 = vpop.f32.mrb[0].mxu0
      %v4304 = vadd.f32 0.0, %v4303
      %v4305 = vpop.f32.mrb[0].mxu0
      %4306 = vmatprep.mubr.bf16.mxu0 %v3678
      %4307 = vmatmul.mubr.bf16.gmra.mrb[0].mxu0 %v3670
      %v4308 = vpop.f32.mrb[0].mxu0
      %v4309 = vadd.f32 0.0, %v4308
      %v4310 = vpop.f32.mrb[0].mxu0
      %v4311 = vpop.f32.mrb[0].mxu0
      %v4312 = vadd.f32 0.0, %v4311
      %v4313 = vpop.f32.mrb[0].mxu0
      %4314 = vmatprep.mubr.bf16.mxu0 %v3697
      %4315 = vmatmul.mubr.bf16.gmra.mrb[0].mxu0 %v3689
      %v4316 = vpop.f32.mrb[0].mxu0
      %v4317 = vadd.f32 0.0, %v4316
      %v4318 = vpop.f32.mrb[0].mxu0
      %v4319 = vpop.f32.mrb[0].mxu0
      %v4320 = vadd.f32 0.0, %v4319
      %v4321 = vpop.f32.mrb[0].mxu0
      %4322 = vmatprep.mubr.bf16.mxu0 %v3716
      %4323 = vmatmul.mubr.bf16.gmra.mrb[0].mxu0 %v3708
      %v4324 = vpop.f32.mrb[0].mxu0
      %v4325 = vadd.f32 0.0, %v4324
      %v4326 = vpop.f32.mrb[0].mxu0
      %v4327 = vpop.f32.mrb[0].mxu0
      %v4328 = vadd.f32 0.0, %v4327
      %v4329 = vpop.f32.mrb[0].mxu0
      %4330 = vmatprep.mubr.bf16.mxu0 %v3735
      %4331 = vmatmul.mubr.bf16.gmra.mrb[0].mxu0 %v3727
      %v4332 = vpop.f32.mrb[0].mxu0
      %v4333 = vadd.f32 0.0, %v4332
      %v4334 = vpop.f32.mrb[0].mxu0
      %v4335 = vpop.f32.mrb[0].mxu0
      %v4336 = vadd.f32 0.0, %v4335
      %v4337 = vpop.f32.mrb[0].mxu0
      %4338 = vmatprep.mubr.bf16.mxu0 %v3754
      %4339 = vmatmul.mubr.bf16.gmra.mrb[0].mxu0 %v3746
      %v4340 = vpop.f32.mrb[0].mxu0
      %v4341 = vadd.f32 0.0, %v4340
      %v4342 = vpop.f32.mrb[0].mxu0
      %v4343 = vpop.f32.mrb[0].mxu0
      %v4344 = vadd.f32 0.0, %v4343
      %v4345 = vpop.f32.mrb[0].mxu0
      %4346 = vmatprep.mubr.bf16.mxu0 %v3773
      %4347 = vmatmul.mubr.bf16.gmra.mrb[0].mxu0 %v3765
      %v4348 = vpop.f32.mrb[0].mxu0
      %v4349 = vadd.f32 0.0, %v4348
      %v4350 = vpop.f32.mrb[0].mxu0
      %v4351 = vpop.f32.mrb[0].mxu0
      %v4352 = vadd.f32 0.0, %v4351
      %v4353 = vpop.f32.mrb[0].mxu0
      %4354 = vmatprep.mubr.bf16.mxu0 %v3792
      %4355 = vmatmul.mubr.bf16.gmra.mrb[0].mxu0 %v3784
      %v4356 = vpop.f32.mrb[0].mxu0
      %v4357 = vadd.f32 0.0, %v4356
      %v4358 = vpop.f32.mrb[0].mxu0
      %v4359 = vpop.f32.mrb[0].mxu0
      %v4360 = vadd.f32 0.0, %v4359
      %v4361 = vpop.f32.mrb[0].mxu0
      %4362 = vmatprep.mubr.bf16.mxu0 %v3811
      %4363 = vmatmul.mubr.bf16.gmra.mrb[0].mxu0 %v3803
      %v4364 = vpop.f32.mrb[0].mxu0
      %v4365 = vadd.f32 0.0, %v4364
      %v4366 = vpop.f32.mrb[0].mxu0
      %v4367 = vpop.f32.mrb[0].mxu0
      %v4368 = vadd.f32 0.0, %v4367
      %v4369 = vpop.f32.mrb[0].mxu0
      %4370 = vmatprep.mubr.bf16.mxu0 %v3830
      %4371 = vmatmul.mubr.bf16.gmra.mrb[0].mxu0 %v3822
      %v4372 = vpop.f32.mrb[0].mxu0
      %v4373 = vadd.f32 0.0, %v4372
      %v4374 = vpop.f32.mrb[0].mxu0
      %v4375 = vpop.f32.mrb[0].mxu0
      %v4376 = vadd.f32 0.0, %v4375
      %v4377 = vpop.f32.mrb[0].mxu0
      %4378 = vmatprep.mubr.bf16.mxu0 %v3849
      %4379 = vmatmul.mubr.bf16.gmra.mrb[0].mxu0 %v3841
      %v4380 = vpop.f32.mrb[0].mxu0
      %v4381 = vadd.f32 0.0, %v4380
      %v4382 = vpop.f32.mrb[0].mxu0
      %v4383 = vpop.f32.mrb[0].mxu0
      %v4384 = vadd.f32 0.0, %v4383
      %v4385 = vpop.f32.mrb[0].mxu0
      %4386 = vmatprep.mubr.bf16.mxu0 %v3868
      %4387 = vmatmul.mubr.bf16.gmra.mrb[0].mxu0 %v3860
      %v4388 = vpop.f32.mrb[0].mxu0
      %v4389 = vadd.f32 0.0, %v4388
      %v4390 = vpop.f32.mrb[0].mxu0
      %v4391 = vpop.f32.mrb[0].mxu0
      %v4392 = vadd.f32 0.0, %v4391
      %v4393 = vpop.f32.mrb[0].mxu0
      %4394 = vmatprep.mubr.bf16.mxu0 %v3887
      %4395 = vmatmul.mubr.bf16.gmra.mrb[0].mxu0 %v3879
      %v4396 = vpop.f32.mrb[0].mxu0
      %v4397 = vadd.f32 0.0, %v4396
      %v4398 = vpop.f32.mrb[0].mxu0
      %v4399 = vpop.f32.mrb[0].mxu0
      %v4400 = vadd.f32 0.0, %v4399
      %v4401 = vpop.f32.mrb[0].mxu0
      %4402 = vmatprep.mubr.bf16.mxu0 %v3906
      %4403 = vmatmul.mubr.bf16.gmra.mrb[0].mxu0 %v3898
      %v4404 = vpop.f32.mrb[0].mxu0
      %v4405 = vadd.f32 0.0, %v4404
      %v4406 = vpop.f32.mrb[0].mxu0
      %v4407 = vpop.f32.mrb[0].mxu0
      %v4408 = vadd.f32 0.0, %v4407
      %v4409 = vpop.f32.mrb[0].mxu0
      %4410 = vmatprep.mubr.bf16.mxu0 %v3925
      %4411 = vmatmul.mubr.bf16.gmra.mrb[0].mxu0 %v3917
      %v4412 = vpop.f32.mrb[0].mxu0
      %v4413 = vadd.f32 0.0, %v4412
      %v4414 = vpop.f32.mrb[0].mxu0
      %v4415 = vpop.f32.mrb[0].mxu0
      %v4416 = vadd.f32 0.0, %v4415
      %v4417 = vpop.f32.mrb[0].mxu0
      %4418 = vmatprep.mubr.bf16.mxu0 %v3944
      %4419 = vmatmul.mubr.bf16.gmra.mrb[0].mxu0 %v3936
      %v4420 = vpop.f32.mrb[0].mxu0
      %v4421 = vadd.f32 0.0, %v4420
      %v4422 = vpop.f32.mrb[0].mxu0
      %v4423 = vpop.f32.mrb[0].mxu0
      %v4424 = vadd.f32 0.0, %v4423
      %v4425 = vpop.f32.mrb[0].mxu0
      %4426 = vmatprep.mubr.bf16.mxu0 %v3963
      %4427 = vmatmul.mubr.bf16.gmra.mrb[0].mxu0 %v3955
      %v4428 = vpop.f32.mrb[0].mxu0
      %v4429 = vadd.f32 0.0, %v4428
      %v4430 = vpop.f32.mrb[0].mxu0
      %v4431 = vpop.f32.mrb[0].mxu0
      %v4432 = vadd.f32 0.0, %v4431
      %v4433 = vpop.f32.mrb[0].mxu0
      %4434 = vmatprep.mubr.bf16.mxu0 %v3982
      %4435 = vmatmul.mubr.bf16.gmra.mrb[0].mxu0 %v3974
      %v4436 = vpop.f32.mrb[0].mxu0
      %v4437 = vadd.f32 0.0, %v4436
      %v4438 = vpop.f32.mrb[0].mxu0
      %v4439 = vpop.f32.mrb[0].mxu0
      %v4440 = vadd.f32 0.0, %v4439
      %v4441 = vpop.f32.mrb[0].mxu0
      %4442 = vmatprep.mubr.bf16.mxu0 %v4001
      %4443 = vmatmul.mubr.bf16.gmra.mrb[0].mxu0 %v3993
      %v4444 = vpop.f32.mrb[0].mxu0
      %v4445 = vadd.f32 0.0, %v4444
      %v4446 = vpop.f32.mrb[0].mxu0
      %v4447 = vpop.f32.mrb[0].mxu0
      %v4448 = vadd.f32 0.0, %v4447
      %v4449 = vpop.f32.mrb[0].mxu0
      %4450 = vdwg.mxu0
      %4451 = vmatprep.subr.bf16.mxu0 0
      %4452 = vmatpush1.bf16.msra.mxu0 %v4194
      %4453 = vmatprep.subr.bf16.mxu0 0
      %4454 = vmatpush1.bf16.msra.mxu0 %v4195
      %4455 = vmatprep.subr.bf16.mxu0 0
      %4456 = vmatpush1.bf16.msra.mxu0 %v4196
      %4457 = vmatprep.subr.bf16.mxu0 0
      %4458 = vmatpush1.bf16.msra.mxu0 %v4197
      %4459 = vmatprep.subr.bf16.mxu0 0
      %4460 = vmatpush1.bf16.msra.mxu0 %v4198
      %4461 = vmatprep.subr.bf16.mxu0 0
      %4462 = vmatpush1.bf16.msra.mxu0 %v4199
      %4463 = vmatprep.subr.bf16.mxu0 0
      %4464 = vmatpush1.bf16.msra.mxu0 %v4200
      %4465 = vmatprep.subr.bf16.mxu0 0
      %4466 = vmatpush1.bf16.msra.mxu0 %v4201
      %4467 = vmatprep.subr.bf16.mxu0 0
      %4468 = vmatpush1.bf16.msra.mxu0 0
      %4469 = vmatprep.subr.bf16.mxu0 0
      %4470 = vmatpush1.bf16.msra.mxu0 0
      %4471 = vmatprep.subr.bf16.mxu0 0
      %4472 = vmatpush1.bf16.msra.mxu0 0
      %4473 = vmatprep.subr.bf16.mxu0 0
      %4474 = vmatpush1.bf16.msra.mxu0 0
      %4475 = vmatprep.subr.bf16.mxu0 0
      %4476 = vmatpush1.bf16.msra.mxu0 0
      %4477 = vmatprep.subr.bf16.mxu0 0
      %4478 = vmatpush1.bf16.msra.mxu0 0
      %4479 = vmatprep.subr.bf16.mxu0 0
      %4480 = vmatpush1.bf16.msra.mxu0 0
      %4481 = vmatprep.subr.bf16.mxu0 0
      %4482 = vmatpush1.bf16.msra.mxu0 0
      %4483 = vmatprep.mubr.bf16.mxu0 0
      %4484 = vmatmul.mubr.bf16.gmra.mrb[0].mxu0 %v3572
      %v4485 = vpop.f32.mrb[0].mxu0
      %v4486 = vadd.f32 %v4261, %v4485
      %v4487 = vpop.f32.mrb[0].mxu0
      %v4488 = vpop.f32.mrb[0].mxu0
      %v4489 = vadd.f32 %v4264, %v4488
      %v4490 = vpop.f32.mrb[0].mxu0
      %4491 = vmatprep.mubr.bf16.mxu0 0
      %4492 = vmatmul.mubr.bf16.gmra.mrb[0].mxu0 %v3591
      %v4493 = vpop.f32.mrb[0].mxu0
      %v4494 = vadd.f32 %v4269, %v4493
      %v4495 = vpop.f32.mrb[0].mxu0
      %v4496 = vpop.f32.mrb[0].mxu0
      %v4497 = vadd.f32 %v4272, %v4496
      %v4498 = vpop.f32.mrb[0].mxu0
      %4499 = vmatprep.mubr.bf16.mxu0 0
      %4500 = vmatmul.mubr.bf16.gmra.mrb[0].mxu0 %v3610
      %v4501 = vpop.f32.mrb[0].mxu0
      %v4502 = vadd.f32 %v4277, %v4501
      %v4503 = vpop.f32.mrb[0].mxu0
      %v4504 = vpop.f32.mrb[0].mxu0
      %v4505 = vadd.f32 %v4280, %v4504
      %v4506 = vpop.f32.mrb[0].mxu0
      %4507 = vmatprep.mubr.bf16.mxu0 0
      %4508 = vmatmul.mubr.bf16.gmra.mrb[0].mxu0 %v3629
      %v4509 = vpop.f32.mrb[0].mxu0
      %v4510 = vadd.f32 %v4285, %v4509
      %v4511 = vpop.f32.mrb[0].mxu0
      %v4512 = vpop.f32.mrb[0].mxu0
      %v4513 = vadd.f32 %v4288, %v4512
      %v4514 = vpop.f32.mrb[0].mxu0
      %4515 = vmatprep.mubr.bf16.mxu0 0
      %4516 = vmatmul.mubr.bf16.gmra.mrb[0].mxu0 %v3648
      %v4517 = vpop.f32.mrb[0].mxu0
      %v4518 = vadd.f32 %v4293, %v4517
      %v4519 = vpop.f32.mrb[0].mxu0
      %v4520 = vpop.f32.mrb[0].mxu0
      %v4521 = vadd.f32 %v4296, %v4520
      %v4522 = vpop.f32.mrb[0].mxu0
      %4523 = vmatprep.mubr.bf16.mxu0 0
      %4524 = vmatmul.mubr.bf16.gmra.mrb[0].mxu0 %v3667
      %v4525 = vpop.f32.mrb[0].mxu0
      %v4526 = vadd.f32 %v4301, %v4525
      %v4527 = vpop.f32.mrb[0].mxu0
      %v4528 = vpop.f32.mrb[0].mxu0
      %v4529 = vadd.f32 %v4304, %v4528
      %v4530 = vpop.f32.mrb[0].mxu0
      %4531 = vmatprep.mubr.bf16.mxu0 0
      %4532 = vmatmul.mubr.bf16.gmra.mrb[0].mxu0 %v3686
      %v4533 = vpop.f32.mrb[0].mxu0
      %v4534 = vadd.f32 %v4309, %v4533
      %v4535 = vpop.f32.mrb[0].mxu0
      %v4536 = vpop.f32.mrb[0].mxu0
      %v4537 = vadd.f32 %v4312, %v4536
      %v4538 = vpop.f32.mrb[0].mxu0
      %4539 = vmatprep.mubr.bf16.mxu0 0
      %4540 = vmatmul.mubr.bf16.gmra.mrb[0].mxu0 %v3705
      %v4541 = vpop.f32.mrb[0].mxu0
      %v4542 = vadd.f32 %v4317, %v4541
      %v4543 = vpop.f32.mrb[0].mxu0
      %v4544 = vpop.f32.mrb[0].mxu0
      %v4545 = vadd.f32 %v4320, %v4544
      %v4546 = vpop.f32.mrb[0].mxu0
      %4547 = vmatprep.mubr.bf16.mxu0 0
      %4548 = vmatmul.mubr.bf16.gmra.mrb[0].mxu0 %v3724
      %v4549 = vpop.f32.mrb[0].mxu0
      %v4550 = vadd.f32 %v4325, %v4549
      %v4551 = vpop.f32.mrb[0].mxu0
      %v4552 = vpop.f32.mrb[0].mxu0
      %v4553 = vadd.f32 %v4328, %v4552
      %v4554 = vpop.f32.mrb[0].mxu0
      %4555 = vmatprep.mubr.bf16.mxu0 0
      %4556 = vmatmul.mubr.bf16.gmra.mrb[0].mxu0 %v3743
      %v4557 = vpop.f32.mrb[0].mxu0
      %v4558 = vadd.f32 %v4333, %v4557
      %v4559 = vpop.f32.mrb[0].mxu0
      %v4560 = vpop.f32.mrb[0].mxu0
      %v4561 = vadd.f32 %v4336, %v4560
      %v4562 = vpop.f32.mrb[0].mxu0
      %4563 = vmatprep.mubr.bf16.mxu0 0
      %4564 = vmatmul.mubr.bf16.gmra.mrb[0].mxu0 %v3762
      %v4565 = vpop.f32.mrb[0].mxu0
      %v4566 = vadd.f32 %v4341, %v4565
      %v4567 = vpop.f32.mrb[0].mxu0
      %v4568 = vpop.f32.mrb[0].mxu0
      %v4569 = vadd.f32 %v4344, %v4568
      %v4570 = vpop.f32.mrb[0].mxu0
      %4571 = vmatprep.mubr.bf16.mxu0 0
      %4572 = vmatmul.mubr.bf16.gmra.mrb[0].mxu0 %v3781
      %v4573 = vpop.f32.mrb[0].mxu0
      %v4574 = vadd.f32 %v4349, %v4573
      %v4575 = vpop.f32.mrb[0].mxu0
      %v4576 = vpop.f32.mrb[0].mxu0
      %v4577 = vadd.f32 %v4352, %v4576
      %v4578 = vpop.f32.mrb[0].mxu0
      %4579 = vmatprep.mubr.bf16.mxu0 0
      %4580 = vmatmul.mubr.bf16.gmra.mrb[0].mxu0 %v3800
      %v4581 = vpop.f32.mrb[0].mxu0
      %v4582 = vadd.f32 %v4357, %v4581
      %v4583 = vpop.f32.mrb[0].mxu0
      %v4584 = vpop.f32.mrb[0].mxu0
      %v4585 = vadd.f32 %v4360, %v4584
      %v4586 = vpop.f32.mrb[0].mxu0
      %4587 = vmatprep.mubr.bf16.mxu0 0
      %4588 = vmatmul.mubr.bf16.gmra.mrb[0].mxu0 %v3819
      %v4589 = vpop.f32.mrb[0].mxu0
      %v4590 = vadd.f32 %v4365, %v4589
      %v4591 = vpop.f32.mrb[0].mxu0
      %v4592 = vpop.f32.mrb[0].mxu0
      %v4593 = vadd.f32 %v4368, %v4592
      %v4594 = vpop.f32.mrb[0].mxu0
      %4595 = vmatprep.mubr.bf16.mxu0 0
      %4596 = vmatmul.mubr.bf16.gmra.mrb[0].mxu0 %v3838
      %v4597 = vpop.f32.mrb[0].mxu0
      %v4598 = vadd.f32 %v4373, %v4597
      %v4599 = vpop.f32.mrb[0].mxu0
      %v4600 = vpop.f32.mrb[0].mxu0
      %v4601 = vadd.f32 %v4376, %v4600
      %v4602 = vpop.f32.mrb[0].mxu0
      %4603 = vmatprep.mubr.bf16.mxu0 0
      %4604 = vmatmul.mubr.bf16.gmra.mrb[0].mxu0 %v3857
      %v4605 = vpop.f32.mrb[0].mxu0
      %v4606 = vadd.f32 %v4381, %v4605
      %v4607 = vpop.f32.mrb[0].mxu0
      %v4608 = vpop.f32.mrb[0].mxu0
      %v4609 = vadd.f32 %v4384, %v4608
      %v4610 = vpop.f32.mrb[0].mxu0
      %4611 = vmatprep.mubr.bf16.mxu0 0
      %4612 = vmatmul.mubr.bf16.gmra.mrb[0].mxu0 %v3876
      %v4613 = vpop.f32.mrb[0].mxu0
      %v4614 = vadd.f32 %v4389, %v4613
      %v4615 = vpop.f32.mrb[0].mxu0
      %v4616 = vpop.f32.mrb[0].mxu0
      %v4617 = vadd.f32 %v4392, %v4616
      %v4618 = vpop.f32.mrb[0].mxu0
      %4619 = vmatprep.mubr.bf16.mxu0 0
      %4620 = vmatmul.mubr.bf16.gmra.mrb[0].mxu0 %v3895
      %v4621 = vpop.f32.mrb[0].mxu0
      %v4622 = vadd.f32 %v4397, %v4621
      %v4623 = vpop.f32.mrb[0].mxu0
      %v4624 = vpop.f32.mrb[0].mxu0
      %v4625 = vadd.f32 %v4400, %v4624
      %v4626 = vpop.f32.mrb[0].mxu0
      %4627 = vmatprep.mubr.bf16.mxu0 0
      %4628 = vmatmul.mubr.bf16.gmra.mrb[0].mxu0 %v3914
      %v4629 = vpop.f32.mrb[0].mxu0
      %v4630 = vadd.f32 %v4405, %v4629
      %v4631 = vpop.f32.mrb[0].mxu0
      %v4632 = vpop.f32.mrb[0].mxu0
      %v4633 = vadd.f32 %v4408, %v4632
      %v4634 = vpop.f32.mrb[0].mxu0
      %4635 = vmatprep.mubr.bf16.mxu0 0
      %4636 = vmatmul.mubr.bf16.gmra.mrb[0].mxu0 %v3933
      %v4637 = vpop.f32.mrb[0].mxu0
      %v4638 = vadd.f32 %v4413, %v4637
      %v4639 = vpop.f32.mrb[0].mxu0
      %v4640 = vpop.f32.mrb[0].mxu0
      %v4641 = vadd.f32 %v4416, %v4640
      %v4642 = vpop.f32.mrb[0].mxu0
      %4643 = vmatprep.mubr.bf16.mxu0 0
      %4644 = vmatmul.mubr.bf16.gmra.mrb[0].mxu0 %v3952
      %v4645 = vpop.f32.mrb[0].mxu0
      %v4646 = vadd.f32 %v4421, %v4645
      %v4647 = vpop.f32.mrb[0].mxu0
      %v4648 = vpop.f32.mrb[0].mxu0
      %v4649 = vadd.f32 %v4424, %v4648
      %v4650 = vpop.f32.mrb[0].mxu0
      %4651 = vmatprep.mubr.bf16.mxu0 0
      %4652 = vmatmul.mubr.bf16.gmra.mrb[0].mxu0 %v3971
      %v4653 = vpop.f32.mrb[0].mxu0
      %v4654 = vadd.f32 %v4429, %v4653
      %v4655 = vpop.f32.mrb[0].mxu0
      %v4656 = vpop.f32.mrb[0].mxu0
      %v4657 = vadd.f32 %v4432, %v4656
      %v4658 = vpop.f32.mrb[0].mxu0
      %4659 = vmatprep.mubr.bf16.mxu0 0
      %4660 = vmatmul.mubr.bf16.gmra.mrb[0].mxu0 %v3990
      %v4661 = vpop.f32.mrb[0].mxu0
      %v4662 = vadd.f32 %v4437, %v4661
      %v4663 = vpop.f32.mrb[0].mxu0
      %v4664 = vpop.f32.mrb[0].mxu0
      %v4665 = vadd.f32 %v4440, %v4664
      %v4666 = vpop.f32.mrb[0].mxu0
      %4667 = vmatprep.mubr.bf16.mxu0 0
      %4668 = vmatmul.mubr.bf16.gmra.mrb[0].mxu0 %v4009
      %v4669 = vpop.f32.mrb[0].mxu0
      %v4670 = vadd.f32 %v4445, %v4669
      %v4671 = vpop.f32.mrb[0].mxu0
      %v4672 = vpop.f32.mrb[0].mxu0
      %v4673 = vadd.f32 %v4448, %v4672
      %v4674 = vpop.f32.mrb[0].mxu0
      %4675 = vdwg.mxu0
      %v4676 = vrot.slane %v3143, 3
      %v4677 = vrot.slane %v3145, 4
      %v4678 = vor.u32 %v4676, %v4677
      %v4679 = vrot.slane %v3154, 3
      %v4680 = vrot.slane %v3150, 4
      %v4681 = vor.u32 %v4679, %v4680
      %v4682 = vsel %vm1076, %v4678, %v4681
      %v4684 = vshrl.u32 %v3153, 16
      %v4686 = vrot.slane %v4684, 3
      %v4687 = vshll.u32 %v3153, 16
      %v4689 = vrot.slane %v4687, 4
      %v4690 = vor.u32 %v4686, %v4689
      %v4691 = vrot.slane %v3550, 3
      %v4692 = vshll.u32 %v3161, 16
      %v4694 = vrot.slane %v4692, 4
      %v4695 = vor.u32 %v4691, %v4694
      %v4696 = vsel %vm1076, %v4690, %v4695
      %v4698 = vshrl.u32 %v3395, 16
      %v4700 = vrot.slane %v4698, 3
      %v4701 = vshll.u32 %v3395, 16
      %v4703 = vrot.slane %v4701, 4
      %v4704 = vor.u32 %v4700, %v4703
      %v4705 = vrot.slane %v3562, 3
      %v4706 = vshll.u32 %v3397, 16
      %v4708 = vrot.slane %v4706, 4
      %v4709 = vor.u32 %v4705, %v4708
      %v4710 = vsel %vm1076, %v4704, %v4709
      %v4711 = vrot.slane %v3162, 3
      %v4712 = vrot.slane %v3158, 4
      %v4713 = vor.u32 %v4711, %v4712
      %v4714 = vsel %vm1076, %v4681, %v4713
      %v4715 = vrot.slane %v3554, 3
      %v4716 = vrot.slane %v3557, 4
      %v4717 = vor.u32 %v4715, %v4716
      %v4718 = vsel %vm1076, %v4695, %v4717
      %v4719 = vrot.slane %v3566, 3
      %v4720 = vrot.slane %v3569, 4
      %v4721 = vor.u32 %v4719, %v4720
      %v4722 = vsel %vm1076, %v4709, %v4721
      %v4723 = vrot.slane %v3170, 3
      %v4724 = vrot.slane %v3166, 4
      %v4725 = vor.u32 %v4723, %v4724
      %v4726 = vsel %vm1076, %v4713, %v4725
      %v4727 = vrot.slane %v3577, 3
      %v4728 = vrot.slane %v3580, 4
      %v4729 = vor.u32 %v4727, %v4728
      %v4730 = vsel %vm1076, %v4717, %v4729
      %v4731 = vrot.slane %v3585, 3
      %v4732 = vrot.slane %v3588, 4
      %v4733 = vor.u32 %v4731, %v4732
      %v4734 = vsel %vm1076, %v4721, %v4733
      %v4735 = vrot.slane %v3178, 3
      %v4736 = vrot.slane %v3174, 4
      %v4737 = vor.u32 %v4735, %v4736
      %v4738 = vsel %vm1076, %v4725, %v4737
      %v4739 = vrot.slane %v3596, 3
      %v4740 = vrot.slane %v3599, 4
      %v4741 = vor.u32 %v4739, %v4740
      %v4742 = vsel %vm1076, %v4729, %v4741
      %v4743 = vrot.slane %v3604, 3
      %v4744 = vrot.slane %v3607, 4
      %v4745 = vor.u32 %v4743, %v4744
      %v4746 = vsel %vm1076, %v4733, %v4745
      %v4747 = vrot.slane %v3186, 3
      %v4748 = vrot.slane %v3182, 4
      %v4749 = vor.u32 %v4747, %v4748
      %v4750 = vsel %vm1076, %v4737, %v4749
      %v4751 = vrot.slane %v3615, 3
      %v4752 = vrot.slane %v3618, 4
      %v4753 = vor.u32 %v4751, %v4752
      %v4754 = vsel %vm1076, %v4741, %v4753
      %v4755 = vrot.slane %v3623, 3
      %v4756 = vrot.slane %v3626, 4
      %v4757 = vor.u32 %v4755, %v4756
      %v4758 = vsel %vm1076, %v4745, %v4757
      %v4759 = vrot.slane %v3194, 3
      %v4760 = vrot.slane %v3190, 4
      %v4761 = vor.u32 %v4759, %v4760
      %v4762 = vsel %vm1076, %v4749, %v4761
      %v4763 = vrot.slane %v3634, 3
      %v4764 = vrot.slane %v3637, 4
      %v4765 = vor.u32 %v4763, %v4764
      %v4766 = vsel %vm1076, %v4753, %v4765
      %v4767 = vrot.slane %v3642, 3
      %v4768 = vrot.slane %v3645, 4
      %v4769 = vor.u32 %v4767, %v4768
      %v4770 = vsel %vm1076, %v4757, %v4769
      %v4771 = vrot.slane %v3202, 3
      %v4772 = vrot.slane %v3198, 4
      %v4773 = vor.u32 %v4771, %v4772
      %v4774 = vsel %vm1076, %v4761, %v4773
      %v4775 = vrot.slane %v3653, 3
      %v4776 = vrot.slane %v3656, 4
      %v4777 = vor.u32 %v4775, %v4776
      %v4778 = vsel %vm1076, %v4765, %v4777
      %v4779 = vrot.slane %v3661, 3
      %v4780 = vrot.slane %v3664, 4
      %v4781 = vor.u32 %v4779, %v4780
      %v4782 = vsel %vm1076, %v4769, %v4781
      %v4783 = vrot.slane %v3210, 3
      %v4784 = vrot.slane %v3206, 4
      %v4785 = vor.u32 %v4783, %v4784
      %v4786 = vsel %vm1076, %v4773, %v4785
      %v4787 = vrot.slane %v3672, 3
      %v4788 = vrot.slane %v3675, 4
      %v4789 = vor.u32 %v4787, %v4788
      %v4790 = vsel %vm1076, %v4777, %v4789
      %v4791 = vrot.slane %v3680, 3
      %v4792 = vrot.slane %v3683, 4
      %v4793 = vor.u32 %v4791, %v4792
      %v4794 = vsel %vm1076, %v4781, %v4793
      %v4795 = vrot.slane %v3218, 3
      %v4796 = vrot.slane %v3214, 4
      %v4797 = vor.u32 %v4795, %v4796
      %v4798 = vsel %vm1076, %v4785, %v4797
      %v4799 = vrot.slane %v3691, 3
      %v4800 = vrot.slane %v3694, 4
      %v4801 = vor.u32 %v4799, %v4800
      %v4802 = vsel %vm1076, %v4789, %v4801
      %v4803 = vrot.slane %v3699, 3
      %v4804 = vrot.slane %v3702, 4
      %v4805 = vor.u32 %v4803, %v4804
      %v4806 = vsel %vm1076, %v4793, %v4805
      %v4807 = vrot.slane %v3226, 3
      %v4808 = vrot.slane %v3222, 4
      %v4809 = vor.u32 %v4807, %v4808
      %v4810 = vsel %vm1076, %v4797, %v4809
      %v4811 = vrot.slane %v3710, 3
      %v4812 = vrot.slane %v3713, 4
      %v4813 = vor.u32 %v4811, %v4812
      %v4814 = vsel %vm1076, %v4801, %v4813
      %v4815 = vrot.slane %v3718, 3
      %v4816 = vrot.slane %v3721, 4
      %v4817 = vor.u32 %v4815, %v4816
      %v4818 = vsel %vm1076, %v4805, %v4817
      %v4819 = vrot.slane %v3234, 3
      %v4820 = vrot.slane %v3230, 4
      %v4821 = vor.u32 %v4819, %v4820
      %v4822 = vsel %vm1076, %v4809, %v4821
      %v4823 = vrot.slane %v3729, 3
      %v4824 = vrot.slane %v3732, 4
      %v4825 = vor.u32 %v4823, %v4824
      %v4826 = vsel %vm1076, %v4813, %v4825
      %v4827 = vrot.slane %v3737, 3
      %v4828 = vrot.slane %v3740, 4
      %v4829 = vor.u32 %v4827, %v4828
      %v4830 = vsel %vm1076, %v4817, %v4829
      %v4831 = vrot.slane %v3242, 3
      %v4832 = vrot.slane %v3238, 4
      %v4833 = vor.u32 %v4831, %v4832
      %v4834 = vsel %vm1076, %v4821, %v4833
      %v4835 = vrot.slane %v3748, 3
      %v4836 = vrot.slane %v3751, 4
      %v4837 = vor.u32 %v4835, %v4836
      %v4838 = vsel %vm1076, %v4825, %v4837
      %v4839 = vrot.slane %v3756, 3
      %v4840 = vrot.slane %v3759, 4
      %v4841 = vor.u32 %v4839, %v4840
      %v4842 = vsel %vm1076, %v4829, %v4841
      %v4843 = vrot.slane %v3250, 3
      %v4844 = vrot.slane %v3246, 4
      %v4845 = vor.u32 %v4843, %v4844
      %v4846 = vsel %vm1076, %v4833, %v4845
      %v4847 = vrot.slane %v3767, 3
      %v4848 = vrot.slane %v3770, 4
      %v4849 = vor.u32 %v4847, %v4848
      %v4850 = vsel %vm1076, %v4837, %v4849
      %v4851 = vrot.slane %v3775, 3
      %v4852 = vrot.slane %v3778, 4
      %v4853 = vor.u32 %v4851, %v4852
      %v4854 = vsel %vm1076, %v4841, %v4853
      %v4855 = vrot.slane %v3258, 3
      %v4856 = vrot.slane %v3254, 4
      %v4857 = vor.u32 %v4855, %v4856
      %v4858 = vsel %vm1076, %v4845, %v4857
      %v4859 = vrot.slane %v3786, 3
      %v4860 = vrot.slane %v3789, 4
      %v4861 = vor.u32 %v4859, %v4860
      %v4862 = vsel %vm1076, %v4849, %v4861
      %v4863 = vrot.slane %v3794, 3
      %v4864 = vrot.slane %v3797, 4
      %v4865 = vor.u32 %v4863, %v4864
      %v4866 = vsel %vm1076, %v4853, %v4865
      %v4867 = vrot.slane %v3266, 3
      %v4868 = vrot.slane %v3262, 4
      %v4869 = vor.u32 %v4867, %v4868
      %v4870 = vsel %vm1076, %v4857, %v4869
      %v4871 = vrot.slane %v3805, 3
      %v4872 = vrot.slane %v3808, 4
      %v4873 = vor.u32 %v4871, %v4872
      %v4874 = vsel %vm1076, %v4861, %v4873
      %v4875 = vrot.slane %v3813, 3
      %v4876 = vrot.slane %v3816, 4
      %v4877 = vor.u32 %v4875, %v4876
      %v4878 = vsel %vm1076, %v4865, %v4877
      %v4879 = vrot.slane %v3274, 3
      %v4880 = vrot.slane %v3270, 4
      %v4881 = vor.u32 %v4879, %v4880
      %v4882 = vsel %vm1076, %v4869, %v4881
      %v4883 = vrot.slane %v3824, 3
      %v4884 = vrot.slane %v3827, 4
      %v4885 = vor.u32 %v4883, %v4884
      %v4886 = vsel %vm1076, %v4873, %v4885
      %v4887 = vrot.slane %v3832, 3
      %v4888 = vrot.slane %v3835, 4
      %v4889 = vor.u32 %v4887, %v4888
      %v4890 = vsel %vm1076, %v4877, %v4889
      %v4891 = vrot.slane %v3282, 3
      %v4892 = vrot.slane %v3278, 4
      %v4893 = vor.u32 %v4891, %v4892
      %v4894 = vsel %vm1076, %v4881, %v4893
      %v4895 = vrot.slane %v3843, 3
      %v4896 = vrot.slane %v3846, 4
      %v4897 = vor.u32 %v4895, %v4896
      %v4898 = vsel %vm1076, %v4885, %v4897
      %v4899 = vrot.slane %v3851, 3
      %v4900 = vrot.slane %v3854, 4
      %v4901 = vor.u32 %v4899, %v4900
      %v4902 = vsel %vm1076, %v4889, %v4901
      %v4903 = vrot.slane %v3290, 3
      %v4904 = vrot.slane %v3286, 4
      %v4905 = vor.u32 %v4903, %v4904
      %v4906 = vsel %vm1076, %v4893, %v4905
      %v4907 = vrot.slane %v3862, 3
      %v4908 = vrot.slane %v3865, 4
      %v4909 = vor.u32 %v4907, %v4908
      %v4910 = vsel %vm1076, %v4897, %v4909
      %v4911 = vrot.slane %v3870, 3
      %v4912 = vrot.slane %v3873, 4
      %v4913 = vor.u32 %v4911, %v4912
      %v4914 = vsel %vm1076, %v4901, %v4913
      %v4915 = vrot.slane %v3298, 3
      %v4916 = vrot.slane %v3294, 4
      %v4917 = vor.u32 %v4915, %v4916
      %v4918 = vsel %vm1076, %v4905, %v4917
      %v4919 = vrot.slane %v3881, 3
      %v4920 = vrot.slane %v3884, 4
      %v4921 = vor.u32 %v4919, %v4920
      %v4922 = vsel %vm1076, %v4909, %v4921
      %v4923 = vrot.slane %v3889, 3
      %v4924 = vrot.slane %v3892, 4
      %v4925 = vor.u32 %v4923, %v4924
      %v4926 = vsel %vm1076, %v4913, %v4925
      %v4927 = vrot.slane %v3306, 3
      %v4928 = vrot.slane %v3302, 4
      %v4929 = vor.u32 %v4927, %v4928
      %v4930 = vsel %vm1076, %v4917, %v4929
      %v4931 = vrot.slane %v3900, 3
      %v4932 = vrot.slane %v3903, 4
      %v4933 = vor.u32 %v4931, %v4932
      %v4934 = vsel %vm1076, %v4921, %v4933
      %v4935 = vrot.slane %v3908, 3
      %v4936 = vrot.slane %v3911, 4
      %v4937 = vor.u32 %v4935, %v4936
      %v4938 = vsel %vm1076, %v4925, %v4937
      %v4939 = vrot.slane %v3314, 3
      %v4940 = vrot.slane %v3310, 4
      %v4941 = vor.u32 %v4939, %v4940
      %v4942 = vsel %vm1076, %v4929, %v4941
      %v4943 = vrot.slane %v3919, 3
      %v4944 = vrot.slane %v3922, 4
      %v4945 = vor.u32 %v4943, %v4944
      %v4946 = vsel %vm1076, %v4933, %v4945
      %v4947 = vrot.slane %v3927, 3
      %v4948 = vrot.slane %v3930, 4
      %v4949 = vor.u32 %v4947, %v4948
      %v4950 = vsel %vm1076, %v4937, %v4949
      %v4951 = vrot.slane %v3322, 3
      %v4952 = vrot.slane %v3318, 4
      %v4953 = vor.u32 %v4951, %v4952
      %v4954 = vsel %vm1076, %v4941, %v4953
      %v4955 = vrot.slane %v3938, 3
      %v4956 = vrot.slane %v3941, 4
      %v4957 = vor.u32 %v4955, %v4956
      %v4958 = vsel %vm1076, %v4945, %v4957
      %v4959 = vrot.slane %v3946, 3
      %v4960 = vrot.slane %v3949, 4
      %v4961 = vor.u32 %v4959, %v4960
      %v4962 = vsel %vm1076, %v4949, %v4961
      %v4963 = vrot.slane %v3330, 3
      %v4964 = vrot.slane %v3326, 4
      %v4965 = vor.u32 %v4963, %v4964
      %v4966 = vsel %vm1076, %v4953, %v4965
      %v4967 = vrot.slane %v3957, 3
      %v4968 = vrot.slane %v3960, 4
      %v4969 = vor.u32 %v4967, %v4968
      %v4970 = vsel %vm1076, %v4957, %v4969
      %v4971 = vrot.slane %v3965, 3
      %v4972 = vrot.slane %v3968, 4
      %v4973 = vor.u32 %v4971, %v4972
      %v4974 = vsel %vm1076, %v4961, %v4973
      %v4975 = vrot.slane %v3338, 3
      %v4976 = vrot.slane %v3334, 4
      %v4977 = vor.u32 %v4975, %v4976
      %v4978 = vsel %vm1076, %v4965, %v4977
      %v4979 = vrot.slane %v3976, 3
      %v4980 = vrot.slane %v3979, 4
      %v4981 = vor.u32 %v4979, %v4980
      %v4982 = vsel %vm1076, %v4969, %v4981
      %v4983 = vrot.slane %v3984, 3
      %v4984 = vrot.slane %v3987, 4
      %v4985 = vor.u32 %v4983, %v4984
      %v4986 = vsel %vm1076, %v4973, %v4985
      %v5107 = vunpack.c.l.b16 %v3448
      %v5108 = vunpack.c.l.b16 %v3449
      %v5109 = vunpack.c.l.b16 %v3450
      %v5110 = vunpack.c.l.b16 %v3451
      %v5111 = vunpack.c.l.b16 %v3452
      %v5112 = vunpack.c.l.b16 %v3453
      %v5113 = vunpack.c.l.b16 %v3454
      %v5114 = vunpack.c.l.b16 %v3455
      %v5115 = vunpack.c.l.b16 %v3456
      %v5116 = vunpack.c.l.b16 %v3457
      %v5117 = vunpack.c.l.b16 %v3458
      %v5118 = vunpack.c.l.b16 %v3459
      %v5119 = vunpack.c.l.b16 %v3460
      %v5120 = vunpack.c.l.b16 %v3461
      %v5121 = vunpack.c.l.b16 %v3462
      %v5122 = vunpack.c.l.b16 %v3463
      %v5123 = vunpack.c.l.b16 %v3464
      %v5124 = vunpack.c.l.b16 %v3465
      %v5125 = vunpack.c.l.b16 %v3466
      %v5126 = vunpack.c.l.b16 %v3467
      %v5127 = vunpack.c.l.b16 %v3468
      %v5128 = vunpack.c.l.b16 %v3469
      %v5129 = vunpack.c.l.b16 %v3470
      %v5130 = vunpack.c.l.b16 %v3471
      %v5131 = vunpack.c.l.b16 %v3472
      %v5132 = vunpack.c.l.b16 %v3473
      %v5133 = vunpack.c.l.b16 %v3474
      %v5134 = vunpack.c.l.b16 %v3475
      %v5135 = vunpack.c.l.b16 %v3476
      %v5136 = vunpack.c.l.b16 %v3477
      %v5137 = vunpack.c.l.b16 %v3478
      %v5138 = vunpack.c.l.b16 %v3479
      %v5139 = vunpack.c.l.b16 %v3480
      %v5140 = vunpack.c.l.b16 %v3481
      %v5141 = vunpack.c.l.b16 %v3482
      %v5142 = vunpack.c.l.b16 %v3483
      %v5143 = vunpack.c.l.b16 %v3484
      %v5144 = vunpack.c.l.b16 %v3485
      %v5145 = vunpack.c.l.b16 %v3486
      %v5146 = vunpack.c.l.b16 %v3487
      %v5147 = vunpack.c.l.b16 %v3488
      %v5148 = vunpack.c.l.b16 %v3489
      %v5149 = vunpack.c.l.b16 %v3490
      %v5150 = vunpack.c.l.b16 %v3491
      %v5151 = vunpack.c.l.b16 %v3492
      %v5152 = vunpack.c.l.b16 %v3493
      %v5153 = vunpack.c.l.b16 %v3494
      %v5154 = vunpack.c.l.b16 %v3495
      %v5155 = vpack.c.b16 %v5108, %v5107
      %v5156 = vpack.c.b16 %v5110, %v5109
      %v5157 = vpack.c.b16 %v5112, %v5111
      %v5158 = vpack.c.b16 %v5114, %v5113
      %v5159 = vpack.c.b16 %v5116, %v5115
      %v5160 = vpack.c.b16 %v5118, %v5117
      %v5161 = vpack.c.b16 %v5120, %v5119
      %v5162 = vpack.c.b16 %v5122, %v5121
      %v5163 = vpack.c.b16 %v5124, %v5123
      %v5164 = vpack.c.b16 %v5126, %v5125
      %v5165 = vpack.c.b16 %v5128, %v5127
      %v5166 = vpack.c.b16 %v5130, %v5129
      %v5167 = vpack.c.b16 %v5132, %v5131
      %v5168 = vpack.c.b16 %v5134, %v5133
      %v5169 = vpack.c.b16 %v5136, %v5135
      %v5170 = vpack.c.b16 %v5138, %v5137
      %v5171 = vpack.c.b16 %v5140, %v5139
      %v5172 = vpack.c.b16 %v5142, %v5141
      %v5173 = vpack.c.b16 %v5144, %v5143
      %v5174 = vpack.c.b16 %v5146, %v5145
      %v5175 = vpack.c.b16 %v5148, %v5147
      %v5176 = vpack.c.b16 %v5150, %v5149
      %v5177 = vpack.c.b16 %v5152, %v5151
      %v5178 = vpack.c.b16 %v5154, %v5153
      %5203 = vmatprep.subr.bf16.mxu0 0
      %5204 = vmatpush1.bf16.msra.mxu0 %v5155
      %5205 = vmatprep.subr.bf16.mxu0 0
      %5206 = vmatpush1.bf16.msra.mxu0 %v5156
      %5207 = vmatprep.subr.bf16.mxu0 0
      %5208 = vmatpush1.bf16.msra.mxu0 %v5157
      %5209 = vmatprep.subr.bf16.mxu0 0
      %5210 = vmatpush1.bf16.msra.mxu0 %v5158
      %5211 = vmatprep.subr.bf16.mxu0 0
      %5212 = vmatpush1.bf16.msra.mxu0 %v5159
      %5213 = vmatprep.subr.bf16.mxu0 0
      %5214 = vmatpush1.bf16.msra.mxu0 %v5160
      %5215 = vmatprep.subr.bf16.mxu0 0
      %5216 = vmatpush1.bf16.msra.mxu0 %v5161
      %5217 = vmatprep.subr.bf16.mxu0 0
      %5218 = vmatpush1.bf16.msra.mxu0 %v5162
      %5219 = vmatprep.subr.bf16.mxu0 0
      %5220 = vmatpush1.bf16.msra.mxu0 %v5163
      %5221 = vmatprep.subr.bf16.mxu0 0
      %5222 = vmatpush1.bf16.msra.mxu0 %v5164
      %5223 = vmatprep.subr.bf16.mxu0 0
      %5224 = vmatpush1.bf16.msra.mxu0 %v5165
      %5225 = vmatprep.subr.bf16.mxu0 0
      %5226 = vmatpush1.bf16.msra.mxu0 %v5166
      %5227 = vmatprep.subr.bf16.mxu0 0
      %5228 = vmatpush1.bf16.msra.mxu0 %v5167
      %5229 = vmatprep.subr.bf16.mxu0 0
      %5230 = vmatpush1.bf16.msra.mxu0 %v5168
      %5231 = vmatprep.subr.bf16.mxu0 0
      %5232 = vmatpush1.bf16.msra.mxu0 %v5169
      %5233 = vmatprep.subr.bf16.mxu0 0
      %5234 = vmatpush1.bf16.msra.mxu0 %v5170
      %5235 = vmatprep.mubr.bf16.mxu0 %v4696
      %5236 = vmatmul.mubr.bf16.gmra.mrb[0].mxu0 %v4682
      %v5237 = vpop.f32.mrb[0].mxu0
      %v5238 = vadd.f32 %v4486, %v5237
      %v5239 = vpop.f32.mrb[0].mxu0
      %v5240 = vpop.f32.mrb[0].mxu0
      %v5241 = vadd.f32 %v4489, %v5240
      %v5242 = vpop.f32.mrb[0].mxu0
      %5243 = vmatprep.mubr.bf16.mxu0 %v4718
      %5244 = vmatmul.mubr.bf16.gmra.mrb[0].mxu0 %v4714
      %v5245 = vpop.f32.mrb[0].mxu0
      %v5246 = vadd.f32 %v4494, %v5245
      %v5247 = vpop.f32.mrb[0].mxu0
      %v5248 = vpop.f32.mrb[0].mxu0
      %v5249 = vadd.f32 %v4497, %v5248
      %v5250 = vpop.f32.mrb[0].mxu0
      %5251 = vmatprep.mubr.bf16.mxu0 %v4730
      %5252 = vmatmul.mubr.bf16.gmra.mrb[0].mxu0 %v4726
      %v5253 = vpop.f32.mrb[0].mxu0
      %v5254 = vadd.f32 %v4502, %v5253
      %v5255 = vpop.f32.mrb[0].mxu0
      %v5256 = vpop.f32.mrb[0].mxu0
      %v5257 = vadd.f32 %v4505, %v5256
      %v5258 = vpop.f32.mrb[0].mxu0
      %5259 = vmatprep.mubr.bf16.mxu0 %v4742
      %5260 = vmatmul.mubr.bf16.gmra.mrb[0].mxu0 %v4738
      %v5261 = vpop.f32.mrb[0].mxu0
      %v5262 = vadd.f32 %v4510, %v5261
      %v5263 = vpop.f32.mrb[0].mxu0
      %v5264 = vpop.f32.mrb[0].mxu0
      %v5265 = vadd.f32 %v4513, %v5264
      %v5266 = vpop.f32.mrb[0].mxu0
      %5267 = vmatprep.mubr.bf16.mxu0 %v4754
      %5268 = vmatmul.mubr.bf16.gmra.mrb[0].mxu0 %v4750
      %v5269 = vpop.f32.mrb[0].mxu0
      %v5270 = vadd.f32 %v4518, %v5269
      %v5271 = vpop.f32.mrb[0].mxu0
      %v5272 = vpop.f32.mrb[0].mxu0
      %v5273 = vadd.f32 %v4521, %v5272
      %v5274 = vpop.f32.mrb[0].mxu0
      %5275 = vmatprep.mubr.bf16.mxu0 %v4766
      %5276 = vmatmul.mubr.bf16.gmra.mrb[0].mxu0 %v4762
      %v5277 = vpop.f32.mrb[0].mxu0
      %v5278 = vadd.f32 %v4526, %v5277
      %v5279 = vpop.f32.mrb[0].mxu0
      %v5280 = vpop.f32.mrb[0].mxu0
      %v5281 = vadd.f32 %v4529, %v5280
      %v5282 = vpop.f32.mrb[0].mxu0
      %5283 = vmatprep.mubr.bf16.mxu0 %v4778
      %5284 = vmatmul.mubr.bf16.gmra.mrb[0].mxu0 %v4774
      %v5285 = vpop.f32.mrb[0].mxu0
      %v5286 = vadd.f32 %v4534, %v5285
      %v5287 = vpop.f32.mrb[0].mxu0
      %v5288 = vpop.f32.mrb[0].mxu0
      %v5289 = vadd.f32 %v4537, %v5288
      %v5290 = vpop.f32.mrb[0].mxu0
      %5291 = vmatprep.mubr.bf16.mxu0 %v4790
      %5292 = vmatmul.mubr.bf16.gmra.mrb[0].mxu0 %v4786
      %v5293 = vpop.f32.mrb[0].mxu0
      %v5294 = vadd.f32 %v4542, %v5293
      %v5295 = vpop.f32.mrb[0].mxu0
      %v5296 = vpop.f32.mrb[0].mxu0
      %v5297 = vadd.f32 %v4545, %v5296
      %v5298 = vpop.f32.mrb[0].mxu0
      %5299 = vmatprep.mubr.bf16.mxu0 %v4802
      %5300 = vmatmul.mubr.bf16.gmra.mrb[0].mxu0 %v4798
      %v5301 = vpop.f32.mrb[0].mxu0
      %v5302 = vadd.f32 %v4550, %v5301
      %v5303 = vpop.f32.mrb[0].mxu0
      %v5304 = vpop.f32.mrb[0].mxu0
      %v5305 = vadd.f32 %v4553, %v5304
      %v5306 = vpop.f32.mrb[0].mxu0
      %5307 = vmatprep.mubr.bf16.mxu0 %v4814
      %5308 = vmatmul.mubr.bf16.gmra.mrb[0].mxu0 %v4810
      %v5309 = vpop.f32.mrb[0].mxu0
      %v5310 = vadd.f32 %v4558, %v5309
      %v5311 = vpop.f32.mrb[0].mxu0
      %v5312 = vpop.f32.mrb[0].mxu0
      %v5313 = vadd.f32 %v4561, %v5312
      %v5314 = vpop.f32.mrb[0].mxu0
      %5315 = vmatprep.mubr.bf16.mxu0 %v4826
      %5316 = vmatmul.mubr.bf16.gmra.mrb[0].mxu0 %v4822
      %v5317 = vpop.f32.mrb[0].mxu0
      %v5318 = vadd.f32 %v4566, %v5317
      %v5319 = vpop.f32.mrb[0].mxu0
      %v5320 = vpop.f32.mrb[0].mxu0
      %v5321 = vadd.f32 %v4569, %v5320
      %v5322 = vpop.f32.mrb[0].mxu0
      %5323 = vmatprep.mubr.bf16.mxu0 %v4838
      %5324 = vmatmul.mubr.bf16.gmra.mrb[0].mxu0 %v4834
      %v5325 = vpop.f32.mrb[0].mxu0
      %v5326 = vadd.f32 %v4574, %v5325
      %v5327 = vpop.f32.mrb[0].mxu0
      %v5328 = vpop.f32.mrb[0].mxu0
      %v5329 = vadd.f32 %v4577, %v5328
      %v5330 = vpop.f32.mrb[0].mxu0
      %5331 = vmatprep.mubr.bf16.mxu0 %v4850
      %5332 = vmatmul.mubr.bf16.gmra.mrb[0].mxu0 %v4846
      %v5333 = vpop.f32.mrb[0].mxu0
      %v5334 = vadd.f32 %v4582, %v5333
      %v5335 = vpop.f32.mrb[0].mxu0
      %v5336 = vpop.f32.mrb[0].mxu0
      %v5337 = vadd.f32 %v4585, %v5336
      %v5338 = vpop.f32.mrb[0].mxu0
      %5339 = vmatprep.mubr.bf16.mxu0 %v4862
      %5340 = vmatmul.mubr.bf16.gmra.mrb[0].mxu0 %v4858
      %v5341 = vpop.f32.mrb[0].mxu0
      %v5342 = vadd.f32 %v4590, %v5341
      %v5343 = vpop.f32.mrb[0].mxu0
      %v5344 = vpop.f32.mrb[0].mxu0
      %v5345 = vadd.f32 %v4593, %v5344
      %v5346 = vpop.f32.mrb[0].mxu0
      %5347 = vmatprep.mubr.bf16.mxu0 %v4874
      %5348 = vmatmul.mubr.bf16.gmra.mrb[0].mxu0 %v4870
      %v5349 = vpop.f32.mrb[0].mxu0
      %v5350 = vadd.f32 %v4598, %v5349
      %v5351 = vpop.f32.mrb[0].mxu0
      %v5352 = vpop.f32.mrb[0].mxu0
      %v5353 = vadd.f32 %v4601, %v5352
      %v5354 = vpop.f32.mrb[0].mxu0
      %5355 = vmatprep.mubr.bf16.mxu0 %v4886
      %5356 = vmatmul.mubr.bf16.gmra.mrb[0].mxu0 %v4882
      %v5357 = vpop.f32.mrb[0].mxu0
      %v5358 = vadd.f32 %v4606, %v5357
      %v5359 = vpop.f32.mrb[0].mxu0
      %v5360 = vpop.f32.mrb[0].mxu0
      %v5361 = vadd.f32 %v4609, %v5360
      %v5362 = vpop.f32.mrb[0].mxu0
      %5363 = vmatprep.mubr.bf16.mxu0 %v4898
      %5364 = vmatmul.mubr.bf16.gmra.mrb[0].mxu0 %v4894
      %v5365 = vpop.f32.mrb[0].mxu0
      %v5366 = vadd.f32 %v4614, %v5365
      %v5367 = vpop.f32.mrb[0].mxu0
      %v5368 = vpop.f32.mrb[0].mxu0
      %v5369 = vadd.f32 %v4617, %v5368
      %v5370 = vpop.f32.mrb[0].mxu0
      %5371 = vmatprep.mubr.bf16.mxu0 %v4910
      %5372 = vmatmul.mubr.bf16.gmra.mrb[0].mxu0 %v4906
      %v5373 = vpop.f32.mrb[0].mxu0
      %v5374 = vadd.f32 %v4622, %v5373
      %v5375 = vpop.f32.mrb[0].mxu0
      %v5376 = vpop.f32.mrb[0].mxu0
      %v5377 = vadd.f32 %v4625, %v5376
      %v5378 = vpop.f32.mrb[0].mxu0
      %5379 = vmatprep.mubr.bf16.mxu0 %v4922
      %5380 = vmatmul.mubr.bf16.gmra.mrb[0].mxu0 %v4918
      %v5381 = vpop.f32.mrb[0].mxu0
      %v5382 = vadd.f32 %v4630, %v5381
      %v5383 = vpop.f32.mrb[0].mxu0
      %v5384 = vpop.f32.mrb[0].mxu0
      %v5385 = vadd.f32 %v4633, %v5384
      %v5386 = vpop.f32.mrb[0].mxu0
      %5387 = vmatprep.mubr.bf16.mxu0 %v4934
      %5388 = vmatmul.mubr.bf16.gmra.mrb[0].mxu0 %v4930
      %v5389 = vpop.f32.mrb[0].mxu0
      %v5390 = vadd.f32 %v4638, %v5389
      %v5391 = vpop.f32.mrb[0].mxu0
      %v5392 = vpop.f32.mrb[0].mxu0
      %v5393 = vadd.f32 %v4641, %v5392
      %v5394 = vpop.f32.mrb[0].mxu0
      %5395 = vmatprep.mubr.bf16.mxu0 %v4946
      %5396 = vmatmul.mubr.bf16.gmra.mrb[0].mxu0 %v4942
      %v5397 = vpop.f32.mrb[0].mxu0
      %v5398 = vadd.f32 %v4646, %v5397
      %v5399 = vpop.f32.mrb[0].mxu0
      %v5400 = vpop.f32.mrb[0].mxu0
      %v5401 = vadd.f32 %v4649, %v5400
      %v5402 = vpop.f32.mrb[0].mxu0
      %5403 = vmatprep.mubr.bf16.mxu0 %v4958
      %5404 = vmatmul.mubr.bf16.gmra.mrb[0].mxu0 %v4954
      %v5405 = vpop.f32.mrb[0].mxu0
      %v5406 = vadd.f32 %v4654, %v5405
      %v5407 = vpop.f32.mrb[0].mxu0
      %v5408 = vpop.f32.mrb[0].mxu0
      %v5409 = vadd.f32 %v4657, %v5408
      %v5410 = vpop.f32.mrb[0].mxu0
      %5411 = vmatprep.mubr.bf16.mxu0 %v4970
      %5412 = vmatmul.mubr.bf16.gmra.mrb[0].mxu0 %v4966
      %v5413 = vpop.f32.mrb[0].mxu0
      %v5414 = vadd.f32 %v4662, %v5413
      %v5415 = vpop.f32.mrb[0].mxu0
      %v5416 = vpop.f32.mrb[0].mxu0
      %v5417 = vadd.f32 %v4665, %v5416
      %v5418 = vpop.f32.mrb[0].mxu0
      %5419 = vmatprep.mubr.bf16.mxu0 %v4982
      %5420 = vmatmul.mubr.bf16.gmra.mrb[0].mxu0 %v4978
      %v5421 = vpop.f32.mrb[0].mxu0
      %v5422 = vadd.f32 %v4670, %v5421
      %v5423 = vpop.f32.mrb[0].mxu0
      %v5424 = vpop.f32.mrb[0].mxu0
      %v5425 = vadd.f32 %v4673, %v5424
      %v5426 = vpop.f32.mrb[0].mxu0
      %5427 = vdwg.mxu0
      %5428 = vmatprep.subr.bf16.mxu0 0
      %5429 = vmatpush1.bf16.msra.mxu0 %v5171
      %5430 = vmatprep.subr.bf16.mxu0 0
      %5431 = vmatpush1.bf16.msra.mxu0 %v5172
      %5432 = vmatprep.subr.bf16.mxu0 0
      %5433 = vmatpush1.bf16.msra.mxu0 %v5173
      %5434 = vmatprep.subr.bf16.mxu0 0
      %5435 = vmatpush1.bf16.msra.mxu0 %v5174
      %5436 = vmatprep.subr.bf16.mxu0 0
      %5437 = vmatpush1.bf16.msra.mxu0 %v5175
      %5438 = vmatprep.subr.bf16.mxu0 0
      %5439 = vmatpush1.bf16.msra.mxu0 %v5176
      %5440 = vmatprep.subr.bf16.mxu0 0
      %5441 = vmatpush1.bf16.msra.mxu0 %v5177
      %5442 = vmatprep.subr.bf16.mxu0 0
      %5443 = vmatpush1.bf16.msra.mxu0 %v5178
      %5444 = vmatprep.subr.bf16.mxu0 0
      %5445 = vmatpush1.bf16.msra.mxu0 0
      %5446 = vmatprep.subr.bf16.mxu0 0
      %5447 = vmatpush1.bf16.msra.mxu0 0
      %5448 = vmatprep.subr.bf16.mxu0 0
      %5449 = vmatpush1.bf16.msra.mxu0 0
      %5450 = vmatprep.subr.bf16.mxu0 0
      %5451 = vmatpush1.bf16.msra.mxu0 0
      %5452 = vmatprep.subr.bf16.mxu0 0
      %5453 = vmatpush1.bf16.msra.mxu0 0
      %5454 = vmatprep.subr.bf16.mxu0 0
      %5455 = vmatpush1.bf16.msra.mxu0 0
      %5456 = vmatprep.subr.bf16.mxu0 0
      %5457 = vmatpush1.bf16.msra.mxu0 0
      %5458 = vmatprep.subr.bf16.mxu0 0
      %5459 = vmatpush1.bf16.msra.mxu0 0
      %5460 = vmatprep.mubr.bf16.mxu0 0
      %5461 = vmatmul.mubr.bf16.gmra.mrb[0].mxu0 %v4710
      %v5462 = vpop.f32.mrb[0].mxu0
      %v5463 = vadd.f32 %v5238, %v5462
      %v5464 = vpop.f32.mrb[0].mxu0
      %v5465 = vpop.f32.mrb[0].mxu0
      %v5466 = vadd.f32 %v5241, %v5465
      %v5467 = vpop.f32.mrb[0].mxu0
      %5468 = vmatprep.mubr.bf16.mxu0 0
      %5469 = vmatmul.mubr.bf16.gmra.mrb[0].mxu0 %v4722
      %v5470 = vpop.f32.mrb[0].mxu0
      %v5471 = vadd.f32 %v5246, %v5470
      %v5472 = vpop.f32.mrb[0].mxu0
      %v5473 = vpop.f32.mrb[0].mxu0
      %v5474 = vadd.f32 %v5249, %v5473
      %v5475 = vpop.f32.mrb[0].mxu0
      %5476 = vmatprep.mubr.bf16.mxu0 0
      %5477 = vmatmul.mubr.bf16.gmra.mrb[0].mxu0 %v4734
      %v5478 = vpop.f32.mrb[0].mxu0
      %v5479 = vadd.f32 %v5254, %v5478
      %v5480 = vpop.f32.mrb[0].mxu0
      %v5481 = vpop.f32.mrb[0].mxu0
      %v5482 = vadd.f32 %v5257, %v5481
      %v5483 = vpop.f32.mrb[0].mxu0
      %5484 = vmatprep.mubr.bf16.mxu0 0
      %5485 = vmatmul.mubr.bf16.gmra.mrb[0].mxu0 %v4746
      %v5486 = vpop.f32.mrb[0].mxu0
      %v5487 = vadd.f32 %v5262, %v5486
      %v5488 = vpop.f32.mrb[0].mxu0
      %v5489 = vpop.f32.mrb[0].mxu0
      %v5490 = vadd.f32 %v5265, %v5489
      %v5491 = vpop.f32.mrb[0].mxu0
      %5492 = vmatprep.mubr.bf16.mxu0 0
      %5493 = vmatmul.mubr.bf16.gmra.mrb[0].mxu0 %v4758
      %v5494 = vpop.f32.mrb[0].mxu0
      %v5495 = vadd.f32 %v5270, %v5494
      %v5496 = vpop.f32.mrb[0].mxu0
      %v5497 = vpop.f32.mrb[0].mxu0
      %v5498 = vadd.f32 %v5273, %v5497
      %v5499 = vpop.f32.mrb[0].mxu0
      %5500 = vmatprep.mubr.bf16.mxu0 0
      %5501 = vmatmul.mubr.bf16.gmra.mrb[0].mxu0 %v4770
      %v5502 = vpop.f32.mrb[0].mxu0
      %v5503 = vadd.f32 %v5278, %v5502
      %v5504 = vpop.f32.mrb[0].mxu0
      %v5505 = vpop.f32.mrb[0].mxu0
      %v5506 = vadd.f32 %v5281, %v5505
      %v5507 = vpop.f32.mrb[0].mxu0
      %5508 = vmatprep.mubr.bf16.mxu0 0
      %5509 = vmatmul.mubr.bf16.gmra.mrb[0].mxu0 %v4782
      %v5510 = vpop.f32.mrb[0].mxu0
      %v5511 = vadd.f32 %v5286, %v5510
      %v5512 = vpop.f32.mrb[0].mxu0
      %v5513 = vpop.f32.mrb[0].mxu0
      %v5514 = vadd.f32 %v5289, %v5513
      %v5515 = vpop.f32.mrb[0].mxu0
      %5516 = vmatprep.mubr.bf16.mxu0 0
      %5517 = vmatmul.mubr.bf16.gmra.mrb[0].mxu0 %v4794
      %v5518 = vpop.f32.mrb[0].mxu0
      %v5519 = vadd.f32 %v5294, %v5518
      %v5520 = vpop.f32.mrb[0].mxu0
      %v5521 = vpop.f32.mrb[0].mxu0
      %v5522 = vadd.f32 %v5297, %v5521
      %v5523 = vpop.f32.mrb[0].mxu0
      %5524 = vmatprep.mubr.bf16.mxu0 0
      %5525 = vmatmul.mubr.bf16.gmra.mrb[0].mxu0 %v4806
      %v5526 = vpop.f32.mrb[0].mxu0
      %v5527 = vadd.f32 %v5302, %v5526
      %v5528 = vpop.f32.mrb[0].mxu0
      %v5529 = vpop.f32.mrb[0].mxu0
      %v5530 = vadd.f32 %v5305, %v5529
      %v5531 = vpop.f32.mrb[0].mxu0
      %5532 = vmatprep.mubr.bf16.mxu0 0
      %5533 = vmatmul.mubr.bf16.gmra.mrb[0].mxu0 %v4818
      %v5534 = vpop.f32.mrb[0].mxu0
      %v5535 = vadd.f32 %v5310, %v5534
      %v5536 = vpop.f32.mrb[0].mxu0
      %v5537 = vpop.f32.mrb[0].mxu0
      %v5538 = vadd.f32 %v5313, %v5537
      %v5539 = vpop.f32.mrb[0].mxu0
      %5540 = vmatprep.mubr.bf16.mxu0 0
      %5541 = vmatmul.mubr.bf16.gmra.mrb[0].mxu0 %v4830
      %v5542 = vpop.f32.mrb[0].mxu0
      %v5543 = vadd.f32 %v5318, %v5542
      %v5544 = vpop.f32.mrb[0].mxu0
      %v5545 = vpop.f32.mrb[0].mxu0
      %v5546 = vadd.f32 %v5321, %v5545
      %v5547 = vpop.f32.mrb[0].mxu0
      %5548 = vmatprep.mubr.bf16.mxu0 0
      %5549 = vmatmul.mubr.bf16.gmra.mrb[0].mxu0 %v4842
      %v5550 = vpop.f32.mrb[0].mxu0
      %v5551 = vadd.f32 %v5326, %v5550
      %v5552 = vpop.f32.mrb[0].mxu0
      %v5553 = vpop.f32.mrb[0].mxu0
      %v5554 = vadd.f32 %v5329, %v5553
      %v5555 = vpop.f32.mrb[0].mxu0
      %5556 = vmatprep.mubr.bf16.mxu0 0
      %5557 = vmatmul.mubr.bf16.gmra.mrb[0].mxu0 %v4854
      %v5558 = vpop.f32.mrb[0].mxu0
      %v5559 = vadd.f32 %v5334, %v5558
      %v5560 = vpop.f32.mrb[0].mxu0
      %v5561 = vpop.f32.mrb[0].mxu0
      %v5562 = vadd.f32 %v5337, %v5561
      %v5563 = vpop.f32.mrb[0].mxu0
      %5564 = vmatprep.mubr.bf16.mxu0 0
      %5565 = vmatmul.mubr.bf16.gmra.mrb[0].mxu0 %v4866
      %v5566 = vpop.f32.mrb[0].mxu0
      %v5567 = vadd.f32 %v5342, %v5566
      %v5568 = vpop.f32.mrb[0].mxu0
      %v5569 = vpop.f32.mrb[0].mxu0
      %v5570 = vadd.f32 %v5345, %v5569
      %v5571 = vpop.f32.mrb[0].mxu0
      %5572 = vmatprep.mubr.bf16.mxu0 0
      %5573 = vmatmul.mubr.bf16.gmra.mrb[0].mxu0 %v4878
      %v5574 = vpop.f32.mrb[0].mxu0
      %v5575 = vadd.f32 %v5350, %v5574
      %v5576 = vpop.f32.mrb[0].mxu0
      %v5577 = vpop.f32.mrb[0].mxu0
      %v5578 = vadd.f32 %v5353, %v5577
      %v5579 = vpop.f32.mrb[0].mxu0
      %5580 = vmatprep.mubr.bf16.mxu0 0
      %5581 = vmatmul.mubr.bf16.gmra.mrb[0].mxu0 %v4890
      %v5582 = vpop.f32.mrb[0].mxu0
      %v5583 = vadd.f32 %v5358, %v5582
      %v5584 = vpop.f32.mrb[0].mxu0
      %v5585 = vpop.f32.mrb[0].mxu0
      %v5586 = vadd.f32 %v5361, %v5585
      %v5587 = vpop.f32.mrb[0].mxu0
      %5588 = vmatprep.mubr.bf16.mxu0 0
      %5589 = vmatmul.mubr.bf16.gmra.mrb[0].mxu0 %v4902
      %v5590 = vpop.f32.mrb[0].mxu0
      %v5591 = vadd.f32 %v5366, %v5590
      %v5592 = vpop.f32.mrb[0].mxu0
      %v5593 = vpop.f32.mrb[0].mxu0
      %v5594 = vadd.f32 %v5369, %v5593
      %v5595 = vpop.f32.mrb[0].mxu0
      %5596 = vmatprep.mubr.bf16.mxu0 0
      %5597 = vmatmul.mubr.bf16.gmra.mrb[0].mxu0 %v4914
      %v5598 = vpop.f32.mrb[0].mxu0
      %v5599 = vadd.f32 %v5374, %v5598
      %v5600 = vpop.f32.mrb[0].mxu0
      %v5601 = vpop.f32.mrb[0].mxu0
      %v5602 = vadd.f32 %v5377, %v5601
      %v5603 = vpop.f32.mrb[0].mxu0
      %5604 = vmatprep.mubr.bf16.mxu0 0
      %5605 = vmatmul.mubr.bf16.gmra.mrb[0].mxu0 %v4926
      %v5606 = vpop.f32.mrb[0].mxu0
      %v5607 = vadd.f32 %v5382, %v5606
      %v5608 = vpop.f32.mrb[0].mxu0
      %v5609 = vpop.f32.mrb[0].mxu0
      %v5610 = vadd.f32 %v5385, %v5609
      %v5611 = vpop.f32.mrb[0].mxu0
      %5612 = vmatprep.mubr.bf16.mxu0 0
      %5613 = vmatmul.mubr.bf16.gmra.mrb[0].mxu0 %v4938
      %v5614 = vpop.f32.mrb[0].mxu0
      %v5615 = vadd.f32 %v5390, %v5614
      %v5616 = vpop.f32.mrb[0].mxu0
      %v5617 = vpop.f32.mrb[0].mxu0
      %v5618 = vadd.f32 %v5393, %v5617
      %v5619 = vpop.f32.mrb[0].mxu0
      %5620 = vmatprep.mubr.bf16.mxu0 0
      %5621 = vmatmul.mubr.bf16.gmra.mrb[0].mxu0 %v4950
      %v5622 = vpop.f32.mrb[0].mxu0
      %v5623 = vadd.f32 %v5398, %v5622
      %v5624 = vpop.f32.mrb[0].mxu0
      %v5625 = vpop.f32.mrb[0].mxu0
      %v5626 = vadd.f32 %v5401, %v5625
      %v5627 = vpop.f32.mrb[0].mxu0
      %5628 = vmatprep.mubr.bf16.mxu0 0
      %5629 = vmatmul.mubr.bf16.gmra.mrb[0].mxu0 %v4962
      %v5630 = vpop.f32.mrb[0].mxu0
      %v5631 = vadd.f32 %v5406, %v5630
      %v5632 = vpop.f32.mrb[0].mxu0
      %v5633 = vpop.f32.mrb[0].mxu0
      %v5634 = vadd.f32 %v5409, %v5633
      %v5635 = vpop.f32.mrb[0].mxu0
      %5636 = vmatprep.mubr.bf16.mxu0 0
      %5637 = vmatmul.mubr.bf16.gmra.mrb[0].mxu0 %v4974
      %v5638 = vpop.f32.mrb[0].mxu0
      %v5639 = vadd.f32 %v5414, %v5638
      %v5640 = vpop.f32.mrb[0].mxu0
      %v5641 = vpop.f32.mrb[0].mxu0
      %v5642 = vadd.f32 %v5417, %v5641
      %v5643 = vpop.f32.mrb[0].mxu0
      %5644 = vmatprep.mubr.bf16.mxu0 0
      %5645 = vmatmul.mubr.bf16.gmra.mrb[0].mxu0 %v4986
      %v5646 = vpop.f32.mrb[0].mxu0
      %v5647 = vadd.f32 %v5422, %v5646
      %v5648 = vpop.f32.mrb[0].mxu0
      %v5649 = vpop.f32.mrb[0].mxu0
      %v5650 = vadd.f32 %v5425, %v5649
      %v5651 = vpop.f32.mrb[0].mxu0
      %5652 = vdwg.mxu0
      %s5653 = scalar_lea.vmem %s4, 384
      %v5654 = vld [vmem:[%s5653] sm:$0xf]
      %v5655 = vld [vmem:[%s5653 + $0x4] sm:$0xf]
      %v5656 = vld [vmem:[%s5653 + $0x8] sm:$0xf]
      %v5657 = vld [vmem:[%s5653 + $0xc] sm:$0xf]
      %v5658 = vld [vmem:[%s5653 + $0x10] sm:$0xf]
      %v5659 = vld [vmem:[%s5653 + $0x14] sm:$0xf]
      %v5660 = vld [vmem:[%s5653 + $0x18] sm:$0xf]
      %v5661 = vld [vmem:[%s5653 + $0x1c] sm:$0xf]
      %v5662 = vld [vmem:[%s5653 + $0x20] sm:$0xf]
      %v5663 = vld [vmem:[%s5653 + $0x24] sm:$0xf]
      %v5664 = vld [vmem:[%s5653 + $0x28] sm:$0xf]
      %v5665 = vld [vmem:[%s5653 + $0x2c] sm:$0xf]
      %v5666 = vld [vmem:[%s5653 + $0x30] sm:$0xf]
      %v5667 = vld [vmem:[%s5653 + $0x34] sm:$0xf]
      %v5668 = vld [vmem:[%s5653 + $0x38] sm:$0xf]
      %v5669 = vld [vmem:[%s5653 + $0x3c] sm:$0xf]
      %v5670 = vld [vmem:[%s5653 + $0x40] sm:$0xf]
      %v5671 = vld [vmem:[%s5653 + $0x44] sm:$0xf]
      %v5672 = vld [vmem:[%s5653 + $0x48] sm:$0xf]
      %v5673 = vld [vmem:[%s5653 + $0x4c] sm:$0xf]
      %v5674 = vld [vmem:[%s5653 + $0x50] sm:$0xf]
      %v5675 = vld [vmem:[%s5653 + $0x54] sm:$0xf]
      %v5676 = vld [vmem:[%s5653 + $0x58] sm:$0xf]
      %v5677 = vld [vmem:[%s5653 + $0x5c] sm:$0xf]
      %v5678 = vld [vmem:[%s5653 + $0x60] sm:$0xf]
      %v5679 = vld [vmem:[%s5653 + $0x64] sm:$0xf]
      %v5680 = vld [vmem:[%s5653 + $0x68] sm:$0xf]
      %v5681 = vld [vmem:[%s5653 + $0x6c] sm:$0xf]
      %v5682 = vld [vmem:[%s5653 + $0x70] sm:$0xf]
      %v5683 = vld [vmem:[%s5653 + $0x74] sm:$0xf]
      %v5684 = vld [vmem:[%s5653 + $0x78] sm:$0xf]
      %v5685 = vld [vmem:[%s5653 + $0x7c] sm:$0xf]
      %v5686 = vld [vmem:[%s5653 + $0x80] sm:$0xf]
      %v5687 = vld [vmem:[%s5653 + $0x84] sm:$0xf]
      %v5688 = vld [vmem:[%s5653 + $0x88] sm:$0xf]
      %v5689 = vld [vmem:[%s5653 + $0x8c] sm:$0xf]
      %v5690 = vld [vmem:[%s5653 + $0x90] sm:$0xf]
      %v5691 = vld [vmem:[%s5653 + $0x94] sm:$0xf]
      %v5692 = vld [vmem:[%s5653 + $0x98] sm:$0xf]
      %v5693 = vld [vmem:[%s5653 + $0x9c] sm:$0xf]
      %v5694 = vld [vmem:[%s5653 + $0xa0] sm:$0xf]
      %v5695 = vld [vmem:[%s5653 + $0xa4] sm:$0xf]
      %v5696 = vld [vmem:[%s5653 + $0xa8] sm:$0xf]
      %v5697 = vld [vmem:[%s5653 + $0xac] sm:$0xf]
      %v5698 = vld [vmem:[%s5653 + $0xb0] sm:$0xf]
      %v5699 = vld [vmem:[%s5653 + $0xb4] sm:$0xf]
      %v5700 = vld [vmem:[%s5653 + $0xb8] sm:$0xf]
      %v5701 = vld [vmem:[%s5653 + $0xbc] sm:$0xf]
      %v5702 = vrot.slane %v3346, 3
      %v5703 = vrot.slane %v3342, 4
      %v5704 = vor.u32 %v5702, %v5703
      %v5705 = vsel %vm1076, %v4977, %v5704
      %v5706 = vrot.slane %v3995, 3
      %v5707 = vrot.slane %v3998, 4
      %v5708 = vor.u32 %v5706, %v5707
      %v5709 = vsel %vm1076, %v4981, %v5708
      %v5710 = vrot.slane %v4003, 3
      %v5711 = vrot.slane %v4006, 4
      %v5712 = vor.u32 %v5710, %v5711
      %v5713 = vsel %vm1076, %v4985, %v5712
      %v5714 = vrot.slane %v3354, 3
      %v5715 = vrot.slane %v3350, 4
      %v5716 = vor.u32 %v5714, %v5715
      %v5717 = vsel %vm1076, %v5704, %v5716
      %v5719 = vshrl.u32 %v3361, 16
      %v5721 = vrot.slane %v5719, 3
      %v5722 = vshll.u32 %v3361, 16
      %v5724 = vrot.slane %v5722, 4
      %v5725 = vor.u32 %v5721, %v5724
      %v5726 = vsel %vm1076, %v5708, %v5725
      %v5728 = vshrl.u32 %v3447, 16
      %v5730 = vrot.slane %v5728, 3
      %v5731 = vshll.u32 %v3447, 16
      %v5733 = vrot.slane %v5731, 4
      %v5734 = vor.u32 %v5730, %v5733
      %v5735 = vsel %vm1076, %v5712, %v5734
      %v5736 = vrot.slane %v3362, 3
      %v5737 = vrot.slane %v3358, 4
      %v5738 = vor.u32 %v5736, %v5737
      %v5739 = vsel %vm1076, %v5716, %v5738
      %v5741 = vshrl.u32 %v3364, 16
      %v5743 = vrot.slane %v5741, 3
      %v5744 = vshll.u32 %v3364, 16
      %v5746 = vrot.slane %v5744, 4
      %v5747 = vor.u32 %v5743, %v5746
      %v5748 = vsel %vm1076, %v5725, %v5747
      %v5750 = vshrl.u32 %v3446, 16
      %v5752 = vrot.slane %v5750, 3
      %v5753 = vshll.u32 %v3446, 16
      %v5755 = vrot.slane %v5753, 4
      %v5756 = vor.u32 %v5752, %v5755
      %v5757 = vsel %vm1076, %v5734, %v5756
      %v5815 = vunpack.c.l.b16 %v5654
      %v5816 = vunpack.c.l.b16 %v5655
      %v5817 = vunpack.c.l.b16 %v5656
      %v5818 = vunpack.c.l.b16 %v5657
      %v5819 = vunpack.c.l.b16 %v5658
      %v5820 = vunpack.c.l.b16 %v5659
      %v5821 = vunpack.c.l.b16 %v5660
      %v5822 = vunpack.c.l.b16 %v5661
      %v5823 = vunpack.c.l.b16 %v5662
      %v5824 = vunpack.c.l.b16 %v5663
      %v5825 = vunpack.c.l.b16 %v5664
      %v5826 = vunpack.c.l.b16 %v5665
      %v5827 = vunpack.c.l.b16 %v5666
      %v5828 = vunpack.c.l.b16 %v5667
      %v5829 = vunpack.c.l.b16 %v5668
      %v5830 = vunpack.c.l.b16 %v5669
      %v5831 = vunpack.c.l.b16 %v5670
      %v5832 = vunpack.c.l.b16 %v5671
      %v5833 = vunpack.c.l.b16 %v5672
      %v5834 = vunpack.c.l.b16 %v5673
      %v5835 = vunpack.c.l.b16 %v5674
      %v5836 = vunpack.c.l.b16 %v5675
      %v5837 = vunpack.c.l.b16 %v5676
      %v5838 = vunpack.c.l.b16 %v5677
      %v5839 = vunpack.c.l.b16 %v5678
      %v5840 = vunpack.c.l.b16 %v5679
      %v5841 = vunpack.c.l.b16 %v5680
      %v5842 = vunpack.c.l.b16 %v5681
      %v5843 = vunpack.c.l.b16 %v5682
      %v5844 = vunpack.c.l.b16 %v5683
      %v5845 = vunpack.c.l.b16 %v5684
      %v5846 = vunpack.c.l.b16 %v5685
      %v5847 = vunpack.c.l.b16 %v5686
      %v5848 = vunpack.c.l.b16 %v5687
      %v5849 = vunpack.c.l.b16 %v5688
      %v5850 = vunpack.c.l.b16 %v5689
      %v5851 = vunpack.c.l.b16 %v5690
      %v5852 = vunpack.c.l.b16 %v5691
      %v5853 = vunpack.c.l.b16 %v5692
      %v5854 = vunpack.c.l.b16 %v5693
      %v5855 = vunpack.c.l.b16 %v5694
      %v5856 = vunpack.c.l.b16 %v5695
      %v5857 = vunpack.c.l.b16 %v5696
      %v5858 = vunpack.c.l.b16 %v5697
      %v5859 = vunpack.c.l.b16 %v5698
      %v5860 = vunpack.c.l.b16 %v5699
      %v5861 = vunpack.c.l.b16 %v5700
      %v5862 = vunpack.c.l.b16 %v5701
      %v5863 = vpack.c.b16 %v5816, %v5815
      %v5864 = vpack.c.b16 %v5818, %v5817
      %v5865 = vpack.c.b16 %v5820, %v5819
      %v5866 = vpack.c.b16 %v5822, %v5821
      %v5867 = vpack.c.b16 %v5824, %v5823
      %v5868 = vpack.c.b16 %v5826, %v5825
      %v5869 = vpack.c.b16 %v5828, %v5827
      %v5870 = vpack.c.b16 %v5830, %v5829
      %v5871 = vpack.c.b16 %v5832, %v5831
      %v5872 = vpack.c.b16 %v5834, %v5833
      %v5873 = vpack.c.b16 %v5836, %v5835
      %v5874 = vpack.c.b16 %v5838, %v5837
      %v5875 = vpack.c.b16 %v5840, %v5839
      %v5876 = vpack.c.b16 %v5842, %v5841
      %v5877 = vpack.c.b16 %v5844, %v5843
      %v5878 = vpack.c.b16 %v5846, %v5845
      %v5879 = vpack.c.b16 %v5848, %v5847
      %v5880 = vpack.c.b16 %v5850, %v5849
      %v5881 = vpack.c.b16 %v5852, %v5851
      %v5882 = vpack.c.b16 %v5854, %v5853
      %v5883 = vpack.c.b16 %v5856, %v5855
      %v5884 = vpack.c.b16 %v5858, %v5857
      %v5885 = vpack.c.b16 %v5860, %v5859
      %v5886 = vpack.c.b16 %v5862, %v5861
      %5911 = vmatprep.subr.bf16.mxu0 0
      %5912 = vmatpush1.bf16.msra.mxu0 %v5863
      %5913 = vmatprep.subr.bf16.mxu0 0
      %5914 = vmatpush1.bf16.msra.mxu0 %v5864
      %5915 = vmatprep.subr.bf16.mxu0 0
      %5916 = vmatpush1.bf16.msra.mxu0 %v5865
      %5917 = vmatprep.subr.bf16.mxu0 0
      %5918 = vmatpush1.bf16.msra.mxu0 %v5866
      %5919 = vmatprep.subr.bf16.mxu0 0
      %5920 = vmatpush1.bf16.msra.mxu0 %v5867
      %5921 = vmatprep.subr.bf16.mxu0 0
      %5922 = vmatpush1.bf16.msra.mxu0 %v5868
      %5923 = vmatprep.subr.bf16.mxu0 0
      %5924 = vmatpush1.bf16.msra.mxu0 %v5869
      %5925 = vmatprep.subr.bf16.mxu0 0
      %5926 = vmatpush1.bf16.msra.mxu0 %v5870
      %5927 = vmatprep.subr.bf16.mxu0 0
      %5928 = vmatpush1.bf16.msra.mxu0 %v5871
      %5929 = vmatprep.subr.bf16.mxu0 0
      %5930 = vmatpush1.bf16.msra.mxu0 %v5872
      %5931 = vmatprep.subr.bf16.mxu0 0
      %5932 = vmatpush1.bf16.msra.mxu0 %v5873
      %5933 = vmatprep.subr.bf16.mxu0 0
      %5934 = vmatpush1.bf16.msra.mxu0 %v5874
      %5935 = vmatprep.subr.bf16.mxu0 0
      %5936 = vmatpush1.bf16.msra.mxu0 %v5875
      %5937 = vmatprep.subr.bf16.mxu0 0
      %5938 = vmatpush1.bf16.msra.mxu0 %v5876
      %5939 = vmatprep.subr.bf16.mxu0 0
      %5940 = vmatpush1.bf16.msra.mxu0 %v5877
      %5941 = vmatprep.subr.bf16.mxu0 0
      %5942 = vmatpush1.bf16.msra.mxu0 %v5878
      %5943 = vmatprep.mubr.bf16.mxu0 %v4742
      %5944 = vmatmul.mubr.bf16.gmra.mrb[0].mxu0 %v4738
      %v5945 = vpop.f32.mrb[0].mxu0
      %v5946 = vadd.f32 0.0, %v5945
      %v5947 = vpop.f32.mrb[0].mxu0
      %v5948 = vpop.f32.mrb[0].mxu0
      %v5949 = vadd.f32 0.0, %v5948
      %v5950 = vpop.f32.mrb[0].mxu0
      %5951 = vmatprep.mubr.bf16.mxu0 %v4754
      %5952 = vmatmul.mubr.bf16.gmra.mrb[0].mxu0 %v4750
      %v5953 = vpop.f32.mrb[0].mxu0
      %v5954 = vadd.f32 0.0, %v5953
      %v5955 = vpop.f32.mrb[0].mxu0
      %v5956 = vpop.f32.mrb[0].mxu0
      %v5957 = vadd.f32 0.0, %v5956
      %v5958 = vpop.f32.mrb[0].mxu0
      %5959 = vmatprep.mubr.bf16.mxu0 %v4766
      %5960 = vmatmul.mubr.bf16.gmra.mrb[0].mxu0 %v4762
      %v5961 = vpop.f32.mrb[0].mxu0
      %v5962 = vadd.f32 0.0, %v5961
      %v5963 = vpop.f32.mrb[0].mxu0
      %v5964 = vpop.f32.mrb[0].mxu0
      %v5965 = vadd.f32 0.0, %v5964
      %v5966 = vpop.f32.mrb[0].mxu0
      %5967 = vmatprep.mubr.bf16.mxu0 %v4778
      %5968 = vmatmul.mubr.bf16.gmra.mrb[0].mxu0 %v4774
      %v5969 = vpop.f32.mrb[0].mxu0
      %v5970 = vadd.f32 0.0, %v5969
      %v5971 = vpop.f32.mrb[0].mxu0
      %v5972 = vpop.f32.mrb[0].mxu0
      %v5973 = vadd.f32 0.0, %v5972
      %v5974 = vpop.f32.mrb[0].mxu0
      %5975 = vmatprep.mubr.bf16.mxu0 %v4790
      %5976 = vmatmul.mubr.bf16.gmra.mrb[0].mxu0 %v4786
      %v5977 = vpop.f32.mrb[0].mxu0
      %v5978 = vadd.f32 0.0, %v5977
      %v5979 = vpop.f32.mrb[0].mxu0
      %v5980 = vpop.f32.mrb[0].mxu0
      %v5981 = vadd.f32 0.0, %v5980
      %v5982 = vpop.f32.mrb[0].mxu0
      %5983 = vmatprep.mubr.bf16.mxu0 %v4802
      %5984 = vmatmul.mubr.bf16.gmra.mrb[0].mxu0 %v4798
      %v5985 = vpop.f32.mrb[0].mxu0
      %v5986 = vadd.f32 0.0, %v5985
      %v5987 = vpop.f32.mrb[0].mxu0
      %v5988 = vpop.f32.mrb[0].mxu0
      %v5989 = vadd.f32 0.0, %v5988
      %v5990 = vpop.f32.mrb[0].mxu0
      %5991 = vmatprep.mubr.bf16.mxu0 %v4814
      %5992 = vmatmul.mubr.bf16.gmra.mrb[0].mxu0 %v4810
      %v5993 = vpop.f32.mrb[0].mxu0
      %v5994 = vadd.f32 0.0, %v5993
      %v5995 = vpop.f32.mrb[0].mxu0
      %v5996 = vpop.f32.mrb[0].mxu0
      %v5997 = vadd.f32 0.0, %v5996
      %v5998 = vpop.f32.mrb[0].mxu0
      %5999 = vmatprep.mubr.bf16.mxu0 %v4826
      %6000 = vmatmul.mubr.bf16.gmra.mrb[0].mxu0 %v4822
      %v6001 = vpop.f32.mrb[0].mxu0
      %v6002 = vadd.f32 0.0, %v6001
      %v6003 = vpop.f32.mrb[0].mxu0
      %v6004 = vpop.f32.mrb[0].mxu0
      %v6005 = vadd.f32 0.0, %v6004
      %v6006 = vpop.f32.mrb[0].mxu0
      %6007 = vmatprep.mubr.bf16.mxu0 %v4838
      %6008 = vmatmul.mubr.bf16.gmra.mrb[0].mxu0 %v4834
      %v6009 = vpop.f32.mrb[0].mxu0
      %v6010 = vadd.f32 0.0, %v6009
      %v6011 = vpop.f32.mrb[0].mxu0
      %v6012 = vpop.f32.mrb[0].mxu0
      %v6013 = vadd.f32 0.0, %v6012
      %v6014 = vpop.f32.mrb[0].mxu0
      %6015 = vmatprep.mubr.bf16.mxu0 %v4850
      %6016 = vmatmul.mubr.bf16.gmra.mrb[0].mxu0 %v4846
      %v6017 = vpop.f32.mrb[0].mxu0
      %v6018 = vadd.f32 0.0, %v6017
      %v6019 = vpop.f32.mrb[0].mxu0
      %v6020 = vpop.f32.mrb[0].mxu0
      %v6021 = vadd.f32 0.0, %v6020
      %v6022 = vpop.f32.mrb[0].mxu0
      %6023 = vmatprep.mubr.bf16.mxu0 %v4862
      %6024 = vmatmul.mubr.bf16.gmra.mrb[0].mxu0 %v4858
      %v6025 = vpop.f32.mrb[0].mxu0
      %v6026 = vadd.f32 0.0, %v6025
      %v6027 = vpop.f32.mrb[0].mxu0
      %v6028 = vpop.f32.mrb[0].mxu0
      %v6029 = vadd.f32 0.0, %v6028
      %v6030 = vpop.f32.mrb[0].mxu0
      %6031 = vmatprep.mubr.bf16.mxu0 %v4874
      %6032 = vmatmul.mubr.bf16.gmra.mrb[0].mxu0 %v4870
      %v6033 = vpop.f32.mrb[0].mxu0
      %v6034 = vadd.f32 0.0, %v6033
      %v6035 = vpop.f32.mrb[0].mxu0
      %v6036 = vpop.f32.mrb[0].mxu0
      %v6037 = vadd.f32 0.0, %v6036
      %v6038 = vpop.f32.mrb[0].mxu0
      %6039 = vmatprep.mubr.bf16.mxu0 %v4886
      %6040 = vmatmul.mubr.bf16.gmra.mrb[0].mxu0 %v4882
      %v6041 = vpop.f32.mrb[0].mxu0
      %v6042 = vadd.f32 0.0, %v6041
      %v6043 = vpop.f32.mrb[0].mxu0
      %v6044 = vpop.f32.mrb[0].mxu0
      %v6045 = vadd.f32 0.0, %v6044
      %v6046 = vpop.f32.mrb[0].mxu0
      %6047 = vmatprep.mubr.bf16.mxu0 %v4898
      %6048 = vmatmul.mubr.bf16.gmra.mrb[0].mxu0 %v4894
      %v6049 = vpop.f32.mrb[0].mxu0
      %v6050 = vadd.f32 0.0, %v6049
      %v6051 = vpop.f32.mrb[0].mxu0
      %v6052 = vpop.f32.mrb[0].mxu0
      %v6053 = vadd.f32 0.0, %v6052
      %v6054 = vpop.f32.mrb[0].mxu0
      %6055 = vmatprep.mubr.bf16.mxu0 %v4910
      %6056 = vmatmul.mubr.bf16.gmra.mrb[0].mxu0 %v4906
      %v6057 = vpop.f32.mrb[0].mxu0
      %v6058 = vadd.f32 0.0, %v6057
      %v6059 = vpop.f32.mrb[0].mxu0
      %v6060 = vpop.f32.mrb[0].mxu0
      %v6061 = vadd.f32 0.0, %v6060
      %v6062 = vpop.f32.mrb[0].mxu0
      %6063 = vmatprep.mubr.bf16.mxu0 %v4922
      %6064 = vmatmul.mubr.bf16.gmra.mrb[0].mxu0 %v4918
      %v6065 = vpop.f32.mrb[0].mxu0
      %v6066 = vadd.f32 0.0, %v6065
      %v6067 = vpop.f32.mrb[0].mxu0
      %v6068 = vpop.f32.mrb[0].mxu0
      %v6069 = vadd.f32 0.0, %v6068
      %v6070 = vpop.f32.mrb[0].mxu0
      %6071 = vmatprep.mubr.bf16.mxu0 %v4934
      %6072 = vmatmul.mubr.bf16.gmra.mrb[0].mxu0 %v4930
      %v6073 = vpop.f32.mrb[0].mxu0
      %v6074 = vadd.f32 0.0, %v6073
      %v6075 = vpop.f32.mrb[0].mxu0
      %v6076 = vpop.f32.mrb[0].mxu0
      %v6077 = vadd.f32 0.0, %v6076
      %v6078 = vpop.f32.mrb[0].mxu0
      %6079 = vmatprep.mubr.bf16.mxu0 %v4946
      %6080 = vmatmul.mubr.bf16.gmra.mrb[0].mxu0 %v4942
      %v6081 = vpop.f32.mrb[0].mxu0
      %v6082 = vadd.f32 0.0, %v6081
      %v6083 = vpop.f32.mrb[0].mxu0
      %v6084 = vpop.f32.mrb[0].mxu0
      %v6085 = vadd.f32 0.0, %v6084
      %v6086 = vpop.f32.mrb[0].mxu0
      %6087 = vmatprep.mubr.bf16.mxu0 %v4958
      %6088 = vmatmul.mubr.bf16.gmra.mrb[0].mxu0 %v4954
      %v6089 = vpop.f32.mrb[0].mxu0
      %v6090 = vadd.f32 0.0, %v6089
      %v6091 = vpop.f32.mrb[0].mxu0
      %v6092 = vpop.f32.mrb[0].mxu0
      %v6093 = vadd.f32 0.0, %v6092
      %v6094 = vpop.f32.mrb[0].mxu0
      %6095 = vmatprep.mubr.bf16.mxu0 %v4970
      %6096 = vmatmul.mubr.bf16.gmra.mrb[0].mxu0 %v4966
      %v6097 = vpop.f32.mrb[0].mxu0
      %v6098 = vadd.f32 0.0, %v6097
      %v6099 = vpop.f32.mrb[0].mxu0
      %v6100 = vpop.f32.mrb[0].mxu0
      %v6101 = vadd.f32 0.0, %v6100
      %v6102 = vpop.f32.mrb[0].mxu0
      %6103 = vmatprep.mubr.bf16.mxu0 %v4982
      %6104 = vmatmul.mubr.bf16.gmra.mrb[0].mxu0 %v4978
      %v6105 = vpop.f32.mrb[0].mxu0
      %v6106 = vadd.f32 0.0, %v6105
      %v6107 = vpop.f32.mrb[0].mxu0
      %v6108 = vpop.f32.mrb[0].mxu0
      %v6109 = vadd.f32 0.0, %v6108
      %v6110 = vpop.f32.mrb[0].mxu0
      %6111 = vmatprep.mubr.bf16.mxu0 %v5709
      %6112 = vmatmul.mubr.bf16.gmra.mrb[0].mxu0 %v5705
      %v6113 = vpop.f32.mrb[0].mxu0
      %v6114 = vadd.f32 0.0, %v6113
      %v6115 = vpop.f32.mrb[0].mxu0
      %v6116 = vpop.f32.mrb[0].mxu0
      %v6117 = vadd.f32 0.0, %v6116
      %v6118 = vpop.f32.mrb[0].mxu0
      %6119 = vmatprep.mubr.bf16.mxu0 %v5726
      %6120 = vmatmul.mubr.bf16.gmra.mrb[0].mxu0 %v5717
      %v6121 = vpop.f32.mrb[0].mxu0
      %v6122 = vadd.f32 0.0, %v6121
      %v6123 = vpop.f32.mrb[0].mxu0
      %v6124 = vpop.f32.mrb[0].mxu0
      %v6125 = vadd.f32 0.0, %v6124
      %v6126 = vpop.f32.mrb[0].mxu0
      %6127 = vmatprep.mubr.bf16.mxu0 %v5748
      %6128 = vmatmul.mubr.bf16.gmra.mrb[0].mxu0 %v5739
      %v6129 = vpop.f32.mrb[0].mxu0
      %v6130 = vadd.f32 0.0, %v6129
      %v6131 = vpop.f32.mrb[0].mxu0
      %v6132 = vpop.f32.mrb[0].mxu0
      %v6133 = vadd.f32 0.0, %v6132
      %v6134 = vpop.f32.mrb[0].mxu0
      %6135 = vdwg.mxu0
      %6136 = vmatprep.subr.bf16.mxu0 0
      %6137 = vmatpush1.bf16.msra.mxu0 %v5879
      %6138 = vmatprep.subr.bf16.mxu0 0
      %6139 = vmatpush1.bf16.msra.mxu0 %v5880
      %6140 = vmatprep.subr.bf16.mxu0 0
      %6141 = vmatpush1.bf16.msra.mxu0 %v5881
      %6142 = vmatprep.subr.bf16.mxu0 0
      %6143 = vmatpush1.bf16.msra.mxu0 %v5882
      %6144 = vmatprep.subr.bf16.mxu0 0
      %6145 = vmatpush1.bf16.msra.mxu0 %v5883
      %6146 = vmatprep.subr.bf16.mxu0 0
      %6147 = vmatpush1.bf16.msra.mxu0 %v5884
      %6148 = vmatprep.subr.bf16.mxu0 0
      %6149 = vmatpush1.bf16.msra.mxu0 %v5885
      %6150 = vmatprep.subr.bf16.mxu0 0
      %6151 = vmatpush1.bf16.msra.mxu0 %v5886
      %6152 = vmatprep.subr.bf16.mxu0 0
      %6153 = vmatpush1.bf16.msra.mxu0 0
      %6154 = vmatprep.subr.bf16.mxu0 0
      %6155 = vmatpush1.bf16.msra.mxu0 0
      %6156 = vmatprep.subr.bf16.mxu0 0
      %6157 = vmatpush1.bf16.msra.mxu0 0
      %6158 = vmatprep.subr.bf16.mxu0 0
      %6159 = vmatpush1.bf16.msra.mxu0 0
      %6160 = vmatprep.subr.bf16.mxu0 0
      %6161 = vmatpush1.bf16.msra.mxu0 0
      %6162 = vmatprep.subr.bf16.mxu0 0
      %6163 = vmatpush1.bf16.msra.mxu0 0
      %6164 = vmatprep.subr.bf16.mxu0 0
      %6165 = vmatpush1.bf16.msra.mxu0 0
      %6166 = vmatprep.subr.bf16.mxu0 0
      %6167 = vmatpush1.bf16.msra.mxu0 0
      %6168 = vmatprep.mubr.bf16.mxu0 0
      %6169 = vmatmul.mubr.bf16.gmra.mrb[0].mxu0 %v4746
      %v6170 = vpop.f32.mrb[0].mxu0
      %v6171 = vadd.f32 %v5946, %v6170
      %v6172 = vpop.f32.mrb[0].mxu0
      %v6173 = vpop.f32.mrb[0].mxu0
      %v6174 = vadd.f32 %v5949, %v6173
      %v6175 = vpop.f32.mrb[0].mxu0
      %6176 = vmatprep.mubr.bf16.mxu0 0
      %6177 = vmatmul.mubr.bf16.gmra.mrb[0].mxu0 %v4758
      %v6178 = vpop.f32.mrb[0].mxu0
      %v6179 = vadd.f32 %v5954, %v6178
      %v6180 = vpop.f32.mrb[0].mxu0
      %v6181 = vpop.f32.mrb[0].mxu0
      %v6182 = vadd.f32 %v5957, %v6181
      %v6183 = vpop.f32.mrb[0].mxu0
      %6184 = vmatprep.mubr.bf16.mxu0 0
      %6185 = vmatmul.mubr.bf16.gmra.mrb[0].mxu0 %v4770
      %v6186 = vpop.f32.mrb[0].mxu0
      %v6187 = vadd.f32 %v5962, %v6186
      %v6188 = vpop.f32.mrb[0].mxu0
      %v6189 = vpop.f32.mrb[0].mxu0
      %v6190 = vadd.f32 %v5965, %v6189
      %v6191 = vpop.f32.mrb[0].mxu0
      %6192 = vmatprep.mubr.bf16.mxu0 0
      %6193 = vmatmul.mubr.bf16.gmra.mrb[0].mxu0 %v4782
      %v6194 = vpop.f32.mrb[0].mxu0
      %v6195 = vadd.f32 %v5970, %v6194
      %v6196 = vpop.f32.mrb[0].mxu0
      %v6197 = vpop.f32.mrb[0].mxu0
      %v6198 = vadd.f32 %v5973, %v6197
      %v6199 = vpop.f32.mrb[0].mxu0
      %6200 = vmatprep.mubr.bf16.mxu0 0
      %6201 = vmatmul.mubr.bf16.gmra.mrb[0].mxu0 %v4794
      %v6202 = vpop.f32.mrb[0].mxu0
      %v6203 = vadd.f32 %v5978, %v6202
      %v6204 = vpop.f32.mrb[0].mxu0
      %v6205 = vpop.f32.mrb[0].mxu0
      %v6206 = vadd.f32 %v5981, %v6205
      %v6207 = vpop.f32.mrb[0].mxu0
      %6208 = vmatprep.mubr.bf16.mxu0 0
      %6209 = vmatmul.mubr.bf16.gmra.mrb[0].mxu0 %v4806
      %v6210 = vpop.f32.mrb[0].mxu0
      %v6211 = vadd.f32 %v5986, %v6210
      %v6212 = vpop.f32.mrb[0].mxu0
      %v6213 = vpop.f32.mrb[0].mxu0
      %v6214 = vadd.f32 %v5989, %v6213
      %v6215 = vpop.f32.mrb[0].mxu0
      %6216 = vmatprep.mubr.bf16.mxu0 0
      %6217 = vmatmul.mubr.bf16.gmra.mrb[0].mxu0 %v4818
      %v6218 = vpop.f32.mrb[0].mxu0
      %v6219 = vadd.f32 %v5994, %v6218
      %v6220 = vpop.f32.mrb[0].mxu0
      %v6221 = vpop.f32.mrb[0].mxu0
      %v6222 = vadd.f32 %v5997, %v6221
      %v6223 = vpop.f32.mrb[0].mxu0
      %6224 = vmatprep.mubr.bf16.mxu0 0
      %6225 = vmatmul.mubr.bf16.gmra.mrb[0].mxu0 %v4830
      %v6226 = vpop.f32.mrb[0].mxu0
      %v6227 = vadd.f32 %v6002, %v6226
      %v6228 = vpop.f32.mrb[0].mxu0
      %v6229 = vpop.f32.mrb[0].mxu0
      %v6230 = vadd.f32 %v6005, %v6229
      %v6231 = vpop.f32.mrb[0].mxu0
      %6232 = vmatprep.mubr.bf16.mxu0 0
      %6233 = vmatmul.mubr.bf16.gmra.mrb[0].mxu0 %v4842
      %v6234 = vpop.f32.mrb[0].mxu0
      %v6235 = vadd.f32 %v6010, %v6234
      %v6236 = vpop.f32.mrb[0].mxu0
      %v6237 = vpop.f32.mrb[0].mxu0
      %v6238 = vadd.f32 %v6013, %v6237
      %v6239 = vpop.f32.mrb[0].mxu0
      %6240 = vmatprep.mubr.bf16.mxu0 0
      %6241 = vmatmul.mubr.bf16.gmra.mrb[0].mxu0 %v4854
      %v6242 = vpop.f32.mrb[0].mxu0
      %v6243 = vadd.f32 %v6018, %v6242
      %v6244 = vpop.f32.mrb[0].mxu0
      %v6245 = vpop.f32.mrb[0].mxu0
      %v6246 = vadd.f32 %v6021, %v6245
      %v6247 = vpop.f32.mrb[0].mxu0
      %6248 = vmatprep.mubr.bf16.mxu0 0
      %6249 = vmatmul.mubr.bf16.gmra.mrb[0].mxu0 %v4866
      %v6250 = vpop.f32.mrb[0].mxu0
      %v6251 = vadd.f32 %v6026, %v6250
      %v6252 = vpop.f32.mrb[0].mxu0
      %v6253 = vpop.f32.mrb[0].mxu0
      %v6254 = vadd.f32 %v6029, %v6253
      %v6255 = vpop.f32.mrb[0].mxu0
      %6256 = vmatprep.mubr.bf16.mxu0 0
      %6257 = vmatmul.mubr.bf16.gmra.mrb[0].mxu0 %v4878
      %v6258 = vpop.f32.mrb[0].mxu0
      %v6259 = vadd.f32 %v6034, %v6258
      %v6260 = vpop.f32.mrb[0].mxu0
      %v6261 = vpop.f32.mrb[0].mxu0
      %v6262 = vadd.f32 %v6037, %v6261
      %v6263 = vpop.f32.mrb[0].mxu0
      %6264 = vmatprep.mubr.bf16.mxu0 0
      %6265 = vmatmul.mubr.bf16.gmra.mrb[0].mxu0 %v4890
      %v6266 = vpop.f32.mrb[0].mxu0
      %v6267 = vadd.f32 %v6042, %v6266
      %v6268 = vpop.f32.mrb[0].mxu0
      %v6269 = vpop.f32.mrb[0].mxu0
      %v6270 = vadd.f32 %v6045, %v6269
      %v6271 = vpop.f32.mrb[0].mxu0
      %6272 = vmatprep.mubr.bf16.mxu0 0
      %6273 = vmatmul.mubr.bf16.gmra.mrb[0].mxu0 %v4902
      %v6274 = vpop.f32.mrb[0].mxu0
      %v6275 = vadd.f32 %v6050, %v6274
      %v6276 = vpop.f32.mrb[0].mxu0
      %v6277 = vpop.f32.mrb[0].mxu0
      %v6278 = vadd.f32 %v6053, %v6277
      %v6279 = vpop.f32.mrb[0].mxu0
      %6280 = vmatprep.mubr.bf16.mxu0 0
      %6281 = vmatmul.mubr.bf16.gmra.mrb[0].mxu0 %v4914
      %v6282 = vpop.f32.mrb[0].mxu0
      %v6283 = vadd.f32 %v6058, %v6282
      %v6284 = vpop.f32.mrb[0].mxu0
      %v6285 = vpop.f32.mrb[0].mxu0
      %v6286 = vadd.f32 %v6061, %v6285
      %v6287 = vpop.f32.mrb[0].mxu0
      %6288 = vmatprep.mubr.bf16.mxu0 0
      %6289 = vmatmul.mubr.bf16.gmra.mrb[0].mxu0 %v4926
      %v6290 = vpop.f32.mrb[0].mxu0
      %v6291 = vadd.f32 %v6066, %v6290
      %v6292 = vpop.f32.mrb[0].mxu0
      %v6293 = vpop.f32.mrb[0].mxu0
      %v6294 = vadd.f32 %v6069, %v6293
      %v6295 = vpop.f32.mrb[0].mxu0
      %6296 = vmatprep.mubr.bf16.mxu0 0
      %6297 = vmatmul.mubr.bf16.gmra.mrb[0].mxu0 %v4938
      %v6298 = vpop.f32.mrb[0].mxu0
      %v6299 = vadd.f32 %v6074, %v6298
      %v6300 = vpop.f32.mrb[0].mxu0
      %v6301 = vpop.f32.mrb[0].mxu0
      %v6302 = vadd.f32 %v6077, %v6301
      %v6303 = vpop.f32.mrb[0].mxu0
      %6304 = vmatprep.mubr.bf16.mxu0 0
      %6305 = vmatmul.mubr.bf16.gmra.mrb[0].mxu0 %v4950
      %v6306 = vpop.f32.mrb[0].mxu0
      %v6307 = vadd.f32 %v6082, %v6306
      %v6308 = vpop.f32.mrb[0].mxu0
      %v6309 = vpop.f32.mrb[0].mxu0
      %v6310 = vadd.f32 %v6085, %v6309
      %v6311 = vpop.f32.mrb[0].mxu0
      %6312 = vmatprep.mubr.bf16.mxu0 0
      %6313 = vmatmul.mubr.bf16.gmra.mrb[0].mxu0 %v4962
      %v6314 = vpop.f32.mrb[0].mxu0
      %v6315 = vadd.f32 %v6090, %v6314
      %v6316 = vpop.f32.mrb[0].mxu0
      %v6317 = vpop.f32.mrb[0].mxu0
      %v6318 = vadd.f32 %v6093, %v6317
      %v6319 = vpop.f32.mrb[0].mxu0
      %6320 = vmatprep.mubr.bf16.mxu0 0
      %6321 = vmatmul.mubr.bf16.gmra.mrb[0].mxu0 %v4974
      %v6322 = vpop.f32.mrb[0].mxu0
      %v6323 = vadd.f32 %v6098, %v6322
      %v6324 = vpop.f32.mrb[0].mxu0
      %v6325 = vpop.f32.mrb[0].mxu0
      %v6326 = vadd.f32 %v6101, %v6325
      %v6327 = vpop.f32.mrb[0].mxu0
      %6328 = vmatprep.mubr.bf16.mxu0 0
      %6329 = vmatmul.mubr.bf16.gmra.mrb[0].mxu0 %v4986
      %v6330 = vpop.f32.mrb[0].mxu0
      %v6331 = vadd.f32 %v6106, %v6330
      %v6332 = vpop.f32.mrb[0].mxu0
      %v6333 = vpop.f32.mrb[0].mxu0
      %v6334 = vadd.f32 %v6109, %v6333
      %v6335 = vpop.f32.mrb[0].mxu0
      %6336 = vmatprep.mubr.bf16.mxu0 0
      %6337 = vmatmul.mubr.bf16.gmra.mrb[0].mxu0 %v5713
      %v6338 = vpop.f32.mrb[0].mxu0
      %v6339 = vadd.f32 %v6114, %v6338
      %v6340 = vpop.f32.mrb[0].mxu0
      %v6341 = vpop.f32.mrb[0].mxu0
      %v6342 = vadd.f32 %v6117, %v6341
      %v6343 = vpop.f32.mrb[0].mxu0
      %6344 = vmatprep.mubr.bf16.mxu0 0
      %6345 = vmatmul.mubr.bf16.gmra.mrb[0].mxu0 %v5735
      %v6346 = vpop.f32.mrb[0].mxu0
      %v6347 = vadd.f32 %v6122, %v6346
      %v6348 = vpop.f32.mrb[0].mxu0
      %v6349 = vpop.f32.mrb[0].mxu0
      %v6350 = vadd.f32 %v6125, %v6349
      %v6351 = vpop.f32.mrb[0].mxu0
      %6352 = vmatprep.mubr.bf16.mxu0 0
      %6353 = vmatmul.mubr.bf16.gmra.mrb[0].mxu0 %v5757
      %v6354 = vpop.f32.mrb[0].mxu0
      %v6355 = vadd.f32 %v6130, %v6354
      %v6356 = vpop.f32.mrb[0].mxu0
      %v6357 = vpop.f32.mrb[0].mxu0
      %v6358 = vadd.f32 %v6133, %v6357
      %v6359 = vpop.f32.mrb[0].mxu0
      %6360 = vdwg.mxu0
      %v6361 = vadd.f32 %v5463, %v6171
      %v6362 = vadd.f32 %v5466, %v6174
      %v6363 = vadd.f32 %v5471, %v6179
      %v6364 = vadd.f32 %v5474, %v6182
      %v6365 = vadd.f32 %v5479, %v6187
      %v6366 = vadd.f32 %v5482, %v6190
      %v6367 = vadd.f32 %v5487, %v6195
      %v6368 = vadd.f32 %v5490, %v6198
      %v6369 = vadd.f32 %v5495, %v6203
      %v6370 = vadd.f32 %v5498, %v6206
      %v6371 = vadd.f32 %v5503, %v6211
      %v6372 = vadd.f32 %v5506, %v6214
      %v6373 = vadd.f32 %v5511, %v6219
      %v6374 = vadd.f32 %v5514, %v6222
      %v6375 = vadd.f32 %v5519, %v6227
      %v6376 = vadd.f32 %v5522, %v6230
      %v6377 = vadd.f32 %v5527, %v6235
      %v6378 = vadd.f32 %v5530, %v6238
      %v6379 = vadd.f32 %v5535, %v6243
      %v6380 = vadd.f32 %v5538, %v6246
      %v6381 = vadd.f32 %v5543, %v6251
      %v6382 = vadd.f32 %v5546, %v6254
      %v6383 = vadd.f32 %v5551, %v6259
      %v6384 = vadd.f32 %v5554, %v6262
      %v6385 = vadd.f32 %v5559, %v6267
      %v6386 = vadd.f32 %v5562, %v6270
      %v6387 = vadd.f32 %v5567, %v6275
      %v6388 = vadd.f32 %v5570, %v6278
      %v6389 = vadd.f32 %v5575, %v6283
      %v6390 = vadd.f32 %v5578, %v6286
      %v6391 = vadd.f32 %v5583, %v6291
      %v6392 = vadd.f32 %v5586, %v6294
      %v6393 = vadd.f32 %v5591, %v6299
      %v6394 = vadd.f32 %v5594, %v6302
      %v6395 = vadd.f32 %v5599, %v6307
      %v6396 = vadd.f32 %v5602, %v6310
      %v6397 = vadd.f32 %v5607, %v6315
      %v6398 = vadd.f32 %v5610, %v6318
      %v6399 = vadd.f32 %v5615, %v6323
      %v6400 = vadd.f32 %v5618, %v6326
      %v6401 = vadd.f32 %v5623, %v6331
      %v6402 = vadd.f32 %v5626, %v6334
      %v6403 = vadd.f32 %v5631, %v6339
      %v6404 = vadd.f32 %v5634, %v6342
      %v6405 = vadd.f32 %v5639, %v6347
      %v6406 = vadd.f32 %v5642, %v6350
      %v6407 = vadd.f32 %v5647, %v6355
      %v6408 = vadd.f32 %v5650, %v6358
      %v6409 = vld [vmem:[%s5] sm:$0x1]
      %v6411 = vlaneseq
      %v6412 = vshrl.u32 %v6411, 7
      %v6413 = vsub.s32 0, %v6412
      %v6414 = vrot.slane %v6409, %v6413
      %v6416 = vadd.f32 %v6361, %v6414
      %v6417 = vadd.f32 %v6362, %v6414
      %v6418 = vadd.f32 %v6363, %v6414
      %v6419 = vadd.f32 %v6364, %v6414
      %v6420 = vadd.f32 %v6365, %v6414
      %v6421 = vadd.f32 %v6366, %v6414
      %v6422 = vadd.f32 %v6367, %v6414
      %v6423 = vadd.f32 %v6368, %v6414
      %v6424 = vadd.f32 %v6369, %v6414
      %v6425 = vadd.f32 %v6370, %v6414
      %v6426 = vadd.f32 %v6371, %v6414
      %v6427 = vadd.f32 %v6372, %v6414
      %v6428 = vadd.f32 %v6373, %v6414
      %v6429 = vadd.f32 %v6374, %v6414
      %v6430 = vadd.f32 %v6375, %v6414
      %v6431 = vadd.f32 %v6376, %v6414
      %v6432 = vadd.f32 %v6377, %v6414
      %v6433 = vadd.f32 %v6378, %v6414
      %v6434 = vadd.f32 %v6379, %v6414
      %v6435 = vadd.f32 %v6380, %v6414
      %v6436 = vadd.f32 %v6381, %v6414
      %v6437 = vadd.f32 %v6382, %v6414
      %v6438 = vadd.f32 %v6383, %v6414
      %v6439 = vadd.f32 %v6384, %v6414
      %v6440 = vadd.f32 %v6385, %v6414
      %v6441 = vadd.f32 %v6386, %v6414
      %v6442 = vadd.f32 %v6387, %v6414
      %v6443 = vadd.f32 %v6388, %v6414
      %v6444 = vadd.f32 %v6389, %v6414
      %v6445 = vadd.f32 %v6390, %v6414
      %v6446 = vadd.f32 %v6391, %v6414
      %v6447 = vadd.f32 %v6392, %v6414
      %v6448 = vadd.f32 %v6393, %v6414
      %v6449 = vadd.f32 %v6394, %v6414
      %v6450 = vadd.f32 %v6395, %v6414
      %v6451 = vadd.f32 %v6396, %v6414
      %v6452 = vadd.f32 %v6397, %v6414
      %v6453 = vadd.f32 %v6398, %v6414
      %v6454 = vadd.f32 %v6399, %v6414
      %v6455 = vadd.f32 %v6400, %v6414
      %v6456 = vadd.f32 %v6401, %v6414
      %v6457 = vadd.f32 %v6402, %v6414
      %v6458 = vadd.f32 %v6403, %v6414
      %v6459 = vadd.f32 %v6404, %v6414
      %v6460 = vadd.f32 %v6405, %v6414
      %v6461 = vadd.f32 %v6406, %v6414
      %v6462 = vadd.f32 %v6407, %v6414
      %v6463 = vadd.f32 %v6408, %v6414
      %v6464 = vmax.f32 %v6416, 0.0
      %v6465 = vmax.f32 %v6417, 0.0
      %v6466 = vmax.f32 %v6418, 0.0
      %v6467 = vmax.f32 %v6419, 0.0
      %v6468 = vmax.f32 %v6420, 0.0
      %v6469 = vmax.f32 %v6421, 0.0
      %v6470 = vmax.f32 %v6422, 0.0
      %v6471 = vmax.f32 %v6423, 0.0
      %v6472 = vmax.f32 %v6424, 0.0
      %v6473 = vmax.f32 %v6425, 0.0
      %v6474 = vmax.f32 %v6426, 0.0
      %v6475 = vmax.f32 %v6427, 0.0
      %v6476 = vmax.f32 %v6428, 0.0
      %v6477 = vmax.f32 %v6429, 0.0
      %v6478 = vmax.f32 %v6430, 0.0
      %v6479 = vmax.f32 %v6431, 0.0
      %v6480 = vmax.f32 %v6432, 0.0
      %v6481 = vmax.f32 %v6433, 0.0
      %v6482 = vmax.f32 %v6434, 0.0
      %v6483 = vmax.f32 %v6435, 0.0
      %v6484 = vmax.f32 %v6436, 0.0
      %v6485 = vmax.f32 %v6437, 0.0
      %v6486 = vmax.f32 %v6438, 0.0
      %v6487 = vmax.f32 %v6439, 0.0
      %v6488 = vmax.f32 %v6440, 0.0
      %v6489 = vmax.f32 %v6441, 0.0
      %v6490 = vmax.f32 %v6442, 0.0
      %v6491 = vmax.f32 %v6443, 0.0
      %v6492 = vmax.f32 %v6444, 0.0
      %v6493 = vmax.f32 %v6445, 0.0
      %v6494 = vmax.f32 %v6446, 0.0
      %v6495 = vmax.f32 %v6447, 0.0
      %v6496 = vmax.f32 %v6448, 0.0
      %v6497 = vmax.f32 %v6449, 0.0
      %v6498 = vmax.f32 %v6450, 0.0
      %v6499 = vmax.f32 %v6451, 0.0
      %v6500 = vmax.f32 %v6452, 0.0
      %v6501 = vmax.f32 %v6453, 0.0
      %v6502 = vmax.f32 %v6454, 0.0
      %v6503 = vmax.f32 %v6455, 0.0
      %v6504 = vmax.f32 %v6456, 0.0
      %v6505 = vmax.f32 %v6457, 0.0
      %v6506 = vmax.f32 %v6458, 0.0
      %v6507 = vmax.f32 %v6459, 0.0
      %v6508 = vmax.f32 %v6460, 0.0
      %v6509 = vmax.f32 %v6461, 0.0
      %v6510 = vmax.f32 %v6462, 0.0
      %v6511 = vmax.f32 %v6463, 0.0
      %v6512 = vpack.c.bf16 %v6465, %v6464
      %v6513 = vpack.c.bf16 %v6467, %v6466
      %v6514 = vpack.c.bf16 %v6469, %v6468
      %v6515 = vpack.c.bf16 %v6471, %v6470
      %v6516 = vpack.c.bf16 %v6473, %v6472
      %v6517 = vpack.c.bf16 %v6475, %v6474
      %v6518 = vpack.c.bf16 %v6477, %v6476
      %v6519 = vpack.c.bf16 %v6479, %v6478
      %v6520 = vpack.c.bf16 %v6481, %v6480
      %v6521 = vpack.c.bf16 %v6483, %v6482
      %v6522 = vpack.c.bf16 %v6485, %v6484
      %v6523 = vpack.c.bf16 %v6487, %v6486
      %v6524 = vpack.c.bf16 %v6489, %v6488
      %v6525 = vpack.c.bf16 %v6491, %v6490
      %v6526 = vpack.c.bf16 %v6493, %v6492
      %v6527 = vpack.c.bf16 %v6495, %v6494
      %v6528 = vpack.c.bf16 %v6497, %v6496
      %v6529 = vpack.c.bf16 %v6499, %v6498
      %v6530 = vpack.c.bf16 %v6501, %v6500
      %v6531 = vpack.c.bf16 %v6503, %v6502
      %v6532 = vpack.c.bf16 %v6505, %v6504
      %v6533 = vpack.c.bf16 %v6507, %v6506
      %v6534 = vpack.c.bf16 %v6509, %v6508
      %v6535 = vpack.c.bf16 %v6511, %v6510
      %v6560 = vunpack.c.l.b16 %v6512
      %v6561 = vunpack.c.h.b16 %v6512
      %v6562 = vunpack.c.l.b16 %v6513
      %v6563 = vunpack.c.h.b16 %v6513
      %v6564 = vunpack.c.l.b16 %v6514
      %v6565 = vunpack.c.h.b16 %v6514
      %v6566 = vunpack.c.l.b16 %v6515
      %v6567 = vunpack.c.h.b16 %v6515
      %v6568 = vunpack.c.l.b16 %v6516
      %v6569 = vunpack.c.h.b16 %v6516
      %v6570 = vunpack.c.l.b16 %v6517
      %v6571 = vunpack.c.h.b16 %v6517
      %v6572 = vunpack.c.l.b16 %v6518
      %v6573 = vunpack.c.h.b16 %v6518
      %v6574 = vunpack.c.l.b16 %v6519
      %v6575 = vunpack.c.h.b16 %v6519
      %v6576 = vunpack.c.l.b16 %v6520
      %v6577 = vunpack.c.h.b16 %v6520
      %v6578 = vunpack.c.l.b16 %v6521
      %v6579 = vunpack.c.h.b16 %v6521
      %v6580 = vunpack.c.l.b16 %v6522
      %v6581 = vunpack.c.h.b16 %v6522
      %v6582 = vunpack.c.l.b16 %v6523
      %v6583 = vunpack.c.h.b16 %v6523
      %v6584 = vunpack.c.l.b16 %v6524
      %v6585 = vunpack.c.h.b16 %v6524
      %v6586 = vunpack.c.l.b16 %v6525
      %v6587 = vunpack.c.h.b16 %v6525
      %v6588 = vunpack.c.l.b16 %v6526
      %v6589 = vunpack.c.h.b16 %v6526
      %v6590 = vunpack.c.l.b16 %v6527
      %v6591 = vunpack.c.h.b16 %v6527
      %v6592 = vunpack.c.l.b16 %v6528
      %v6593 = vunpack.c.h.b16 %v6528
      %v6594 = vunpack.c.l.b16 %v6529
      %v6595 = vunpack.c.h.b16 %v6529
      %v6596 = vunpack.c.l.b16 %v6530
      %v6597 = vunpack.c.h.b16 %v6530
      %v6598 = vunpack.c.l.b16 %v6531
      %v6599 = vunpack.c.h.b16 %v6531
      %v6600 = vunpack.c.l.b16 %v6532
      %v6601 = vunpack.c.h.b16 %v6532
      %v6602 = vunpack.c.l.b16 %v6533
      %v6603 = vunpack.c.h.b16 %v6533
      %v6604 = vunpack.c.l.b16 %v6534
      %v6605 = vunpack.c.h.b16 %v6534
      %v6606 = vunpack.c.l.b16 %v6535
      %v6607 = vunpack.c.h.b16 %v6535
      %v6608 = vpack.c.b16 %v6560, %v6560
      %v6609 = vpack.c.b16 %v6561, %v6561
      %v6610 = vpack.c.b16 %v6562, %v6562
      %v6611 = vpack.c.b16 %v6563, %v6563
      %v6612 = vpack.c.b16 %v6564, %v6564
      %v6613 = vpack.c.b16 %v6565, %v6565
      %v6614 = vpack.c.b16 %v6566, %v6566
      %v6615 = vpack.c.b16 %v6567, %v6567
      %v6616 = vpack.c.b16 %v6568, %v6568
      %v6617 = vpack.c.b16 %v6569, %v6569
      %v6618 = vpack.c.b16 %v6570, %v6570
      %v6619 = vpack.c.b16 %v6571, %v6571
      %v6620 = vpack.c.b16 %v6572, %v6572
      %v6621 = vpack.c.b16 %v6573, %v6573
      %v6622 = vpack.c.b16 %v6574, %v6574
      %v6623 = vpack.c.b16 %v6575, %v6575
      %v6624 = vpack.c.b16 %v6576, %v6576
      %v6625 = vpack.c.b16 %v6577, %v6577
      %v6626 = vpack.c.b16 %v6578, %v6578
      %v6627 = vpack.c.b16 %v6579, %v6579
      %v6628 = vpack.c.b16 %v6580, %v6580
      %v6629 = vpack.c.b16 %v6581, %v6581
      %v6630 = vpack.c.b16 %v6582, %v6582
      %v6631 = vpack.c.b16 %v6583, %v6583
      %v6632 = vpack.c.b16 %v6584, %v6584
      %v6633 = vpack.c.b16 %v6585, %v6585
      %v6634 = vpack.c.b16 %v6586, %v6586
      %v6635 = vpack.c.b16 %v6587, %v6587
      %v6636 = vpack.c.b16 %v6588, %v6588
      %v6637 = vpack.c.b16 %v6589, %v6589
      %v6638 = vpack.c.b16 %v6590, %v6590
      %v6639 = vpack.c.b16 %v6591, %v6591
      %v6640 = vpack.c.b16 %v6592, %v6592
      %v6641 = vpack.c.b16 %v6593, %v6593
      %v6642 = vpack.c.b16 %v6594, %v6594
      %v6643 = vpack.c.b16 %v6595, %v6595
      %v6644 = vpack.c.b16 %v6596, %v6596
      %v6645 = vpack.c.b16 %v6597, %v6597
      %v6646 = vpack.c.b16 %v6598, %v6598
      %v6647 = vpack.c.b16 %v6599, %v6599
      %v6648 = vpack.c.b16 %v6600, %v6600
      %v6649 = vpack.c.b16 %v6601, %v6601
      %v6650 = vpack.c.b16 %v6602, %v6602
      %v6651 = vpack.c.b16 %v6603, %v6603
      %v6652 = vpack.c.b16 %v6604, %v6604
      %v6653 = vpack.c.b16 %v6605, %v6605
      %v6654 = vpack.c.b16 %v6606, %v6606
      %v6655 = vpack.c.b16 %v6607, %v6607
      %vm6704 = vcmask 27648
      %6705 = vst.msk [vmem:[%s201] sm:$0xf] %vm6704, %v6608
      %6706 = vst.msk [vmem:[%s201 + $0x4] sm:$0xf] %vm6704, %v6609
      %6707 = vst.msk [vmem:[%s201 + $0x8] sm:$0xf] %vm6704, %v6610
      %6708 = vst.msk [vmem:[%s201 + $0xc] sm:$0xf] %vm6704, %v6611
      %6709 = vst.msk [vmem:[%s201 + $0x10] sm:$0xf] %vm6704, %v6612
      %6710 = vst.msk [vmem:[%s201 + $0x14] sm:$0xf] %vm6704, %v6613
      %6711 = vst.msk [vmem:[%s201 + $0x18] sm:$0xf] %vm6704, %v6614
      %6712 = vst.msk [vmem:[%s201 + $0x1c] sm:$0xf] %vm6704, %v6615
      %6713 = vst.msk [vmem:[%s201 + $0x20] sm:$0xf] %vm6704, %v6616
      %6714 = vst.msk [vmem:[%s201 + $0x24] sm:$0xf] %vm6704, %v6617
      %6715 = vst.msk [vmem:[%s201 + $0x28] sm:$0xf] %vm6704, %v6618
      %6716 = vst.msk [vmem:[%s201 + $0x2c] sm:$0xf] %vm6704, %v6619
      %6717 = vst.msk [vmem:[%s201 + $0x30] sm:$0xf] %vm6704, %v6620
      %6718 = vst.msk [vmem:[%s201 + $0x34] sm:$0xf] %vm6704, %v6621
      %6719 = vst.msk [vmem:[%s201 + $0x38] sm:$0xf] %vm6704, %v6622
      %6720 = vst.msk [vmem:[%s201 + $0x3c] sm:$0xf] %vm6704, %v6623
      %6721 = vst.msk [vmem:[%s201 + $0x40] sm:$0xf] %vm6704, %v6624
      %6722 = vst.msk [vmem:[%s201 + $0x44] sm:$0xf] %vm6704, %v6625
      %6723 = vst.msk [vmem:[%s201 + $0x48] sm:$0xf] %vm6704, %v6626
      %6724 = vst.msk [vmem:[%s201 + $0x4c] sm:$0xf] %vm6704, %v6627
      %6725 = vst.msk [vmem:[%s201 + $0x50] sm:$0xf] %vm6704, %v6628
      %6726 = vst.msk [vmem:[%s201 + $0x54] sm:$0xf] %vm6704, %v6629
      %6727 = vst.msk [vmem:[%s201 + $0x58] sm:$0xf] %vm6704, %v6630
      %6728 = vst.msk [vmem:[%s201 + $0x5c] sm:$0xf] %vm6704, %v6631
      %6729 = vst.msk [vmem:[%s201 + $0x60] sm:$0xf] %vm6704, %v6632
      %6730 = vst.msk [vmem:[%s201 + $0x64] sm:$0xf] %vm6704, %v6633
      %6731 = vst.msk [vmem:[%s201 + $0x68] sm:$0xf] %vm6704, %v6634
      %6732 = vst.msk [vmem:[%s201 + $0x6c] sm:$0xf] %vm6704, %v6635
      %6733 = vst.msk [vmem:[%s201 + $0x70] sm:$0xf] %vm6704, %v6636
      %6734 = vst.msk [vmem:[%s201 + $0x74] sm:$0xf] %vm6704, %v6637
      %6735 = vst.msk [vmem:[%s201 + $0x78] sm:$0xf] %vm6704, %v6638
      %6736 = vst.msk [vmem:[%s201 + $0x7c] sm:$0xf] %vm6704, %v6639
      %6737 = vst.msk [vmem:[%s201 + $0x80] sm:$0xf] %vm6704, %v6640
      %6738 = vst.msk [vmem:[%s201 + $0x84] sm:$0xf] %vm6704, %v6641
      %6739 = vst.msk [vmem:[%s201 + $0x88] sm:$0xf] %vm6704, %v6642
      %6740 = vst.msk [vmem:[%s201 + $0x8c] sm:$0xf] %vm6704, %v6643
      %6741 = vst.msk [vmem:[%s201 + $0x90] sm:$0xf] %vm6704, %v6644
      %6742 = vst.msk [vmem:[%s201 + $0x94] sm:$0xf] %vm6704, %v6645
      %6743 = vst.msk [vmem:[%s201 + $0x98] sm:$0xf] %vm6704, %v6646
      %6744 = vst.msk [vmem:[%s201 + $0x9c] sm:$0xf] %vm6704, %v6647
      %6745 = vst.msk [vmem:[%s201 + $0xa0] sm:$0xf] %vm6704, %v6648
      %6746 = vst.msk [vmem:[%s201 + $0xa4] sm:$0xf] %vm6704, %v6649
      %6747 = vst.msk [vmem:[%s201 + $0xa8] sm:$0xf] %vm6704, %v6650
      %6748 = vst.msk [vmem:[%s201 + $0xac] sm:$0xf] %vm6704, %v6651
      %6749 = vst.msk [vmem:[%s201 + $0xb0] sm:$0xf] %vm6704, %v6652
      %6750 = vst.msk [vmem:[%s201 + $0xb4] sm:$0xf] %vm6704, %v6653
      %6751 = vst.msk [vmem:[%s201 + $0xb8] sm:$0xf] %vm6704, %v6654
      %6752 = vst.msk [vmem:[%s201 + $0xbc] sm:$0xf] %vm6704, %v6655
      %p6753 = scmp.lt.s32.totalorder %s21, 1
      %s6754 = scalar_select %p6753, %s21, 1
      %p6755 = scmp.lt.s32.totalorder %s22, 0
      %s6756 = scalar_select %p6755, %s22, 0
      %s6757 = smul.addr %s6756, 48
      %s6758 = smul.addr %s6754, 48
      %s6759 = sadd.s32 %s6757, %s6758
      %s6760 = smul.addr %s6759, 4
      %s6761 = scalar_lea.vmem %s6, %s6760
      // Predicated region
      $region105: #{up_forward.1} parent=35 // pred_check
        %p6762 = pneg %p133
      $region106: #{up_forward.1} parent=35 // pred_check_branch
        %6764 = sbr.rel (%p6762) target = $region108
      $region107: #{up_forward.1} parent=35 // pred_region
        _
      $region108: #{up_forward.1} parent=35 // pred_fallthru
        _
    $region36: #{up_forward.1} parent=5 // pred_fallthru
      _
    %p6765 = scmp.le.s32.totalorder 2, %s12
    // Predicated region
    $region109: #{up_forward.1} parent=5 // pred_check
      %p6766 = pneg %p6765
    $region110: #{up_forward.1} parent=5 // pred_check_branch
      %6768 = sbr.rel (%p6766) target = $region112
    $region111: #{up_forward.1} parent=5 // pred_region
      %s6769 = ssub.s32 %s12, 2
      // Predicated region
      $region113: #{up_forward.1} parent=111 // pred_check
        %p6770 = pneg %p139
      $region114: #{up_forward.1} parent=111 // pred_check_branch
        %6772 = sbr.rel (%p6770) target = $region116
      $region115: #{up_forward.1} parent=111 // pred_region
        %p6773 = scmp.lt.s32.totalorder %s23, 1
        %s6774 = scalar_select %p6773, %s23, 1
        %p6775 = scmp.lt.s32.totalorder %s24, 0
        %s6776 = scalar_select %p6775, %s24, 0
        %s6777 = smul.addr %s6776, 48
        %s6778 = smul.addr %s6774, 48
        %s6779 = sadd.s32 %s6777, %s6778
        %s6780 = smul.addr %s6779, 4
        %s6781 = scalar_lea.vmem %s6, %s6780
      $region116: #{up_forward.1} parent=111 // pred_fallthru
        _
    $region112: #{up_forward.1} parent=5 // pred_fallthru
      _
  $region6: #{up_forward.1} parent=0 // loop_footer
    %s16 = sadd.s32 1, %s12
  $region7: #{up_forward.1} parent=0 // loop_footer_branch
    %11 = sbr.rel target = $region3
  $region8: #{up_forward.1} parent=0 // loop_exit
    _
  %6782 = vsyncmov [#allocation4]
  %s6783 = vpop.sfrf %6782
  %p6784 = scmp.eq.s32.totalorder %s6783, 0
  %p6785 = pneg %p6784
  %6787 = shalt.err (%p6785)
  %s6788 = scalar_lea.sflag [#allocation4], 1
  %6789 = vsyncmov %s6788
  %s6790 = vpop.sfrf %6789
  %p6791 = scmp.eq.s32.totalorder %s6790, 0
  %p6792 = pneg %p6791
  %6794 = shalt.err (%p6792)

</llo_original>
